<compile_context>
chip_gen: v7x
topology: tpu7x:2x2x1
jax: 0.10.0
libtpu: 0.0.40
codegen_flags: <defaults>
</compile_context>

<pallas_src>
import math
import numpy as np
import jax
import jax.numpy as jnp
from jax.experimental import pallas as pl
from jax.experimental.pallas import tpu as pltpu  # noqa: F401  (kept for TPU-specific tuning hooks)

# ---- model hyper-parameters (small, consistent with the module) ----
D_MODEL = 32
NUM_HEADS = 4
D_FF = 64
NUM_LAYERS = 2
MAX_SEQ = 16
BATCH = 2
SEQ = 8
EPS = 1e-6
D_K = D_MODEL // NUM_HEADS
BS = BATCH * SEQ


# ---------------------------------------------------------------------------
# The fused Pallas kernel: positional encoding + NUM_LAYERS encoder layers
# ---------------------------------------------------------------------------
def encoder_kernel(x_ref, pe_ref, mask_ref,
                   wqkv_ref, wo_ref, w1_ref, w2_ref, vec_ref,
                   o_ref):
    # x_ref:    (B*S, D)          flattened activations
    # pe_ref:   (B*S, D)          positional encoding, pre-tiled over the batch
    # mask_ref: (B*S, B*S)        0 within a batch element, -1e9 across elements
    # wqkv_ref: (L, H, D, 3*Dk)   per-head packed [W_Q | W_K | W_V]
    # wo_ref:   (L, H, Dk, D)     per-head rows of W_O
    # w1_ref:   (L, D, D_FF), w2_ref: (L, D_FF, D)
    # vec_ref:  (L, 6, D_FF)      rows: b_1, b_2, gamma1, beta1, gamma2, beta2
    x = x_ref[...] + pe_ref[...]                       # positional encoding
    bmask = mask_ref[...]

    scale = 1.0 / math.sqrt(D_K)
    inv_nm1 = 1.0 / (D_MODEL - 1)                      # torch.std() is unbiased (N-1)

    for l in range(NUM_LAYERS):                        # static unroll over layers
        wqkv = wqkv_ref[l]                             # (H, D, 3*Dk)
        wo = wo_ref[l]                                 # (H, Dk, D)
        w1 = w1_ref[l]                                 # (D, D_FF)
        w2 = w2_ref[l]                                 # (D_FF, D)
        vecs = vec_ref[l]                              # (6, D_FF)
        b1 = vecs[0:1, :]                              # (1, D_FF)
        b2 = vecs[1:2, :D_MODEL]                       # (1, D)
        g1 = vecs[2:3, :D_MODEL]
        be1 = vecs[3:4, :D_MODEL]
        g2 = vecs[4:5, :D_MODEL]
        be2 = vecs[5:6, :D_MODEL]

        # ----- multi-head self-attention (all heads + whole batch, batched) -----
        xh = jnp.broadcast_to(x[None], (NUM_HEADS, BS, D_MODEL))       # (H, B*S, D)
        qkv = jnp.einsum('hsd,hdk->hsk', xh, wqkv,
                         preferred_element_type=jnp.float32)           # (H, B*S, 3*Dk)
        q = qkv[..., 0:D_K]
        k = qkv[..., D_K:2 * D_K]
        v = qkv[..., 2 * D_K:3 * D_K]

        s = jnp.einsum('hqd,hkd->hqk', q, k,
                       preferred_element_type=jnp.float32) * scale     # (H, B*S, B*S)
        s = s + bmask                                   # keep attention within each batch row
        s = s - jnp.max(s, axis=-1, keepdims=True)      # stable softmax (same result as F.softmax)
        e = jnp.exp(s)
        p = e * pl.reciprocal(jnp.sum(e, axis=-1, keepdims=True), approx=True)
        ctx = jnp.einsum('hqk,hkd->hqd', p, v,
                         preferred_element_type=jnp.float32)           # (H, B*S, Dk)
        proj = jnp.einsum('hqd,hdm->hqm', ctx, wo,
                          preferred_element_type=jnp.float32)          # (H, B*S, D)
        attn = proj[0]
        for h in range(1, NUM_HEADS):                   # major-axis adds (no lane concat)
            attn = attn + proj[h]

        # ----- residual + Normalization #1: (y - mean) / (unbiased std + eps) -----
        y = x + attn
        mean1 = jnp.mean(y, axis=-1, keepdims=True)
        d1 = y - mean1
        std1 = jnp.sqrt(jnp.sum(d1 * d1, axis=-1, keepdims=True) * inv_nm1)
        y = g1 * (d1 * pl.reciprocal(std1 + EPS, approx=True)) + be1

        # ----- feed forward -----
        h1 = jnp.dot(y, w1, preferred_element_type=jnp.float32) + b1
        h1 = jnp.maximum(h1, 0.0)
        ff = jnp.dot(h1, w2, preferred_element_type=jnp.float32) + b2

        # ----- residual + Normalization #2 -----
        z = y + ff
        mean2 = jnp.mean(z, axis=-1, keepdims=True)
        d2 = z - mean2
        std2 = jnp.sqrt(jnp.sum(d2 * d2, axis=-1, keepdims=True) * inv_nm1)
        x = g2 * (d2 * pl.reciprocal(std2 + EPS, approx=True)) + be2

    o_ref[...] = x


# ---------------------------------------------------------------------------
# Wrapper: one pallas_call for the whole encoder forward pass
# ---------------------------------------------------------------------------
@jax.jit
def encoder_forward(x, pe_tiled, batch_mask, wqkv, wo, w1, w2, vecs):
    B, S, D = x.shape
    x2d = x.reshape(B * S, D)
    out2d = pl.pallas_call(
        encoder_kernel,
        out_shape=jax.ShapeDtypeStruct((B * S, D), jnp.float32),
        # No grid / BlockSpecs: single invocation, every array lives whole in VMEM.
    )(x2d, pe_tiled, batch_mask, wqkv, wo, w1, w2, vecs)
    return out2d.reshape(B, S, D)


# ---------------------------------------------------------------------------
# Deterministic parameter construction + host-side packing
# ---------------------------------------------------------------------------
def xavier_normal(key, n_in, n_out):
    std = math.sqrt(2.0 / (n_in + n_out))
    return (std * jax.random.normal(key, (n_in, n_out))).astype(jnp.float32)


def make_layer_params(key):
    ks = jax.random.split(key, 6)
    return {
        "W_Q": xavier_normal(ks[0], D_MODEL, D_MODEL),
        "W_K": xavier_normal(ks[1], D_MODEL, D_MODEL),
        "W_V": xavier_normal(ks[2], D_MODEL, D_MODEL),
        "W_O": xavier_normal(ks[3], D_MODEL, D_MODEL),
        "W_1": xavier_normal(ks[4], D_MODEL, D_FF),
        "b_1": jnp.zeros((D_FF,), jnp.float32),
        "b_2": jnp.zeros((D_MODEL,), jnp.float32),
        "W_2": xavier_normal(ks[5], D_FF, D_MODEL),
        "gamma1": jnp.ones((D_MODEL,), jnp.float32),
        "beta1": jnp.zeros((D_MODEL,), jnp.float32),
        "gamma2": jnp.ones((D_MODEL,), jnp.float32),
        "beta2": jnp.zeros((D_MODEL,), jnp.float32),
    }


def pack_params(layer_params):
    """Pack per-layer weights into a few stacked arrays (host-side, free)."""
    wqkv_l, wo_l, w1_l, w2_l, vec_l = [], [], [], [], []
    for p in layer_params:
        # per-head column blocks of W_Q/W_K/W_V -> (H, D, Dk) each, concatenated to (H, D, 3*Dk)
        wq_h = p["W_Q"].reshape(D_MODEL, NUM_HEADS, D_K).transpose(1, 0, 2)
        wk_h = p["W_K"].reshape(D_MODEL, NUM_HEADS, D_K).transpose(1, 0, 2)
        wv_h = p["W_V"].reshape(D_MODEL, NUM_HEADS, D_K).transpose(1, 0, 2)
        wqkv_l.append(jnp.concatenate([wq_h, wk_h, wv_h], axis=-1))   # (H, D, 3*Dk)
        # per-head row blocks of W_O -> (H, Dk, D); sum_h ctx_h @ W_O[h] == concat(ctx) @ W_O
        wo_l.append(p["W_O"].reshape(NUM_HEADS, D_K, D_MODEL))
        w1_l.append(p["W_1"])
        w2_l.append(p["W_2"])
        v = jnp.zeros((6, D_FF), jnp.float32)
        v = v.at[0, :D_FF].set(p["b_1"])
        v = v.at[1, :D_MODEL].set(p["b_2"])
        v = v.at[2, :D_MODEL].set(p["gamma1"])
        v = v.at[3, :D_MODEL].set(p["beta1"])
        v = v.at[4, :D_MODEL].set(p["gamma2"])
        v = v.at[5, :D_MODEL].set(p["beta2"])
        vec_l.append(v)
    return (jnp.stack(wqkv_l), jnp.stack(wo_l), jnp.stack(w1_l),
            jnp.stack(w2_l), jnp.stack(vec_l))


def make_positional_encoding(max_seq, d_model):
    # Replicates the torch loop exactly:
    #   pe[pos, i]   = sin(pos / 10000 ** (2*i / d_model))
    #   pe[pos, i+1] = cos(pos / 10000 ** (2*(i+1) / d_model))
    pe = np.zeros((max_seq, d_model), dtype=np.float32)
    for pos in range(max_seq):
        for i in range(0, d_model, 2):
            pe[pos, i] = math.sin(pos / 10000 ** (2 * i / d_model))
            if i + 1 < d_model:
                pe[pos, i + 1] = math.cos(pos / 10000 ** (2 * (i + 1) / d_model))
    return pe


# ---------------------------------------------------------------------------
if __name__ == "__main__":
    key = jax.random.PRNGKey(0)
    k_x, *k_layers = jax.random.split(key, 1 + NUM_LAYERS)

    x = jax.random.normal(k_x, (BATCH, SEQ, D_MODEL), dtype=jnp.float32)

    # positional encoding, sliced to the actual sequence length and tiled over the batch
    pe_np = make_positional_encoding(MAX_SEQ, D_MODEL)[:SEQ]               # (S, D)
    pe_tiled = jnp.asarray(np.tile(pe_np, (BATCH, 1)))                     # (B*S, D)

    # block-diagonal additive mask: 0 within a batch element, -1e9 across elements
    same = np.kron(np.eye(BATCH, dtype=np.float32), np.ones((SEQ, SEQ), np.float32))
    batch_mask = jnp.asarray(np.where(same > 0, 0.0, -1e9).astype(np.float32))  # (B*S, B*S)

    layer_params = [make_layer_params(k) for k in k_layers]
    wqkv, wo, w1, w2, vecs = pack_params(layer_params)

    # TODO(synk): an externally supplied attention mask (the module's optional
    # `mask` argument) is not wired in; only the mask=None path is implemented.
    out = encoder_forward(x, pe_tiled, batch_mask, wqkv, wo, w1, w2, vecs)
    out = jax.block_until_ready(out)
    assert out.shape == (BATCH, SEQ, D_MODEL)
    print("KERNEL_OK")
</pallas_src>

<mosaic_0001>
module attributes {stable_mosaic.version = 11 : i64} {
  func.func @encoder_kernel(%arg0: memref<16x32xf32, #tpu.memory_space<vmem>>, %arg1: memref<16x32xf32, #tpu.memory_space<vmem>>, %arg2: memref<16x16xf32, #tpu.memory_space<vmem>>, %arg3: memref<2x4x32x24xf32, #tpu.memory_space<vmem>>, %arg4: memref<2x4x8x32xf32, #tpu.memory_space<vmem>>, %arg5: memref<2x32x64xf32, #tpu.memory_space<vmem>>, %arg6: memref<2x64x32xf32, #tpu.memory_space<vmem>>, %arg7: memref<2x6x64xf32, #tpu.memory_space<vmem>>, %arg8: memref<16x32xf32, #tpu.memory_space<vmem>>) attributes {dimension_semantics = [], scalar_prefetch = 0 : i64, scratch_operands = 0 : i64, tpu.core_type = #tpu.core_type<tc>} {
    %c0 = arith.constant 0 : index
    %c0_0 = arith.constant 0 : index
    %0 = vector.load %arg0[%c0, %c0_0] : memref<16x32xf32, #tpu.memory_space<vmem>>, vector<16x32xf32>
    %c0_1 = arith.constant 0 : index
    %c0_2 = arith.constant 0 : index
    %1 = vector.load %arg1[%c0_1, %c0_2] : memref<16x32xf32, #tpu.memory_space<vmem>>, vector<16x32xf32>
    %2 = arith.addf %0, %1 : vector<16x32xf32>
    %c0_3 = arith.constant 0 : index
    %c0_4 = arith.constant 0 : index
    %3 = vector.load %arg2[%c0_3, %c0_4] : memref<16x16xf32, #tpu.memory_space<vmem>>, vector<16x16xf32>
    %c0_5 = arith.constant 0 : index
    %c0_6 = arith.constant 0 : index
    %c0_7 = arith.constant 0 : index
    %c0_8 = arith.constant 0 : index
    %4 = vector.load %arg3[%c0_5, %c0_6, %c0_7, %c0_8] : memref<2x4x32x24xf32, #tpu.memory_space<vmem>>, vector<1x4x32x24xf32>
    %5 = vector.shape_cast %4 : vector<1x4x32x24xf32> to vector<4x32x24xf32>
    %c0_9 = arith.constant 0 : index
    %c0_10 = arith.constant 0 : index
    %c0_11 = arith.constant 0 : index
    %c0_12 = arith.constant 0 : index
    %6 = vector.load %arg4[%c0_9, %c0_10, %c0_11, %c0_12] : memref<2x4x8x32xf32, #tpu.memory_space<vmem>>, vector<1x4x8x32xf32>
    %7 = vector.shape_cast %6 : vector<1x4x8x32xf32> to vector<4x8x32xf32>
    %c0_13 = arith.constant 0 : index
    %c0_14 = arith.constant 0 : index
    %c0_15 = arith.constant 0 : index
    %8 = vector.load %arg5[%c0_13, %c0_14, %c0_15] : memref<2x32x64xf32, #tpu.memory_space<vmem>>, vector<1x32x64xf32>
    %9 = vector.shape_cast %8 : vector<1x32x64xf32> to vector<32x64xf32>
    %c0_16 = arith.constant 0 : index
    %c0_17 = arith.constant 0 : index
    %c0_18 = arith.constant 0 : index
    %10 = vector.load %arg6[%c0_16, %c0_17, %c0_18] : memref<2x64x32xf32, #tpu.memory_space<vmem>>, vector<1x64x32xf32>
    %11 = vector.shape_cast %10 : vector<1x64x32xf32> to vector<64x32xf32>
    %c0_19 = arith.constant 0 : index
    %c0_20 = arith.constant 0 : index
    %c0_21 = arith.constant 0 : index
    %12 = vector.load %arg7[%c0_19, %c0_20, %c0_21] : memref<2x6x64xf32, #tpu.memory_space<vmem>>, vector<1x6x64xf32>
    %13 = vector.shape_cast %12 : vector<1x6x64xf32> to vector<6x64xf32>
    %14 = vector.extract_strided_slice %13 {offsets = [0, 0], sizes = [1, 64], strides = [1, 1]} : vector<6x64xf32> to vector<1x64xf32>
    %15 = vector.extract_strided_slice %13 {offsets = [1, 0], sizes = [1, 32], strides = [1, 1]} : vector<6x64xf32> to vector<1x32xf32>
    %16 = vector.extract_strided_slice %13 {offsets = [2, 0], sizes = [1, 32], strides = [1, 1]} : vector<6x64xf32> to vector<1x32xf32>
    %17 = vector.extract_strided_slice %13 {offsets = [3, 0], sizes = [1, 32], strides = [1, 1]} : vector<6x64xf32> to vector<1x32xf32>
    %18 = vector.extract_strided_slice %13 {offsets = [4, 0], sizes = [1, 32], strides = [1, 1]} : vector<6x64xf32> to vector<1x32xf32>
    %19 = vector.extract_strided_slice %13 {offsets = [5, 0], sizes = [1, 32], strides = [1, 1]} : vector<6x64xf32> to vector<1x32xf32>
    %20 = vector.shape_cast %2 : vector<16x32xf32> to vector<1x16x32xf32>
    %21 = vector.shape_cast %20 : vector<1x16x32xf32> to vector<1x16x32xf32>
    %22 = vector.broadcast %21 : vector<1x16x32xf32> to vector<4x16x32xf32>
    "tpu.trace_start"() <{level = 10 : i32, message = "hsd,hdk->hsk"}> : () -> ()
    %cst = arith.constant dense<0.000000e+00> : vector<4x16x24xf32>
    %23 = tpu.matmul %22, %5, %cst {dimension_numbers = #tpu.dot_dimension_numbers<[2], [1], [1], [2], [0, 0, 0, 1, 1, 2], [0], [0]>} : vector<4x16x32xf32>, vector<4x32x24xf32>, vector<4x16x24xf32> -> vector<4x16x24xf32>
    "tpu.trace_stop"() : () -> ()
    %24 = vector.extract_strided_slice %23 {offsets = [0, 0, 0], sizes = [4, 16, 8], strides = [1, 1, 1]} : vector<4x16x24xf32> to vector<4x16x8xf32>
    %25 = vector.extract_strided_slice %23 {offsets = [0, 0, 8], sizes = [4, 16, 8], strides = [1, 1, 1]} : vector<4x16x24xf32> to vector<4x16x8xf32>
    %26 = vector.extract_strided_slice %23 {offsets = [0, 0, 16], sizes = [4, 16, 8], strides = [1, 1, 1]} : vector<4x16x24xf32> to vector<4x16x8xf32>
    "tpu.trace_start"() <{level = 10 : i32, message = "hqd,hkd->hqk"}> : () -> ()
    %cst_22 = arith.constant dense<0.000000e+00> : vector<4x16x16xf32>
    %27 = tpu.matmul %24, %25, %cst_22 {dimension_numbers = #tpu.dot_dimension_numbers<[2], [2], [1], [1], [0, 0, 0, 1, 1, 1], [0], [0]>} : vector<4x16x8xf32>, vector<4x16x8xf32>, vector<4x16x16xf32> -> vector<4x16x16xf32>
    "tpu.trace_stop"() : () -> ()
    %cst_23 = arith.constant 0.353553385 : f32
    %28 = vector.broadcast %cst_23 : f32 to vector<4x16x16xf32>
    %29 = arith.mulf %27, %28 : vector<4x16x16xf32>
    %30 = vector.shape_cast %3 : vector<16x16xf32> to vector<1x16x16xf32>
    %31 = vector.broadcast %30 : vector<1x16x16xf32> to vector<4x16x16xf32>
    %32 = arith.addf %29, %31 : vector<4x16x16xf32>
    %cst_24 = arith.constant dense<0xFF800000> : vector<4x16xf32>
    %33 = vector.multi_reduction <maximumf>, %32, %cst_24 [2] : vector<4x16x16xf32> to vector<4x16xf32>
    %34 = vector.shape_cast %33 : vector<4x16xf32> to vector<4x16x1xf32>
    %35 = vector.broadcast %34 : vector<4x16x1xf32> to vector<4x16x16xf32>
    %36 = arith.subf %32, %35 : vector<4x16x16xf32>
    %37 = math.exp %36 : vector<4x16x16xf32>
    %cst_25 = arith.constant dense<0.000000e+00> : vector<4x16xf32>
    %38 = vector.multi_reduction <add>, %37, %cst_25 [2] : vector<4x16x16xf32> to vector<4x16xf32>
    %39 = vector.shape_cast %38 : vector<4x16xf32> to vector<4x16x1xf32>
    %40 = tpu.reciprocal %39 {approx = true} : vector<4x16x1xf32> -> vector<4x16x1xf32>
    %41 = vector.broadcast %40 : vector<4x16x1xf32> to vector<4x16x16xf32>
    %42 = arith.mulf %37, %41 : vector<4x16x16xf32>
    "tpu.trace_start"() <{level = 10 : i32, message = "hqk,hkd->hqd"}> : () -> ()
    %cst_26 = arith.constant dense<0.000000e+00> : vector<4x16x8xf32>
    %43 = tpu.matmul %42, %26, %cst_26 {dimension_numbers = #tpu.dot_dimension_numbers<[2], [1], [1], [2], [0, 0, 0, 1, 1, 2], [0], [0]>} : vector<4x16x16xf32>, vector<4x16x8xf32>, vector<4x16x8xf32> -> vector<4x16x8xf32>
    "tpu.trace_stop"() : () -> ()
    "tpu.trace_start"() <{level = 10 : i32, message = "hqd,hdm->hqm"}> : () -> ()
    %cst_27 = arith.constant dense<0.000000e+00> : vector<4x16x32xf32>
    %44 = tpu.matmul %43, %7, %cst_27 {dimension_numbers = #tpu.dot_dimension_numbers<[2], [1], [1], [2], [0, 0, 0, 1, 1, 2], [0], [0]>} : vector<4x16x8xf32>, vector<4x8x32xf32>, vector<4x16x32xf32> -> vector<4x16x32xf32>
    "tpu.trace_stop"() : () -> ()
    %45 = vector.extract_strided_slice %44 {offsets = [0, 0, 0], sizes = [1, 16, 32], strides = [1, 1, 1]} : vector<4x16x32xf32> to vector<1x16x32xf32>
    %46 = vector.shape_cast %45 : vector<1x16x32xf32> to vector<16x32xf32>
    %47 = vector.extract_strided_slice %44 {offsets = [1, 0, 0], sizes = [1, 16, 32], strides = [1, 1, 1]} : vector<4x16x32xf32> to vector<1x16x32xf32>
    %48 = vector.shape_cast %47 : vector<1x16x32xf32> to vector<16x32xf32>
    %49 = arith.addf %46, %48 : vector<16x32xf32>
    %50 = vector.extract_strided_slice %44 {offsets = [2, 0, 0], sizes = [1, 16, 32], strides = [1, 1, 1]} : vector<4x16x32xf32> to vector<1x16x32xf32>
    %51 = vector.shape_cast %50 : vector<1x16x32xf32> to vector<16x32xf32>
    %52 = arith.addf %49, %51 : vector<16x32xf32>
    %53 = vector.extract_strided_slice %44 {offsets = [3, 0, 0], sizes = [1, 16, 32], strides = [1, 1, 1]} : vector<4x16x32xf32> to vector<1x16x32xf32>
    %54 = vector.shape_cast %53 : vector<1x16x32xf32> to vector<16x32xf32>
    %55 = arith.addf %52, %54 : vector<16x32xf32>
    %56 = arith.addf %2, %55 : vector<16x32xf32>
    %cst_28 = arith.constant dense<0.000000e+00> : vector<16xf32>
    %57 = vector.multi_reduction <add>, %56, %cst_28 [1] : vector<16x32xf32> to vector<16xf32>
    %58 = vector.shape_cast %57 : vector<16xf32> to vector<16x1xf32>
    %cst_29 = arith.constant 3.200000e+01 : f32
    %59 = vector.broadcast %cst_29 : f32 to vector<16x1xf32>
    %60 = arith.divf %58, %59 : vector<16x1xf32>
    %61 = vector.broadcast %60 : vector<16x1xf32> to vector<16x32xf32>
    %62 = arith.subf %56, %61 : vector<16x32xf32>
    %63 = arith.mulf %62, %62 : vector<16x32xf32>
    %cst_30 = arith.constant dense<0.000000e+00> : vector<16xf32>
    %64 = vector.multi_reduction <add>, %63, %cst_30 [1] : vector<16x32xf32> to vector<16xf32>
    %65 = vector.shape_cast %64 : vector<16xf32> to vector<16x1xf32>
    %cst_31 = arith.constant 0.0322580636 : f32
    %66 = vector.broadcast %cst_31 : f32 to vector<16x1xf32>
    %67 = arith.mulf %65, %66 : vector<16x1xf32>
    %68 = math.sqrt %67 : vector<16x1xf32>
    %cst_32 = arith.constant 9.99999997E-7 : f32
    %69 = vector.broadcast %cst_32 : f32 to vector<16x1xf32>
    %70 = arith.addf %68, %69 : vector<16x1xf32>
    %71 = tpu.reciprocal %70 {approx = true} : vector<16x1xf32> -> vector<16x1xf32>
    %72 = vector.broadcast %71 : vector<16x1xf32> to vector<16x32xf32>
    %73 = arith.mulf %62, %72 : vector<16x32xf32>
    %74 = vector.broadcast %16 : vector<1x32xf32> to vector<16x32xf32>
    %75 = arith.mulf %74, %73 : vector<16x32xf32>
    %76 = vector.broadcast %17 : vector<1x32xf32> to vector<16x32xf32>
    %77 = arith.addf %75, %76 : vector<16x32xf32>
    %cst_33 = arith.constant dense<0.000000e+00> : vector<16x64xf32>
    %78 = tpu.matmul %77, %9, %cst_33 {dimension_numbers = #tpu.dot_dimension_numbers<[1], [0], [0], [1], [0, 0, 1, 1], [], []>} : vector<16x32xf32>, vector<32x64xf32>, vector<16x64xf32> -> vector<16x64xf32>
    %79 = vector.broadcast %14 : vector<1x64xf32> to vector<16x64xf32>
    %80 = arith.addf %78, %79 : vector<16x64xf32>
    %cst_34 = arith.constant 0.000000e+00 : f32
    %81 = vector.broadcast %cst_34 : f32 to vector<16x64xf32>
    %82 = arith.maximumf %80, %81 : vector<16x64xf32>
    %cst_35 = arith.constant dense<0.000000e+00> : vector<16x32xf32>
    %83 = tpu.matmul %82, %11, %cst_35 {dimension_numbers = #tpu.dot_dimension_numbers<[1], [0], [0], [1], [0, 0, 1, 1], [], []>} : vector<16x64xf32>, vector<64x32xf32>, vector<16x32xf32> -> vector<16x32xf32>
    %84 = vector.broadcast %15 : vector<1x32xf32> to vector<16x32xf32>
    %85 = arith.addf %83, %84 : vector<16x32xf32>
    %86 = arith.addf %77, %85 : vector<16x32xf32>
    %cst_36 = arith.constant dense<0.000000e+00> : vector<16xf32>
    %87 = vector.multi_reduction <add>, %86, %cst_36 [1] : vector<16x32xf32> to vector<16xf32>
    %88 = vector.shape_cast %87 : vector<16xf32> to vector<16x1xf32>
    %cst_37 = arith.constant 3.200000e+01 : f32
    %89 = vector.broadcast %cst_37 : f32 to vector<16x1xf32>
    %90 = arith.divf %88, %89 : vector<16x1xf32>
    %91 = vector.broadcast %90 : vector<16x1xf32> to vector<16x32xf32>
    %92 = arith.subf %86, %91 : vector<16x32xf32>
    %93 = arith.mulf %92, %92 : vector<16x32xf32>
    %cst_38 = arith.constant dense<0.000000e+00> : vector<16xf32>
    %94 = vector.multi_reduction <add>, %93, %cst_38 [1] : vector<16x32xf32> to vector<16xf32>
    %95 = vector.shape_cast %94 : vector<16xf32> to vector<16x1xf32>
    %cst_39 = arith.constant 0.0322580636 : f32
    %96 = vector.broadcast %cst_39 : f32 to vector<16x1xf32>
    %97 = arith.mulf %95, %96 : vector<16x1xf32>
    %98 = math.sqrt %97 : vector<16x1xf32>
    %cst_40 = arith.constant 9.99999997E-7 : f32
    %99 = vector.broadcast %cst_40 : f32 to vector<16x1xf32>
    %100 = arith.addf %98, %99 : vector<16x1xf32>
    %101 = tpu.reciprocal %100 {approx = true} : vector<16x1xf32> -> vector<16x1xf32>
    %102 = vector.broadcast %101 : vector<16x1xf32> to vector<16x32xf32>
    %103 = arith.mulf %92, %102 : vector<16x32xf32>
    %104 = vector.broadcast %18 : vector<1x32xf32> to vector<16x32xf32>
    %105 = arith.mulf %104, %103 : vector<16x32xf32>
    %106 = vector.broadcast %19 : vector<1x32xf32> to vector<16x32xf32>
    %107 = arith.addf %105, %106 : vector<16x32xf32>
    %c1 = arith.constant 1 : index
    %c0_41 = arith.constant 0 : index
    %c0_42 = arith.constant 0 : index
    %c0_43 = arith.constant 0 : index
    %108 = vector.load %arg3[%c1, %c0_41, %c0_42, %c0_43] : memref<2x4x32x24xf32, #tpu.memory_space<vmem>>, vector<1x4x32x24xf32>
    %109 = vector.shape_cast %108 : vector<1x4x32x24xf32> to vector<4x32x24xf32>
    %c1_44 = arith.constant 1 : index
    %c0_45 = arith.constant 0 : index
    %c0_46 = arith.constant 0 : index
    %c0_47 = arith.constant 0 : index
    %110 = vector.load %arg4[%c1_44, %c0_45, %c0_46, %c0_47] : memref<2x4x8x32xf32, #tpu.memory_space<vmem>>, vector<1x4x8x32xf32>
    %111 = vector.shape_cast %110 : vector<1x4x8x32xf32> to vector<4x8x32xf32>
    %c1_48 = arith.constant 1 : index
    %c0_49 = arith.constant 0 : index
    %c0_50 = arith.constant 0 : index
    %112 = vector.load %arg5[%c1_48, %c0_49, %c0_50] : memref<2x32x64xf32, #tpu.memory_space<vmem>>, vector<1x32x64xf32>
    %113 = vector.shape_cast %112 : vector<1x32x64xf32> to vector<32x64xf32>
    %c1_51 = arith.constant 1 : index
    %c0_52 = arith.constant 0 : index
    %c0_53 = arith.constant 0 : index
    %114 = vector.load %arg6[%c1_51, %c0_52, %c0_53] : memref<2x64x32xf32, #tpu.memory_space<vmem>>, vector<1x64x32xf32>
    %115 = vector.shape_cast %114 : vector<1x64x32xf32> to vector<64x32xf32>
    %c1_54 = arith.constant 1 : index
    %c0_55 = arith.constant 0 : index
    %c0_56 = arith.constant 0 : index
    %116 = vector.load %arg7[%c1_54, %c0_55, %c0_56] : memref<2x6x64xf32, #tpu.memory_space<vmem>>, vector<1x6x64xf32>
    %117 = vector.shape_cast %116 : vector<1x6x64xf32> to vector<6x64xf32>
    %118 = vector.extract_strided_slice %117 {offsets = [0, 0], sizes = [1, 64], strides = [1, 1]} : vector<6x64xf32> to vector<1x64xf32>
    %119 = vector.extract_strided_slice %117 {offsets = [1, 0], sizes = [1, 32], strides = [1, 1]} : vector<6x64xf32> to vector<1x32xf32>
    %120 = vector.extract_strided_slice %117 {offsets = [2, 0], sizes = [1, 32], strides = [1, 1]} : vector<6x64xf32> to vector<1x32xf32>
    %121 = vector.extract_strided_slice %117 {offsets = [3, 0], sizes = [1, 32], strides = [1, 1]} : vector<6x64xf32> to vector<1x32xf32>
    %122 = vector.extract_strided_slice %117 {offsets = [4, 0], sizes = [1, 32], strides = [1, 1]} : vector<6x64xf32> to vector<1x32xf32>
    %123 = vector.extract_strided_slice %117 {offsets = [5, 0], sizes = [1, 32], strides = [1, 1]} : vector<6x64xf32> to vector<1x32xf32>
    %124 = vector.shape_cast %107 : vector<16x32xf32> to vector<1x16x32xf32>
    %125 = vector.shape_cast %124 : vector<1x16x32xf32> to vector<1x16x32xf32>
    %126 = vector.broadcast %125 : vector<1x16x32xf32> to vector<4x16x32xf32>
    "tpu.trace_start"() <{level = 10 : i32, message = "hsd,hdk->hsk"}> : () -> ()
    %cst_57 = arith.constant dense<0.000000e+00> : vector<4x16x24xf32>
    %127 = tpu.matmul %126, %109, %cst_57 {dimension_numbers = #tpu.dot_dimension_numbers<[2], [1], [1], [2], [0, 0, 0, 1, 1, 2], [0], [0]>} : vector<4x16x32xf32>, vector<4x32x24xf32>, vector<4x16x24xf32> -> vector<4x16x24xf32>
    "tpu.trace_stop"() : () -> ()
    %128 = vector.extract_strided_slice %127 {offsets = [0, 0, 0], sizes = [4, 16, 8], strides = [1, 1, 1]} : vector<4x16x24xf32> to vector<4x16x8xf32>
    %129 = vector.extract_strided_slice %127 {offsets = [0, 0, 8], sizes = [4, 16, 8], strides = [1, 1, 1]} : vector<4x16x24xf32> to vector<4x16x8xf32>
    %130 = vector.extract_strided_slice %127 {offsets = [0, 0, 16], sizes = [4, 16, 8], strides = [1, 1, 1]} : vector<4x16x24xf32> to vector<4x16x8xf32>
    "tpu.trace_start"() <{level = 10 : i32, message = "hqd,hkd->hqk"}> : () -> ()
    %cst_58 = arith.constant dense<0.000000e+00> : vector<4x16x16xf32>
    %131 = tpu.matmul %128, %129, %cst_58 {dimension_numbers = #tpu.dot_dimension_numbers<[2], [2], [1], [1], [0, 0, 0, 1, 1, 1], [0], [0]>} : vector<4x16x8xf32>, vector<4x16x8xf32>, vector<4x16x16xf32> -> vector<4x16x16xf32>
    "tpu.trace_stop"() : () -> ()
    %cst_59 = arith.constant 0.353553385 : f32
    %132 = vector.broadcast %cst_59 : f32 to vector<4x16x16xf32>
    %133 = arith.mulf %131, %132 : vector<4x16x16xf32>
    %134 = vector.shape_cast %3 : vector<16x16xf32> to vector<1x16x16xf32>
    %135 = vector.broadcast %134 : vector<1x16x16xf32> to vector<4x16x16xf32>
    %136 = arith.addf %133, %135 : vector<4x16x16xf32>
    %cst_60 = arith.constant dense<0xFF800000> : vector<4x16xf32>
    %137 = vector.multi_reduction <maximumf>, %136, %cst_60 [2] : vector<4x16x16xf32> to vector<4x16xf32>
    %138 = vector.shape_cast %137 : vector<4x16xf32> to vector<4x16x1xf32>
    %139 = vector.broadcast %138 : vector<4x16x1xf32> to vector<4x16x16xf32>
    %140 = arith.subf %136, %139 : vector<4x16x16xf32>
    %141 = math.exp %140 : vector<4x16x16xf32>
    %cst_61 = arith.constant dense<0.000000e+00> : vector<4x16xf32>
    %142 = vector.multi_reduction <add>, %141, %cst_61 [2] : vector<4x16x16xf32> to vector<4x16xf32>
    %143 = vector.shape_cast %142 : vector<4x16xf32> to vector<4x16x1xf32>
    %144 = tpu.reciprocal %143 {approx = true} : vector<4x16x1xf32> -> vector<4x16x1xf32>
    %145 = vector.broadcast %144 : vector<4x16x1xf32> to vector<4x16x16xf32>
    %146 = arith.mulf %141, %145 : vector<4x16x16xf32>
    "tpu.trace_start"() <{level = 10 : i32, message = "hqk,hkd->hqd"}> : () -> ()
    %cst_62 = arith.constant dense<0.000000e+00> : vector<4x16x8xf32>
    %147 = tpu.matmul %146, %130, %cst_62 {dimension_numbers = #tpu.dot_dimension_numbers<[2], [1], [1], [2], [0, 0, 0, 1, 1, 2], [0], [0]>} : vector<4x16x16xf32>, vector<4x16x8xf32>, vector<4x16x8xf32> -> vector<4x16x8xf32>
    "tpu.trace_stop"() : () -> ()
    "tpu.trace_start"() <{level = 10 : i32, message = "hqd,hdm->hqm"}> : () -> ()
    %cst_63 = arith.constant dense<0.000000e+00> : vector<4x16x32xf32>
    %148 = tpu.matmul %147, %111, %cst_63 {dimension_numbers = #tpu.dot_dimension_numbers<[2], [1], [1], [2], [0, 0, 0, 1, 1, 2], [0], [0]>} : vector<4x16x8xf32>, vector<4x8x32xf32>, vector<4x16x32xf32> -> vector<4x16x32xf32>
    "tpu.trace_stop"() : () -> ()
    %149 = vector.extract_strided_slice %148 {offsets = [0, 0, 0], sizes = [1, 16, 32], strides = [1, 1, 1]} : vector<4x16x32xf32> to vector<1x16x32xf32>
    %150 = vector.shape_cast %149 : vector<1x16x32xf32> to vector<16x32xf32>
    %151 = vector.extract_strided_slice %148 {offsets = [1, 0, 0], sizes = [1, 16, 32], strides = [1, 1, 1]} : vector<4x16x32xf32> to vector<1x16x32xf32>
    %152 = vector.shape_cast %151 : vector<1x16x32xf32> to vector<16x32xf32>
    %153 = arith.addf %150, %152 : vector<16x32xf32>
    %154 = vector.extract_strided_slice %148 {offsets = [2, 0, 0], sizes = [1, 16, 32], strides = [1, 1, 1]} : vector<4x16x32xf32> to vector<1x16x32xf32>
    %155 = vector.shape_cast %154 : vector<1x16x32xf32> to vector<16x32xf32>
    %156 = arith.addf %153, %155 : vector<16x32xf32>
    %157 = vector.extract_strided_slice %148 {offsets = [3, 0, 0], sizes = [1, 16, 32], strides = [1, 1, 1]} : vector<4x16x32xf32> to vector<1x16x32xf32>
    %158 = vector.shape_cast %157 : vector<1x16x32xf32> to vector<16x32xf32>
    %159 = arith.addf %156, %158 : vector<16x32xf32>
    %160 = arith.addf %107, %159 : vector<16x32xf32>
    %cst_64 = arith.constant dense<0.000000e+00> : vector<16xf32>
    %161 = vector.multi_reduction <add>, %160, %cst_64 [1] : vector<16x32xf32> to vector<16xf32>
    %162 = vector.shape_cast %161 : vector<16xf32> to vector<16x1xf32>
    %cst_65 = arith.constant 3.200000e+01 : f32
    %163 = vector.broadcast %cst_65 : f32 to vector<16x1xf32>
    %164 = arith.divf %162, %163 : vector<16x1xf32>
    %165 = vector.broadcast %164 : vector<16x1xf32> to vector<16x32xf32>
    %166 = arith.subf %160, %165 : vector<16x32xf32>
    %167 = arith.mulf %166, %166 : vector<16x32xf32>
    %cst_66 = arith.constant dense<0.000000e+00> : vector<16xf32>
    %168 = vector.multi_reduction <add>, %167, %cst_66 [1] : vector<16x32xf32> to vector<16xf32>
    %169 = vector.shape_cast %168 : vector<16xf32> to vector<16x1xf32>
    %cst_67 = arith.constant 0.0322580636 : f32
    %170 = vector.broadcast %cst_67 : f32 to vector<16x1xf32>
    %171 = arith.mulf %169, %170 : vector<16x1xf32>
    %172 = math.sqrt %171 : vector<16x1xf32>
    %cst_68 = arith.constant 9.99999997E-7 : f32
    %173 = vector.broadcast %cst_68 : f32 to vector<16x1xf32>
    %174 = arith.addf %172, %173 : vector<16x1xf32>
    %175 = tpu.reciprocal %174 {approx = true} : vector<16x1xf32> -> vector<16x1xf32>
    %176 = vector.broadcast %175 : vector<16x1xf32> to vector<16x32xf32>
    %177 = arith.mulf %166, %176 : vector<16x32xf32>
    %178 = vector.broadcast %120 : vector<1x32xf32> to vector<16x32xf32>
    %179 = arith.mulf %178, %177 : vector<16x32xf32>
    %180 = vector.broadcast %121 : vector<1x32xf32> to vector<16x32xf32>
    %181 = arith.addf %179, %180 : vector<16x32xf32>
    %cst_69 = arith.constant dense<0.000000e+00> : vector<16x64xf32>
    %182 = tpu.matmul %181, %113, %cst_69 {dimension_numbers = #tpu.dot_dimension_numbers<[1], [0], [0], [1], [0, 0, 1, 1], [], []>} : vector<16x32xf32>, vector<32x64xf32>, vector<16x64xf32> -> vector<16x64xf32>
    %183 = vector.broadcast %118 : vector<1x64xf32> to vector<16x64xf32>
    %184 = arith.addf %182, %183 : vector<16x64xf32>
    %cst_70 = arith.constant 0.000000e+00 : f32
    %185 = vector.broadcast %cst_70 : f32 to vector<16x64xf32>
    %186 = arith.maximumf %184, %185 : vector<16x64xf32>
    %cst_71 = arith.constant dense<0.000000e+00> : vector<16x32xf32>
    %187 = tpu.matmul %186, %115, %cst_71 {dimension_numbers = #tpu.dot_dimension_numbers<[1], [0], [0], [1], [0, 0, 1, 1], [], []>} : vector<16x64xf32>, vector<64x32xf32>, vector<16x32xf32> -> vector<16x32xf32>
    %188 = vector.broadcast %119 : vector<1x32xf32> to vector<16x32xf32>
    %189 = arith.addf %187, %188 : vector<16x32xf32>
    %190 = arith.addf %181, %189 : vector<16x32xf32>
    %cst_72 = arith.constant dense<0.000000e+00> : vector<16xf32>
    %191 = vector.multi_reduction <add>, %190, %cst_72 [1] : vector<16x32xf32> to vector<16xf32>
    %192 = vector.shape_cast %191 : vector<16xf32> to vector<16x1xf32>
    %cst_73 = arith.constant 3.200000e+01 : f32
    %193 = vector.broadcast %cst_73 : f32 to vector<16x1xf32>
    %194 = arith.divf %192, %193 : vector<16x1xf32>
    %195 = vector.broadcast %194 : vector<16x1xf32> to vector<16x32xf32>
    %196 = arith.subf %190, %195 : vector<16x32xf32>
    %197 = arith.mulf %196, %196 : vector<16x32xf32>
    %cst_74 = arith.constant dense<0.000000e+00> : vector<16xf32>
    %198 = vector.multi_reduction <add>, %197, %cst_74 [1] : vector<16x32xf32> to vector<16xf32>
    %199 = vector.shape_cast %198 : vector<16xf32> to vector<16x1xf32>
    %cst_75 = arith.constant 0.0322580636 : f32
    %200 = vector.broadcast %cst_75 : f32 to vector<16x1xf32>
    %201 = arith.mulf %199, %200 : vector<16x1xf32>
    %202 = math.sqrt %201 : vector<16x1xf32>
    %cst_76 = arith.constant 9.99999997E-7 : f32
    %203 = vector.broadcast %cst_76 : f32 to vector<16x1xf32>
    %204 = arith.addf %202, %203 : vector<16x1xf32>
    %205 = tpu.reciprocal %204 {approx = true} : vector<16x1xf32> -> vector<16x1xf32>
    %206 = vector.broadcast %205 : vector<16x1xf32> to vector<16x32xf32>
    %207 = arith.mulf %196, %206 : vector<16x32xf32>
    %208 = vector.broadcast %122 : vector<1x32xf32> to vector<16x32xf32>
    %209 = arith.mulf %208, %207 : vector<16x32xf32>
    %210 = vector.broadcast %123 : vector<1x32xf32> to vector<16x32xf32>
    %211 = arith.addf %209, %210 : vector<16x32xf32>
    %c0_77 = arith.constant 0 : index
    %c0_78 = arith.constant 0 : index
    %212 = vector.load %arg8[%c0_77, %c0_78] : memref<16x32xf32, #tpu.memory_space<vmem>>, vector<16x32xf32>
    tpu.vector_store %arg8[%c0_77, %c0_78], %211 {strides = array<i32>} : memref<16x32xf32, #tpu.memory_space<vmem>>, vector<16x32xf32>,
    return
  }
}

</mosaic_0001>

<llo_original>
// kernel: encoder_forward.1
$region0: #{encoder_forward.1}
  #allocation0 [shape = 'u32[]', space=smem, size = 0x4, offset = 0x4, fixed_abs, tag = 'smem constant byte address 0x4 - core index']
  #allocation1 [shape = 'u32[144,128]{1,0:T(1,128)}', space=vmem, size = 0x12000, scoped, tag = 'internal scratch']
  %s0 = inlined_call_operand.vmem [shape: f32[16,32], index: 0, kind: input, shape index: {}]
  %s1 = inlined_call_operand.vmem [shape: f32[16,32], index: 1, kind: input, shape index: {}]
  %s2 = inlined_call_operand.vmem [shape: f32[16,16], index: 2, kind: input, shape index: {}]
  %s3 = inlined_call_operand.vmem [shape: f32[2,4,32,24], index: 3, kind: input, shape index: {}]
  %s4 = inlined_call_operand.vmem [shape: f32[2,4,8,32], index: 4, kind: input, shape index: {}]
  %s5 = inlined_call_operand.vmem [shape: f32[2,32,64], index: 5, kind: input, shape index: {}]
  %s6 = inlined_call_operand.vmem [shape: f32[2,64,32], index: 6, kind: input, shape index: {}]
  %s7 = inlined_call_operand.vmem [shape: f32[2,6,64], index: 7, kind: input, shape index: {}]
  %s8 = inlined_call_operand.hbm [shape: f32[16,32], index: 8, kind: output, shape index: {}]
  %s9 = sld [smem:[#allocation0]]
  $region42: #{encoder_forward.1} parent=0
    _
  %s11 = ssub.s32 1, %s9
  %s12 = scalar_select 0, %s11, %s9
  $region1: #{encoder_forward.1} parent=0
    #allocation2 [shape = 'u8[8192]{0}', space=vmem, size = 0x2000, scoped, tag = 'output window, operand 0, single buffered']
    #allocation3 [shape = 's32[1]{0}', space=sflag, size = 0x4, scoped, tag = 'scoped memory for encoder_forward.1']
    %13 = vsyncpa [#allocation3], 0
    // Predicated region
    $region2: #{encoder_forward.1} parent=1 // pred_check
      _
    $region3: #{encoder_forward.1} parent=1 // pred_check_branch
      %15 = sbr.rel (0) target = $region5
    $region4: #{encoder_forward.1} parent=1 // pred_region
      _
    $region5: #{encoder_forward.1} parent=1 // pred_fallthru
      _
    // Predicated region
    $region6: #{encoder_forward.1} parent=1 // pred_check
      _
    $region7: #{encoder_forward.1} parent=1 // pred_check_branch
      %17 = sbr.rel (0) target = $region9
    $region8: #{encoder_forward.1} parent=1 // pred_region
      _
    $region9: #{encoder_forward.1} parent=1 // pred_fallthru
      _
    // Predicated region
    $region10: #{encoder_forward.1} parent=1 // pred_check
      _
    $region11: #{encoder_forward.1} parent=1 // pred_check_branch
      %19 = sbr.rel (0) target = $region13
    $region12: #{encoder_forward.1} parent=1 // pred_region
      _
    $region13: #{encoder_forward.1} parent=1 // pred_fallthru
      _
    // Predicated region
    $region14: #{encoder_forward.1} parent=1 // pred_check
      _
    $region15: #{encoder_forward.1} parent=1 // pred_check_branch
      %21 = sbr.rel (0) target = $region17
    $region16: #{encoder_forward.1} parent=1 // pred_region
      _
    $region17: #{encoder_forward.1} parent=1 // pred_fallthru
      _
    // Predicated region
    $region18: #{encoder_forward.1} parent=1 // pred_check
      _
    $region19: #{encoder_forward.1} parent=1 // pred_check_branch
      %23 = sbr.rel (0) target = $region21
    $region20: #{encoder_forward.1} parent=1 // pred_region
      _
    $region21: #{encoder_forward.1} parent=1 // pred_fallthru
      _
    // Predicated region
    $region22: #{encoder_forward.1} parent=1 // pred_check
      _
    $region23: #{encoder_forward.1} parent=1 // pred_check_branch
      %25 = sbr.rel (0) target = $region25
    $region24: #{encoder_forward.1} parent=1 // pred_region
      _
    $region25: #{encoder_forward.1} parent=1 // pred_fallthru
      _
    // Predicated region
    $region26: #{encoder_forward.1} parent=1 // pred_check
      _
    $region27: #{encoder_forward.1} parent=1 // pred_check_branch
      %27 = sbr.rel (0) target = $region29
    $region28: #{encoder_forward.1} parent=1 // pred_region
      _
    $region29: #{encoder_forward.1} parent=1 // pred_fallthru
      _
    // Predicated region
    $region30: #{encoder_forward.1} parent=1 // pred_check
      _
    $region31: #{encoder_forward.1} parent=1 // pred_check_branch
      %29 = sbr.rel (0) target = $region33
    $region32: #{encoder_forward.1} parent=1 // pred_region
      _
    $region33: #{encoder_forward.1} parent=1 // pred_fallthru
      _
    %v30 = vld [vmem:[%s0] sm:$0xff]
    %v31 = vld [vmem:[%s0 + $0x8] sm:$0xff]
    %v32 = vld [vmem:[%s1] sm:$0xff]
    %v33 = vld [vmem:[%s1 + $0x8] sm:$0xff]
    %v34 = vadd.f32 %v30, %v32
    %v35 = vadd.f32 %v31, %v33
    %v36 = vld [vmem:[%s2] sm:$0xff]
    %v37 = vld [vmem:[%s2 + $0x8] sm:$0xff]
    %v38 = vld [vmem:[%s3] sm:$0xff]
    %v39 = vld [vmem:[%s3 + $0x8] sm:$0xff]
    %v40 = vld [vmem:[%s3 + $0x10] sm:$0xff]
    %v41 = vld [vmem:[%s3 + $0x18] sm:$0xff]
    %v42 = vld [vmem:[%s3 + $0x20] sm:$0xff]
    %v43 = vld [vmem:[%s3 + $0x28] sm:$0xff]
    %v44 = vld [vmem:[%s3 + $0x30] sm:$0xff]
    %v45 = vld [vmem:[%s3 + $0x38] sm:$0xff]
    %v46 = vld [vmem:[%s3 + $0x40] sm:$0xff]
    %v47 = vld [vmem:[%s3 + $0x48] sm:$0xff]
    %v48 = vld [vmem:[%s3 + $0x50] sm:$0xff]
    %v49 = vld [vmem:[%s3 + $0x58] sm:$0xff]
    %v50 = vld [vmem:[%s3 + $0x60] sm:$0xff]
    %v51 = vld [vmem:[%s3 + $0x68] sm:$0xff]
    %v52 = vld [vmem:[%s3 + $0x70] sm:$0xff]
    %v53 = vld [vmem:[%s3 + $0x78] sm:$0xff]
    %v54 = vld [vmem:[%s4] sm:$0xff]
    %v55 = vld [vmem:[%s4 + $0x8] sm:$0xff]
    %v56 = vld [vmem:[%s4 + $0x10] sm:$0xff]
    %v57 = vld [vmem:[%s4 + $0x18] sm:$0xff]
    %v58 = vld [vmem:[%s5] sm:$0xff]
    %v59 = vld [vmem:[%s5 + $0x8] sm:$0xff]
    %v60 = vld [vmem:[%s5 + $0x10] sm:$0xff]
    %v61 = vld [vmem:[%s5 + $0x18] sm:$0xff]
    %v62 = vld [vmem:[%s6] sm:$0xff]
    %v63 = vld [vmem:[%s6 + $0x8] sm:$0xff]
    %v64 = vld [vmem:[%s6 + $0x10] sm:$0xff]
    %v65 = vld [vmem:[%s6 + $0x18] sm:$0xff]
    %v66 = vld [vmem:[%s6 + $0x20] sm:$0xff]
    %v67 = vld [vmem:[%s6 + $0x28] sm:$0xff]
    %v68 = vld [vmem:[%s6 + $0x30] sm:$0xff]
    %v69 = vld [vmem:[%s6 + $0x38] sm:$0xff]
    %v70 = vld [vmem:[%s7] sm:$0x3f]
    %vm71 = vcmask 261120
    %v73 = vsel %vm71, %v34, 0
    %v76 = vsel %vm71, %v35, 0
    %78 = vmatprep.subr.mxu0 0.0
    %79 = vmatpush1.msra.mxu0 %v38
    %80 = vmatprep.subr.mxu0 0.0
    %81 = vmatpush1.msra.mxu0 %v39
    %82 = vmatprep.subr.mxu0 0.0
    %83 = vmatpush1.msra.mxu0 %v40
    %84 = vmatprep.subr.mxu0 0.0
    %85 = vmatpush1.msra.mxu0 %v41
    %86 = vmatprep.subr.mxu0 0.0
    %87 = vmatpush1.msra.mxu0 0.0
    %88 = vmatprep.subr.mxu0 0.0
    %89 = vmatpush1.msra.mxu0 0.0
    %90 = vmatprep.subr.mxu0 0.0
    %91 = vmatpush1.msra.mxu0 0.0
    %92 = vmatprep.subr.mxu0 0.0
    %93 = vmatpush1.msra.mxu0 0.0
    %94 = vmatprep.subr.mxu0 0.0
    %95 = vmatpush1.msra.mxu0 0.0
    %96 = vmatprep.subr.mxu0 0.0
    %97 = vmatpush1.msra.mxu0 0.0
    %98 = vmatprep.subr.mxu0 0.0
    %99 = vmatpush1.msra.mxu0 0.0
    %100 = vmatprep.subr.mxu0 0.0
    %101 = vmatpush1.msra.mxu0 0.0
    %102 = vmatprep.subr.mxu0 0.0
    %103 = vmatpush1.msra.mxu0 0.0
    %104 = vmatprep.subr.mxu0 0.0
    %105 = vmatpush1.msra.mxu0 0.0
    %106 = vmatprep.subr.mxu0 0.0
    %107 = vmatpush1.msra.mxu0 0.0
    %108 = vmatprep.subr.mxu0 0.0
    %109 = vmatpush1.msra.mxu0 0.0
    %110 = vmatprep.subr.mxu0 0.0
    %111 = vmatpush1.msra.mxu0 0.0
    %112 = vmatprep.subr.mxu0 0.0
    %113 = vmatpush1.msra.mxu0 0.0
    %114 = vmatprep.subr.mxu0 0.0
    %115 = vmatpush1.msra.mxu0 0.0
    %116 = vmatprep.subr.mxu0 0.0
    %117 = vmatpush1.msra.mxu0 0.0
    %118 = vmatprep.subr.mxu0 0.0
    %119 = vmatpush1.msra.mxu0 0.0
    %120 = vmatprep.subr.mxu0 0.0
    %121 = vmatpush1.msra.mxu0 0.0
    %122 = vmatprep.subr.mxu0 0.0
    %123 = vmatpush1.msra.mxu0 0.0
    %124 = vmatprep.subr.mxu0 0.0
    %125 = vmatpush1.msra.mxu0 0.0
    %126 = vmatprep.subr.mxu0 0.0
    %127 = vmatpush1.msra.mxu0 0.0
    %128 = vmatprep.subr.mxu0 0.0
    %129 = vmatpush1.msra.mxu0 0.0
    %130 = vmatprep.subr.mxu0 0.0
    %131 = vmatpush1.msra.mxu0 0.0
    %132 = vmatprep.subr.mxu0 0.0
    %133 = vmatpush1.msra.mxu0 0.0
    %134 = vmatprep.subr.mxu0 0.0
    %135 = vmatpush1.msra.mxu0 0.0
    %136 = vmatprep.subr.mxu0 0.0
    %137 = vmatpush1.msra.mxu0 0.0
    %138 = vmatprep.subr.mxu0 0.0
    %139 = vmatpush1.msra.mxu0 0.0
    %140 = vmatprep.subr.mxu0 0.0
    %141 = vmatpush1.msra.mxu0 0.0
    %142 = vmatprep.mubr.f32.mxu0 0.0
    %143 = vmatmul.mubr.f32.gmra.mrb[0].mxu0 %v73
    %v144 = vpop.f32.mrb[0].mxu0
    %v145 = vadd.f32 0.0, %v144
    %v146 = vpop.f32.mrb[0].mxu0
    %147 = vmatprep.mubr.f32.mxu0 0.0
    %148 = vmatmul.mubr.f32.gmra.mrb[0].mxu0 %v76
    %v149 = vpop.f32.mrb[0].mxu0
    %v150 = vadd.f32 0.0, %v149
    %v151 = vpop.f32.mrb[0].mxu0
    %152 = vdwg.mxu0
    %153 = vmatprep.subr.mxu0 0.0
    %154 = vmatpush1.msra.mxu0 %v42
    %155 = vmatprep.subr.mxu0 0.0
    %156 = vmatpush1.msra.mxu0 %v43
    %157 = vmatprep.subr.mxu0 0.0
    %158 = vmatpush1.msra.mxu0 %v44
    %159 = vmatprep.subr.mxu0 0.0
    %160 = vmatpush1.msra.mxu0 %v45
    %161 = vmatprep.subr.mxu0 0.0
    %162 = vmatpush1.msra.mxu0 0.0
    %163 = vmatprep.subr.mxu0 0.0
    %164 = vmatpush1.msra.mxu0 0.0
    %165 = vmatprep.subr.mxu0 0.0
    %166 = vmatpush1.msra.mxu0 0.0
    %167 = vmatprep.subr.mxu0 0.0
    %168 = vmatpush1.msra.mxu0 0.0
    %169 = vmatprep.subr.mxu0 0.0
    %170 = vmatpush1.msra.mxu0 0.0
    %171 = vmatprep.subr.mxu0 0.0
    %172 = vmatpush1.msra.mxu0 0.0
    %173 = vmatprep.subr.mxu0 0.0
    %174 = vmatpush1.msra.mxu0 0.0
    %175 = vmatprep.subr.mxu0 0.0
    %176 = vmatpush1.msra.mxu0 0.0
    %177 = vmatprep.subr.mxu0 0.0
    %178 = vmatpush1.msra.mxu0 0.0
    %179 = vmatprep.subr.mxu0 0.0
    %180 = vmatpush1.msra.mxu0 0.0
    %181 = vmatprep.subr.mxu0 0.0
    %182 = vmatpush1.msra.mxu0 0.0
    %183 = vmatprep.subr.mxu0 0.0
    %184 = vmatpush1.msra.mxu0 0.0
    %185 = vmatprep.subr.mxu0 0.0
    %186 = vmatpush1.msra.mxu0 0.0
    %187 = vmatprep.subr.mxu0 0.0
    %188 = vmatpush1.msra.mxu0 0.0
    %189 = vmatprep.subr.mxu0 0.0
    %190 = vmatpush1.msra.mxu0 0.0
    %191 = vmatprep.subr.mxu0 0.0
    %192 = vmatpush1.msra.mxu0 0.0
    %193 = vmatprep.subr.mxu0 0.0
    %194 = vmatpush1.msra.mxu0 0.0
    %195 = vmatprep.subr.mxu0 0.0
    %196 = vmatpush1.msra.mxu0 0.0
    %197 = vmatprep.subr.mxu0 0.0
    %198 = vmatpush1.msra.mxu0 0.0
    %199 = vmatprep.subr.mxu0 0.0
    %200 = vmatpush1.msra.mxu0 0.0
    %201 = vmatprep.subr.mxu0 0.0
    %202 = vmatpush1.msra.mxu0 0.0
    %203 = vmatprep.subr.mxu0 0.0
    %204 = vmatpush1.msra.mxu0 0.0
    %205 = vmatprep.subr.mxu0 0.0
    %206 = vmatpush1.msra.mxu0 0.0
    %207 = vmatprep.subr.mxu0 0.0
    %208 = vmatpush1.msra.mxu0 0.0
    %209 = vmatprep.subr.mxu0 0.0
    %210 = vmatpush1.msra.mxu0 0.0
    %211 = vmatprep.subr.mxu0 0.0
    %212 = vmatpush1.msra.mxu0 0.0
    %213 = vmatprep.subr.mxu0 0.0
    %214 = vmatpush1.msra.mxu0 0.0
    %215 = vmatprep.subr.mxu0 0.0
    %216 = vmatpush1.msra.mxu0 0.0
    %217 = vmatprep.mubr.f32.mxu0 0.0
    %218 = vmatmul.mubr.f32.gmra.mrb[0].mxu0 %v73
    %v219 = vpop.f32.mrb[0].mxu0
    %v220 = vadd.f32 0.0, %v219
    %v221 = vpop.f32.mrb[0].mxu0
    %222 = vmatprep.mubr.f32.mxu0 0.0
    %223 = vmatmul.mubr.f32.gmra.mrb[0].mxu0 %v76
    %v224 = vpop.f32.mrb[0].mxu0
    %v225 = vadd.f32 0.0, %v224
    %v226 = vpop.f32.mrb[0].mxu0
    %227 = vdwg.mxu0
    %228 = vmatprep.subr.mxu0 0.0
    %229 = vmatpush1.msra.mxu0 %v46
    %230 = vmatprep.subr.mxu0 0.0
    %231 = vmatpush1.msra.mxu0 %v47
    %232 = vmatprep.subr.mxu0 0.0
    %233 = vmatpush1.msra.mxu0 %v48
    %234 = vmatprep.subr.mxu0 0.0
    %235 = vmatpush1.msra.mxu0 %v49
    %236 = vmatprep.subr.mxu0 0.0
    %237 = vmatpush1.msra.mxu0 0.0
    %238 = vmatprep.subr.mxu0 0.0
    %239 = vmatpush1.msra.mxu0 0.0
    %240 = vmatprep.subr.mxu0 0.0
    %241 = vmatpush1.msra.mxu0 0.0
    %242 = vmatprep.subr.mxu0 0.0
    %243 = vmatpush1.msra.mxu0 0.0
    %244 = vmatprep.subr.mxu0 0.0
    %245 = vmatpush1.msra.mxu0 0.0
    %246 = vmatprep.subr.mxu0 0.0
    %247 = vmatpush1.msra.mxu0 0.0
    %248 = vmatprep.subr.mxu0 0.0
    %249 = vmatpush1.msra.mxu0 0.0
    %250 = vmatprep.subr.mxu0 0.0
    %251 = vmatpush1.msra.mxu0 0.0
    %252 = vmatprep.subr.mxu0 0.0
    %253 = vmatpush1.msra.mxu0 0.0
    %254 = vmatprep.subr.mxu0 0.0
    %255 = vmatpush1.msra.mxu0 0.0
    %256 = vmatprep.subr.mxu0 0.0
    %257 = vmatpush1.msra.mxu0 0.0
    %258 = vmatprep.subr.mxu0 0.0
    %259 = vmatpush1.msra.mxu0 0.0
    %260 = vmatprep.subr.mxu0 0.0
    %261 = vmatpush1.msra.mxu0 0.0
    %262 = vmatprep.subr.mxu0 0.0
    %263 = vmatpush1.msra.mxu0 0.0
    %264 = vmatprep.subr.mxu0 0.0
    %265 = vmatpush1.msra.mxu0 0.0
    %266 = vmatprep.subr.mxu0 0.0
    %267 = vmatpush1.msra.mxu0 0.0
    %268 = vmatprep.subr.mxu0 0.0
    %269 = vmatpush1.msra.mxu0 0.0
    %270 = vmatprep.subr.mxu0 0.0
    %271 = vmatpush1.msra.mxu0 0.0
    %272 = vmatprep.subr.mxu0 0.0
    %273 = vmatpush1.msra.mxu0 0.0
    %274 = vmatprep.subr.mxu0 0.0
    %275 = vmatpush1.msra.mxu0 0.0
    %276 = vmatprep.subr.mxu0 0.0
    %277 = vmatpush1.msra.mxu0 0.0
    %278 = vmatprep.subr.mxu0 0.0
    %279 = vmatpush1.msra.mxu0 0.0
    %280 = vmatprep.subr.mxu0 0.0
    %281 = vmatpush1.msra.mxu0 0.0
    %282 = vmatprep.subr.mxu0 0.0
    %283 = vmatpush1.msra.mxu0 0.0
    %284 = vmatprep.subr.mxu0 0.0
    %285 = vmatpush1.msra.mxu0 0.0
    %286 = vmatprep.subr.mxu0 0.0
    %287 = vmatpush1.msra.mxu0 0.0
    %288 = vmatprep.subr.mxu0 0.0
    %289 = vmatpush1.msra.mxu0 0.0
    %290 = vmatprep.subr.mxu0 0.0
    %291 = vmatpush1.msra.mxu0 0.0
    %292 = vmatprep.mubr.f32.mxu0 0.0
    %293 = vmatmul.mubr.f32.gmra.mrb[0].mxu0 %v73
    %v294 = vpop.f32.mrb[0].mxu0
    %v295 = vadd.f32 0.0, %v294
    %v296 = vpop.f32.mrb[0].mxu0
    %297 = vmatprep.mubr.f32.mxu0 0.0
    %298 = vmatmul.mubr.f32.gmra.mrb[0].mxu0 %v76
    %v299 = vpop.f32.mrb[0].mxu0
    %v300 = vadd.f32 0.0, %v299
    %v301 = vpop.f32.mrb[0].mxu0
    %302 = vdwg.mxu0
    %303 = vmatprep.subr.mxu0 0.0
    %304 = vmatpush1.msra.mxu0 %v50
    %305 = vmatprep.subr.mxu0 0.0
    %306 = vmatpush1.msra.mxu0 %v51
    %307 = vmatprep.subr.mxu0 0.0
    %308 = vmatpush1.msra.mxu0 %v52
    %309 = vmatprep.subr.mxu0 0.0
    %310 = vmatpush1.msra.mxu0 %v53
    %311 = vmatprep.subr.mxu0 0.0
    %312 = vmatpush1.msra.mxu0 0.0
    %313 = vmatprep.subr.mxu0 0.0
    %314 = vmatpush1.msra.mxu0 0.0
    %315 = vmatprep.subr.mxu0 0.0
    %316 = vmatpush1.msra.mxu0 0.0
    %317 = vmatprep.subr.mxu0 0.0
    %318 = vmatpush1.msra.mxu0 0.0
    %319 = vmatprep.subr.mxu0 0.0
    %320 = vmatpush1.msra.mxu0 0.0
    %321 = vmatprep.subr.mxu0 0.0
    %322 = vmatpush1.msra.mxu0 0.0
    %323 = vmatprep.subr.mxu0 0.0
    %324 = vmatpush1.msra.mxu0 0.0
    %325 = vmatprep.subr.mxu0 0.0
    %326 = vmatpush1.msra.mxu0 0.0
    %327 = vmatprep.subr.mxu0 0.0
    %328 = vmatpush1.msra.mxu0 0.0
    %329 = vmatprep.subr.mxu0 0.0
    %330 = vmatpush1.msra.mxu0 0.0
    %331 = vmatprep.subr.mxu0 0.0
    %332 = vmatpush1.msra.mxu0 0.0
    %333 = vmatprep.subr.mxu0 0.0
    %334 = vmatpush1.msra.mxu0 0.0
    %335 = vmatprep.subr.mxu0 0.0
    %336 = vmatpush1.msra.mxu0 0.0
    %337 = vmatprep.subr.mxu0 0.0
    %338 = vmatpush1.msra.mxu0 0.0
    %339 = vmatprep.subr.mxu0 0.0
    %340 = vmatpush1.msra.mxu0 0.0
    %341 = vmatprep.subr.mxu0 0.0
    %342 = vmatpush1.msra.mxu0 0.0
    %343 = vmatprep.subr.mxu0 0.0
    %344 = vmatpush1.msra.mxu0 0.0
    %345 = vmatprep.subr.mxu0 0.0
    %346 = vmatpush1.msra.mxu0 0.0
    %347 = vmatprep.subr.mxu0 0.0
    %348 = vmatpush1.msra.mxu0 0.0
    %349 = vmatprep.subr.mxu0 0.0
    %350 = vmatpush1.msra.mxu0 0.0
    %351 = vmatprep.subr.mxu0 0.0
    %352 = vmatpush1.msra.mxu0 0.0
    %353 = vmatprep.subr.mxu0 0.0
    %354 = vmatpush1.msra.mxu0 0.0
    %355 = vmatprep.subr.mxu0 0.0
    %356 = vmatpush1.msra.mxu0 0.0
    %357 = vmatprep.subr.mxu0 0.0
    %358 = vmatpush1.msra.mxu0 0.0
    %359 = vmatprep.subr.mxu0 0.0
    %360 = vmatpush1.msra.mxu0 0.0
    %361 = vmatprep.subr.mxu0 0.0
    %362 = vmatpush1.msra.mxu0 0.0
    %363 = vmatprep.subr.mxu0 0.0
    %364 = vmatpush1.msra.mxu0 0.0
    %365 = vmatprep.subr.mxu0 0.0
    %366 = vmatpush1.msra.mxu0 0.0
    %367 = vmatprep.mubr.f32.mxu0 0.0
    %368 = vmatmul.mubr.f32.gmra.mrb[0].mxu0 %v73
    %v369 = vpop.f32.mrb[0].mxu0
    %v370 = vadd.f32 0.0, %v369
    %v371 = vpop.f32.mrb[0].mxu0
    %372 = vmatprep.mubr.f32.mxu0 0.0
    %373 = vmatmul.mubr.f32.gmra.mrb[0].mxu0 %v76
    %v374 = vpop.f32.mrb[0].mxu0
    %v375 = vadd.f32 0.0, %v374
    %v376 = vpop.f32.mrb[0].mxu0
    %377 = vdwg.mxu0
    %380 = vrot.lane.b32.xlu0 %v145, 120
    %v381 = vpop.permute.xlu0 %380
    %382 = vrot.lane.b32.xlu0 %v150, 120
    %v383 = vpop.permute.xlu0 %382
    %vm384 = vcmask 64512
    %v385 = vsel %vm384, %v145, 0
    %v387 = vsel %vm384, %v150, 0
    %v389 = vsel %vm384, %v381, 0
    %v391 = vsel %vm384, %v383, 0
    %393 = vmatprep.subr.mxu0 0.0
    %394 = vmatpush1.xpose.msra.mxu0 %v389
    %395 = vmatprep.subr.mxu0 0.0
    %396 = vmatpush1.xpose.msra.mxu0 %v391
    %397 = vmatprep.subr.mxu0 0.0
    %398 = vmatpush1.xpose.msra.mxu0 0.0
    %399 = vmatprep.subr.mxu0 0.0
    %400 = vmatpush1.xpose.msra.mxu0 0.0
    %401 = vmatprep.subr.mxu0 0.0
    %402 = vmatpush1.xpose.msra.mxu0 0.0
    %403 = vmatprep.subr.mxu0 0.0
    %404 = vmatpush1.xpose.msra.mxu0 0.0
    %405 = vmatprep.subr.mxu0 0.0
    %406 = vmatpush1.xpose.msra.mxu0 0.0
    %407 = vmatprep.subr.mxu0 0.0
    %408 = vmatpush1.xpose.msra.mxu0 0.0
    %409 = vmatprep.subr.mxu0 0.0
    %410 = vmatpush1.xpose.msra.mxu0 0.0
    %411 = vmatprep.subr.mxu0 0.0
    %412 = vmatpush1.xpose.msra.mxu0 0.0
    %413 = vmatprep.subr.mxu0 0.0
    %414 = vmatpush1.xpose.msra.mxu0 0.0
    %415 = vmatprep.subr.mxu0 0.0
    %416 = vmatpush1.xpose.msra.mxu0 0.0
    %417 = vmatprep.subr.mxu0 0.0
    %418 = vmatpush1.xpose.msra.mxu0 0.0
    %419 = vmatprep.subr.mxu0 0.0
    %420 = vmatpush1.xpose.msra.mxu0 0.0
    %421 = vmatprep.subr.mxu0 0.0
    %422 = vmatpush1.xpose.msra.mxu0 0.0
    %423 = vmatprep.subr.mxu0 0.0
    %424 = vmatpush1.xpose.msra.mxu0 0.0
    %425 = vmatprep.subr.mxu0 0.0
    %426 = vmatpush1.xpose.msra.mxu0 0.0
    %427 = vmatprep.subr.mxu0 0.0
    %428 = vmatpush1.xpose.msra.mxu0 0.0
    %429 = vmatprep.subr.mxu0 0.0
    %430 = vmatpush1.xpose.msra.mxu0 0.0
    %431 = vmatprep.subr.mxu0 0.0
    %432 = vmatpush1.xpose.msra.mxu0 0.0
    %433 = vmatprep.subr.mxu0 0.0
    %434 = vmatpush1.xpose.msra.mxu0 0.0
    %435 = vmatprep.subr.mxu0 0.0
    %436 = vmatpush1.xpose.msra.mxu0 0.0
    %437 = vmatprep.subr.mxu0 0.0
    %438 = vmatpush1.xpose.msra.mxu0 0.0
    %439 = vmatprep.subr.mxu0 0.0
    %440 = vmatpush1.xpose.msra.mxu0 0.0
    %441 = vmatprep.subr.mxu0 0.0
    %442 = vmatpush1.xpose.msra.mxu0 0.0
    %443 = vmatprep.subr.mxu0 0.0
    %444 = vmatpush1.xpose.msra.mxu0 0.0
    %445 = vmatprep.subr.mxu0 0.0
    %446 = vmatpush1.xpose.msra.mxu0 0.0
    %447 = vmatprep.subr.mxu0 0.0
    %448 = vmatpush1.xpose.msra.mxu0 0.0
    %449 = vmatprep.subr.mxu0 0.0
    %450 = vmatpush1.xpose.msra.mxu0 0.0
    %451 = vmatprep.subr.mxu0 0.0
    %452 = vmatpush1.xpose.msra.mxu0 0.0
    %453 = vmatprep.subr.mxu0 0.0
    %454 = vmatpush1.xpose.msra.mxu0 0.0
    %455 = vmatprep.subr.mxu0 0.0
    %456 = vmatpush1.xpose.msra.mxu0 0.0
    %457 = vmatprep.mubr.f32.mxu0 0.0
    %458 = vmatmul.mubr.f32.gmra.mrb[0].mxu0 %v385
    %v459 = vpop.f32.mrb[0].mxu0
    %v460 = vadd.f32 0.0, %v459
    %v461 = vpop.f32.mrb[0].mxu0
    %462 = vmatprep.mubr.f32.mxu0 0.0
    %463 = vmatmul.mubr.f32.gmra.mrb[0].mxu0 %v387
    %v464 = vpop.f32.mrb[0].mxu0
    %v465 = vadd.f32 0.0, %v464
    %v466 = vpop.f32.mrb[0].mxu0
    %467 = vdwg.mxu0
    %470 = vrot.lane.b32.xlu0 %v220, 120
    %v471 = vpop.permute.xlu0 %470
    %472 = vrot.lane.b32.xlu0 %v225, 120
    %v473 = vpop.permute.xlu0 %472
    %v474 = vsel %vm384, %v220, 0
    %v476 = vsel %vm384, %v225, 0
    %v478 = vsel %vm384, %v471, 0
    %v480 = vsel %vm384, %v473, 0
    %482 = vmatprep.subr.mxu0 0.0
    %483 = vmatpush1.xpose.msra.mxu0 %v478
    %484 = vmatprep.subr.mxu0 0.0
    %485 = vmatpush1.xpose.msra.mxu0 %v480
    %486 = vmatprep.subr.mxu0 0.0
    %487 = vmatpush1.xpose.msra.mxu0 0.0
    %488 = vmatprep.subr.mxu0 0.0
    %489 = vmatpush1.xpose.msra.mxu0 0.0
    %490 = vmatprep.subr.mxu0 0.0
    %491 = vmatpush1.xpose.msra.mxu0 0.0
    %492 = vmatprep.subr.mxu0 0.0
    %493 = vmatpush1.xpose.msra.mxu0 0.0
    %494 = vmatprep.subr.mxu0 0.0
    %495 = vmatpush1.xpose.msra.mxu0 0.0
    %496 = vmatprep.subr.mxu0 0.0
    %497 = vmatpush1.xpose.msra.mxu0 0.0
    %498 = vmatprep.subr.mxu0 0.0
    %499 = vmatpush1.xpose.msra.mxu0 0.0
    %500 = vmatprep.subr.mxu0 0.0
    %501 = vmatpush1.xpose.msra.mxu0 0.0
    %502 = vmatprep.subr.mxu0 0.0
    %503 = vmatpush1.xpose.msra.mxu0 0.0
    %504 = vmatprep.subr.mxu0 0.0
    %505 = vmatpush1.xpose.msra.mxu0 0.0
    %506 = vmatprep.subr.mxu0 0.0
    %507 = vmatpush1.xpose.msra.mxu0 0.0
    %508 = vmatprep.subr.mxu0 0.0
    %509 = vmatpush1.xpose.msra.mxu0 0.0
    %510 = vmatprep.subr.mxu0 0.0
    %511 = vmatpush1.xpose.msra.mxu0 0.0
    %512 = vmatprep.subr.mxu0 0.0
    %513 = vmatpush1.xpose.msra.mxu0 0.0
    %514 = vmatprep.subr.mxu0 0.0
    %515 = vmatpush1.xpose.msra.mxu0 0.0
    %516 = vmatprep.subr.mxu0 0.0
    %517 = vmatpush1.xpose.msra.mxu0 0.0
    %518 = vmatprep.subr.mxu0 0.0
    %519 = vmatpush1.xpose.msra.mxu0 0.0
    %520 = vmatprep.subr.mxu0 0.0
    %521 = vmatpush1.xpose.msra.mxu0 0.0
    %522 = vmatprep.subr.mxu0 0.0
    %523 = vmatpush1.xpose.msra.mxu0 0.0
    %524 = vmatprep.subr.mxu0 0.0
    %525 = vmatpush1.xpose.msra.mxu0 0.0
    %526 = vmatprep.subr.mxu0 0.0
    %527 = vmatpush1.xpose.msra.mxu0 0.0
    %528 = vmatprep.subr.mxu0 0.0
    %529 = vmatpush1.xpose.msra.mxu0 0.0
    %530 = vmatprep.subr.mxu0 0.0
    %531 = vmatpush1.xpose.msra.mxu0 0.0
    %532 = vmatprep.subr.mxu0 0.0
    %533 = vmatpush1.xpose.msra.mxu0 0.0
    %534 = vmatprep.subr.mxu0 0.0
    %535 = vmatpush1.xpose.msra.mxu0 0.0
    %536 = vmatprep.subr.mxu0 0.0
    %537 = vmatpush1.xpose.msra.mxu0 0.0
    %538 = vmatprep.subr.mxu0 0.0
    %539 = vmatpush1.xpose.msra.mxu0 0.0
    %540 = vmatprep.subr.mxu0 0.0
    %541 = vmatpush1.xpose.msra.mxu0 0.0
    %542 = vmatprep.subr.mxu0 0.0
    %543 = vmatpush1.xpose.msra.mxu0 0.0
    %544 = vmatprep.subr.mxu0 0.0
    %545 = vmatpush1.xpose.msra.mxu0 0.0
    %546 = vmatprep.mubr.f32.mxu0 0.0
    %547 = vmatmul.mubr.f32.gmra.mrb[0].mxu0 %v474
    %v548 = vpop.f32.mrb[0].mxu0
    %v549 = vadd.f32 0.0, %v548
    %v550 = vpop.f32.mrb[0].mxu0
    %551 = vmatprep.mubr.f32.mxu0 0.0
    %552 = vmatmul.mubr.f32.gmra.mrb[0].mxu0 %v476
    %v553 = vpop.f32.mrb[0].mxu0
    %v554 = vadd.f32 0.0, %v553
    %v555 = vpop.f32.mrb[0].mxu0
    %556 = vdwg.mxu0
    %559 = vrot.lane.b32.xlu0 %v295, 120
    %v560 = vpop.permute.xlu0 %559
    %561 = vrot.lane.b32.xlu0 %v300, 120
    %v562 = vpop.permute.xlu0 %561
    %v563 = vsel %vm384, %v295, 0
    %v565 = vsel %vm384, %v300, 0
    %v567 = vsel %vm384, %v560, 0
    %v569 = vsel %vm384, %v562, 0
    %571 = vmatprep.subr.mxu0 0.0
    %572 = vmatpush1.xpose.msra.mxu0 %v567
    %573 = vmatprep.subr.mxu0 0.0
    %574 = vmatpush1.xpose.msra.mxu0 %v569
    %575 = vmatprep.subr.mxu0 0.0
    %576 = vmatpush1.xpose.msra.mxu0 0.0
    %577 = vmatprep.subr.mxu0 0.0
    %578 = vmatpush1.xpose.msra.mxu0 0.0
    %579 = vmatprep.subr.mxu0 0.0
    %580 = vmatpush1.xpose.msra.mxu0 0.0
    %581 = vmatprep.subr.mxu0 0.0
    %582 = vmatpush1.xpose.msra.mxu0 0.0
    %583 = vmatprep.subr.mxu0 0.0
    %584 = vmatpush1.xpose.msra.mxu0 0.0
    %585 = vmatprep.subr.mxu0 0.0
    %586 = vmatpush1.xpose.msra.mxu0 0.0
    %587 = vmatprep.subr.mxu0 0.0
    %588 = vmatpush1.xpose.msra.mxu0 0.0
    %589 = vmatprep.subr.mxu0 0.0
    %590 = vmatpush1.xpose.msra.mxu0 0.0
    %591 = vmatprep.subr.mxu0 0.0
    %592 = vmatpush1.xpose.msra.mxu0 0.0
    %593 = vmatprep.subr.mxu0 0.0
    %594 = vmatpush1.xpose.msra.mxu0 0.0
    %595 = vmatprep.subr.mxu0 0.0
    %596 = vmatpush1.xpose.msra.mxu0 0.0
    %597 = vmatprep.subr.mxu0 0.0
    %598 = vmatpush1.xpose.msra.mxu0 0.0
    %599 = vmatprep.subr.mxu0 0.0
    %600 = vmatpush1.xpose.msra.mxu0 0.0
    %601 = vmatprep.subr.mxu0 0.0
    %602 = vmatpush1.xpose.msra.mxu0 0.0
    %603 = vmatprep.subr.mxu0 0.0
    %604 = vmatpush1.xpose.msra.mxu0 0.0
    %605 = vmatprep.subr.mxu0 0.0
    %606 = vmatpush1.xpose.msra.mxu0 0.0
    %607 = vmatprep.subr.mxu0 0.0
    %608 = vmatpush1.xpose.msra.mxu0 0.0
    %609 = vmatprep.subr.mxu0 0.0
    %610 = vmatpush1.xpose.msra.mxu0 0.0
    %611 = vmatprep.subr.mxu0 0.0
    %612 = vmatpush1.xpose.msra.mxu0 0.0
    %613 = vmatprep.subr.mxu0 0.0
    %614 = vmatpush1.xpose.msra.mxu0 0.0
    %615 = vmatprep.subr.mxu0 0.0
    %616 = vmatpush1.xpose.msra.mxu0 0.0
    %617 = vmatprep.subr.mxu0 0.0
    %618 = vmatpush1.xpose.msra.mxu0 0.0
    %619 = vmatprep.subr.mxu0 0.0
    %620 = vmatpush1.xpose.msra.mxu0 0.0
    %621 = vmatprep.subr.mxu0 0.0
    %622 = vmatpush1.xpose.msra.mxu0 0.0
    %623 = vmatprep.subr.mxu0 0.0
    %624 = vmatpush1.xpose.msra.mxu0 0.0
    %625 = vmatprep.subr.mxu0 0.0
    %626 = vmatpush1.xpose.msra.mxu0 0.0
    %627 = vmatprep.subr.mxu0 0.0
    %628 = vmatpush1.xpose.msra.mxu0 0.0
    %629 = vmatprep.subr.mxu0 0.0
    %630 = vmatpush1.xpose.msra.mxu0 0.0
    %631 = vmatprep.subr.mxu0 0.0
    %632 = vmatpush1.xpose.msra.mxu0 0.0
    %633 = vmatprep.subr.mxu0 0.0
    %634 = vmatpush1.xpose.msra.mxu0 0.0
    %635 = vmatprep.mubr.f32.mxu0 0.0
    %636 = vmatmul.mubr.f32.gmra.mrb[0].mxu0 %v563
    %v637 = vpop.f32.mrb[0].mxu0
    %v638 = vadd.f32 0.0, %v637
    %v639 = vpop.f32.mrb[0].mxu0
    %640 = vmatprep.mubr.f32.mxu0 0.0
    %641 = vmatmul.mubr.f32.gmra.mrb[0].mxu0 %v565
    %v642 = vpop.f32.mrb[0].mxu0
    %v643 = vadd.f32 0.0, %v642
    %v644 = vpop.f32.mrb[0].mxu0
    %645 = vdwg.mxu0
    %648 = vrot.lane.b32.xlu0 %v370, 120
    %v649 = vpop.permute.xlu0 %648
    %650 = vrot.lane.b32.xlu0 %v375, 120
    %v651 = vpop.permute.xlu0 %650
    %v652 = vsel %vm384, %v370, 0
    %v654 = vsel %vm384, %v375, 0
    %v656 = vsel %vm384, %v649, 0
    %v658 = vsel %vm384, %v651, 0
    %660 = vmatprep.subr.mxu0 0.0
    %661 = vmatpush1.xpose.msra.mxu0 %v656
    %662 = vmatprep.subr.mxu0 0.0
    %663 = vmatpush1.xpose.msra.mxu0 %v658
    %664 = vmatprep.subr.mxu0 0.0
    %665 = vmatpush1.xpose.msra.mxu0 0.0
    %666 = vmatprep.subr.mxu0 0.0
    %667 = vmatpush1.xpose.msra.mxu0 0.0
    %668 = vmatprep.subr.mxu0 0.0
    %669 = vmatpush1.xpose.msra.mxu0 0.0
    %670 = vmatprep.subr.mxu0 0.0
    %671 = vmatpush1.xpose.msra.mxu0 0.0
    %672 = vmatprep.subr.mxu0 0.0
    %673 = vmatpush1.xpose.msra.mxu0 0.0
    %674 = vmatprep.subr.mxu0 0.0
    %675 = vmatpush1.xpose.msra.mxu0 0.0
    %676 = vmatprep.subr.mxu0 0.0
    %677 = vmatpush1.xpose.msra.mxu0 0.0
    %678 = vmatprep.subr.mxu0 0.0
    %679 = vmatpush1.xpose.msra.mxu0 0.0
    %680 = vmatprep.subr.mxu0 0.0
    %681 = vmatpush1.xpose.msra.mxu0 0.0
    %682 = vmatprep.subr.mxu0 0.0
    %683 = vmatpush1.xpose.msra.mxu0 0.0
    %684 = vmatprep.subr.mxu0 0.0
    %685 = vmatpush1.xpose.msra.mxu0 0.0
    %686 = vmatprep.subr.mxu0 0.0
    %687 = vmatpush1.xpose.msra.mxu0 0.0
    %688 = vmatprep.subr.mxu0 0.0
    %689 = vmatpush1.xpose.msra.mxu0 0.0
    %690 = vmatprep.subr.mxu0 0.0
    %691 = vmatpush1.xpose.msra.mxu0 0.0
    %692 = vmatprep.subr.mxu0 0.0
    %693 = vmatpush1.xpose.msra.mxu0 0.0
    %694 = vmatprep.subr.mxu0 0.0
    %695 = vmatpush1.xpose.msra.mxu0 0.0
    %696 = vmatprep.subr.mxu0 0.0
    %697 = vmatpush1.xpose.msra.mxu0 0.0
    %698 = vmatprep.subr.mxu0 0.0
    %699 = vmatpush1.xpose.msra.mxu0 0.0
    %700 = vmatprep.subr.mxu0 0.0
    %701 = vmatpush1.xpose.msra.mxu0 0.0
    %702 = vmatprep.subr.mxu0 0.0
    %703 = vmatpush1.xpose.msra.mxu0 0.0
    %704 = vmatprep.subr.mxu0 0.0
    %705 = vmatpush1.xpose.msra.mxu0 0.0
    %706 = vmatprep.subr.mxu0 0.0
    %707 = vmatpush1.xpose.msra.mxu0 0.0
    %708 = vmatprep.subr.mxu0 0.0
    %709 = vmatpush1.xpose.msra.mxu0 0.0
    %710 = vmatprep.subr.mxu0 0.0
    %711 = vmatpush1.xpose.msra.mxu0 0.0
    %712 = vmatprep.subr.mxu0 0.0
    %713 = vmatpush1.xpose.msra.mxu0 0.0
    %714 = vmatprep.subr.mxu0 0.0
    %715 = vmatpush1.xpose.msra.mxu0 0.0
    %716 = vmatprep.subr.mxu0 0.0
    %717 = vmatpush1.xpose.msra.mxu0 0.0
    %718 = vmatprep.subr.mxu0 0.0
    %719 = vmatpush1.xpose.msra.mxu0 0.0
    %720 = vmatprep.subr.mxu0 0.0
    %721 = vmatpush1.xpose.msra.mxu0 0.0
    %722 = vmatprep.subr.mxu0 0.0
    %723 = vmatpush1.xpose.msra.mxu0 0.0
    %724 = vmatprep.mubr.f32.mxu0 0.0
    %725 = vmatmul.mubr.f32.gmra.mrb[0].mxu0 %v652
    %v726 = vpop.f32.mrb[0].mxu0
    %v727 = vadd.f32 0.0, %v726
    %v728 = vpop.f32.mrb[0].mxu0
    %729 = vmatprep.mubr.f32.mxu0 0.0
    %730 = vmatmul.mubr.f32.gmra.mrb[0].mxu0 %v654
    %v731 = vpop.f32.mrb[0].mxu0
    %v732 = vadd.f32 0.0, %v731
    %v733 = vpop.f32.mrb[0].mxu0
    %734 = vdwg.mxu0
    %v735 = vmul.f32 %v460, 0.35355338
    %v736 = vmul.f32 %v465, 0.35355338
    %v737 = vmul.f32 %v549, 0.35355338
    %v738 = vmul.f32 %v554, 0.35355338
    %v739 = vmul.f32 %v638, 0.35355338
    %v740 = vmul.f32 %v643, 0.35355338
    %v741 = vmul.f32 %v727, 0.35355338
    %v742 = vmul.f32 %v732, 0.35355338
    %v743 = vadd.f32 %v735, %v36
    %v744 = vadd.f32 %v736, %v37
    %v745 = vadd.f32 %v737, %v36
    %v746 = vadd.f32 %v738, %v37
    %v747 = vadd.f32 %v739, %v36
    %v748 = vadd.f32 %v740, %v37
    %v749 = vadd.f32 %v741, %v36
    %v750 = vadd.f32 %v742, %v37
    %vm751 = vcmask 130048
    %v752 = vsel %vm751, %v743, -inf
    %753 = vmax.xlane.f32.xlu0 %v752
    %v754 = vpop.xlane.xlu0 %753
    %v755 = vsel %vm751, %v744, -inf
    %756 = vmax.xlane.f32.xlu0 %v755
    %v757 = vpop.xlane.xlu0 %756
    %v758 = vsel %vm751, %v745, -inf
    %759 = vmax.xlane.f32.xlu0 %v758
    %v760 = vpop.xlane.xlu0 %759
    %v761 = vsel %vm751, %v746, -inf
    %762 = vmax.xlane.f32.xlu0 %v761
    %v763 = vpop.xlane.xlu0 %762
    %v764 = vsel %vm751, %v747, -inf
    %765 = vmax.xlane.f32.xlu0 %v764
    %v766 = vpop.xlane.xlu0 %765
    %v767 = vsel %vm751, %v748, -inf
    %768 = vmax.xlane.f32.xlu0 %v767
    %v769 = vpop.xlane.xlu0 %768
    %v770 = vsel %vm751, %v749, -inf
    %771 = vmax.xlane.f32.xlu0 %v770
    %v772 = vpop.xlane.xlu0 %771
    %v773 = vsel %vm751, %v750, -inf
    %774 = vmax.xlane.f32.xlu0 %v773
    %v775 = vpop.xlane.xlu0 %774
    %v776 = vsub.f32 %v743, %v754
    %v777 = vsub.f32 %v744, %v757
    %v778 = vsub.f32 %v745, %v760
    %v779 = vsub.f32 %v746, %v763
    %v780 = vsub.f32 %v747, %v766
    %v781 = vsub.f32 %v748, %v769
    %v782 = vsub.f32 %v749, %v772
    %v783 = vsub.f32 %v750, %v775
    %v784 = vmul.f32 %v776, 1.442695
    %v785 = vpow.pop %v784
    %v786 = vmul.f32 %v777, 1.442695
    %v787 = vpow.pop %v786
    %v788 = vmul.f32 %v778, 1.442695
    %v789 = vpow.pop %v788
    %v790 = vmul.f32 %v779, 1.442695
    %v791 = vpow.pop %v790
    %v792 = vmul.f32 %v780, 1.442695
    %v793 = vpow.pop %v792
    %v794 = vmul.f32 %v781, 1.442695
    %v795 = vpow.pop %v794
    %v796 = vmul.f32 %v782, 1.442695
    %v797 = vpow.pop %v796
    %v798 = vmul.f32 %v783, 1.442695
    %v799 = vpow.pop %v798
    %v800 = vsel %vm751, %v785, 0.0
    %801 = vadd.xlane.f32.xlu0 %v800
    %v802 = vpop.xlane.xlu0 %801
    %v803 = vsel %vm751, %v787, 0.0
    %804 = vadd.xlane.f32.xlu0 %v803
    %v805 = vpop.xlane.xlu0 %804
    %v806 = vsel %vm751, %v789, 0.0
    %807 = vadd.xlane.f32.xlu0 %v806
    %v808 = vpop.xlane.xlu0 %807
    %v809 = vsel %vm751, %v791, 0.0
    %810 = vadd.xlane.f32.xlu0 %v809
    %v811 = vpop.xlane.xlu0 %810
    %v812 = vsel %vm751, %v793, 0.0
    %813 = vadd.xlane.f32.xlu0 %v812
    %v814 = vpop.xlane.xlu0 %813
    %v815 = vsel %vm751, %v795, 0.0
    %816 = vadd.xlane.f32.xlu0 %v815
    %v817 = vpop.xlane.xlu0 %816
    %v818 = vsel %vm751, %v797, 0.0
    %819 = vadd.xlane.f32.xlu0 %v818
    %v820 = vpop.xlane.xlu0 %819
    %v821 = vsel %vm751, %v799, 0.0
    %822 = vadd.xlane.f32.xlu0 %v821
    %v823 = vpop.xlane.xlu0 %822
    %v824 = vrcp.pop %v802
    %v825 = vrcp.pop %v805
    %v826 = vrcp.pop %v808
    %v827 = vrcp.pop %v811
    %v828 = vrcp.pop %v814
    %v829 = vrcp.pop %v817
    %v830 = vrcp.pop %v820
    %v831 = vrcp.pop %v823
    %v832 = vmul.f32 %v785, %v824
    %v833 = vmul.f32 %v787, %v825
    %v834 = vmul.f32 %v789, %v826
    %v835 = vmul.f32 %v791, %v827
    %v836 = vmul.f32 %v793, %v828
    %v837 = vmul.f32 %v795, %v829
    %v838 = vmul.f32 %v797, %v830
    %v839 = vmul.f32 %v799, %v831
    %840 = vrot.lane.b32.xlu0 %v145, 112
    %v841 = vpop.permute.xlu0 %840
    %842 = vrot.lane.b32.xlu0 %v150, 112
    %v843 = vpop.permute.xlu0 %842
    %v847 = vsel %vm751, %v832, 0
    %v850 = vsel %vm751, %v833, 0
    %852 = vmatprep.subr.mxu0 0.0
    %853 = vmatpush1.msra.mxu0 %v841
    %854 = vmatprep.subr.mxu0 0.0
    %855 = vmatpush1.msra.mxu0 %v843
    %856 = vmatprep.subr.mxu0 0.0
    %857 = vmatpush1.msra.mxu0 0.0
    %858 = vmatprep.subr.mxu0 0.0
    %859 = vmatpush1.msra.mxu0 0.0
    %860 = vmatprep.subr.mxu0 0.0
    %861 = vmatpush1.msra.mxu0 0.0
    %862 = vmatprep.subr.mxu0 0.0
    %863 = vmatpush1.msra.mxu0 0.0
    %864 = vmatprep.subr.mxu0 0.0
    %865 = vmatpush1.msra.mxu0 0.0
    %866 = vmatprep.subr.mxu0 0.0
    %867 = vmatpush1.msra.mxu0 0.0
    %868 = vmatprep.subr.mxu0 0.0
    %869 = vmatpush1.msra.mxu0 0.0
    %870 = vmatprep.subr.mxu0 0.0
    %871 = vmatpush1.msra.mxu0 0.0
    %872 = vmatprep.subr.mxu0 0.0
    %873 = vmatpush1.msra.mxu0 0.0
    %874 = vmatprep.subr.mxu0 0.0
    %875 = vmatpush1.msra.mxu0 0.0
    %876 = vmatprep.subr.mxu0 0.0
    %877 = vmatpush1.msra.mxu0 0.0
    %878 = vmatprep.subr.mxu0 0.0
    %879 = vmatpush1.msra.mxu0 0.0
    %880 = vmatprep.subr.mxu0 0.0
    %881 = vmatpush1.msra.mxu0 0.0
    %882 = vmatprep.subr.mxu0 0.0
    %883 = vmatpush1.msra.mxu0 0.0
    %884 = vmatprep.subr.mxu0 0.0
    %885 = vmatpush1.msra.mxu0 0.0
    %886 = vmatprep.subr.mxu0 0.0
    %887 = vmatpush1.msra.mxu0 0.0
    %888 = vmatprep.subr.mxu0 0.0
    %889 = vmatpush1.msra.mxu0 0.0
    %890 = vmatprep.subr.mxu0 0.0
    %891 = vmatpush1.msra.mxu0 0.0
    %892 = vmatprep.subr.mxu0 0.0
    %893 = vmatpush1.msra.mxu0 0.0
    %894 = vmatprep.subr.mxu0 0.0
    %895 = vmatpush1.msra.mxu0 0.0
    %896 = vmatprep.subr.mxu0 0.0
    %897 = vmatpush1.msra.mxu0 0.0
    %898 = vmatprep.subr.mxu0 0.0
    %899 = vmatpush1.msra.mxu0 0.0
    %900 = vmatprep.subr.mxu0 0.0
    %901 = vmatpush1.msra.mxu0 0.0
    %902 = vmatprep.subr.mxu0 0.0
    %903 = vmatpush1.msra.mxu0 0.0
    %904 = vmatprep.subr.mxu0 0.0
    %905 = vmatpush1.msra.mxu0 0.0
    %906 = vmatprep.subr.mxu0 0.0
    %907 = vmatpush1.msra.mxu0 0.0
    %908 = vmatprep.subr.mxu0 0.0
    %909 = vmatpush1.msra.mxu0 0.0
    %910 = vmatprep.subr.mxu0 0.0
    %911 = vmatpush1.msra.mxu0 0.0
    %912 = vmatprep.subr.mxu0 0.0
    %913 = vmatpush1.msra.mxu0 0.0
    %914 = vmatprep.subr.mxu0 0.0
    %915 = vmatpush1.msra.mxu0 0.0
    %916 = vmatprep.mubr.f32.mxu0 0.0
    %917 = vmatmul.mubr.f32.gmra.mrb[0].mxu0 %v847
    %v918 = vpop.f32.mrb[0].mxu0
    %v919 = vadd.f32 0.0, %v918
    %v920 = vpop.f32.mrb[0].mxu0
    %921 = vmatprep.mubr.f32.mxu0 0.0
    %922 = vmatmul.mubr.f32.gmra.mrb[0].mxu0 %v850
    %v923 = vpop.f32.mrb[0].mxu0
    %v924 = vadd.f32 0.0, %v923
    %v925 = vpop.f32.mrb[0].mxu0
    %926 = vdwg.mxu0
    %927 = vrot.lane.b32.xlu0 %v220, 112
    %v928 = vpop.permute.xlu0 %927
    %929 = vrot.lane.b32.xlu0 %v225, 112
    %v930 = vpop.permute.xlu0 %929
    %v934 = vsel %vm751, %v834, 0
    %v937 = vsel %vm751, %v835, 0
    %939 = vmatprep.subr.mxu0 0.0
    %940 = vmatpush1.msra.mxu0 %v928
    %941 = vmatprep.subr.mxu0 0.0
    %942 = vmatpush1.msra.mxu0 %v930
    %943 = vmatprep.subr.mxu0 0.0
    %944 = vmatpush1.msra.mxu0 0.0
    %945 = vmatprep.subr.mxu0 0.0
    %946 = vmatpush1.msra.mxu0 0.0
    %947 = vmatprep.subr.mxu0 0.0
    %948 = vmatpush1.msra.mxu0 0.0
    %949 = vmatprep.subr.mxu0 0.0
    %950 = vmatpush1.msra.mxu0 0.0
    %951 = vmatprep.subr.mxu0 0.0
    %952 = vmatpush1.msra.mxu0 0.0
    %953 = vmatprep.subr.mxu0 0.0
    %954 = vmatpush1.msra.mxu0 0.0
    %955 = vmatprep.subr.mxu0 0.0
    %956 = vmatpush1.msra.mxu0 0.0
    %957 = vmatprep.subr.mxu0 0.0
    %958 = vmatpush1.msra.mxu0 0.0
    %959 = vmatprep.subr.mxu0 0.0
    %960 = vmatpush1.msra.mxu0 0.0
    %961 = vmatprep.subr.mxu0 0.0
    %962 = vmatpush1.msra.mxu0 0.0
    %963 = vmatprep.subr.mxu0 0.0
    %964 = vmatpush1.msra.mxu0 0.0
    %965 = vmatprep.subr.mxu0 0.0
    %966 = vmatpush1.msra.mxu0 0.0
    %967 = vmatprep.subr.mxu0 0.0
    %968 = vmatpush1.msra.mxu0 0.0
    %969 = vmatprep.subr.mxu0 0.0
    %970 = vmatpush1.msra.mxu0 0.0
    %971 = vmatprep.subr.mxu0 0.0
    %972 = vmatpush1.msra.mxu0 0.0
    %973 = vmatprep.subr.mxu0 0.0
    %974 = vmatpush1.msra.mxu0 0.0
    %975 = vmatprep.subr.mxu0 0.0
    %976 = vmatpush1.msra.mxu0 0.0
    %977 = vmatprep.subr.mxu0 0.0
    %978 = vmatpush1.msra.mxu0 0.0
    %979 = vmatprep.subr.mxu0 0.0
    %980 = vmatpush1.msra.mxu0 0.0
    %981 = vmatprep.subr.mxu0 0.0
    %982 = vmatpush1.msra.mxu0 0.0
    %983 = vmatprep.subr.mxu0 0.0
    %984 = vmatpush1.msra.mxu0 0.0
    %985 = vmatprep.subr.mxu0 0.0
    %986 = vmatpush1.msra.mxu0 0.0
    %987 = vmatprep.subr.mxu0 0.0
    %988 = vmatpush1.msra.mxu0 0.0
    %989 = vmatprep.subr.mxu0 0.0
    %990 = vmatpush1.msra.mxu0 0.0
    %991 = vmatprep.subr.mxu0 0.0
    %992 = vmatpush1.msra.mxu0 0.0
    %993 = vmatprep.subr.mxu0 0.0
    %994 = vmatpush1.msra.mxu0 0.0
    %995 = vmatprep.subr.mxu0 0.0
    %996 = vmatpush1.msra.mxu0 0.0
    %997 = vmatprep.subr.mxu0 0.0
    %998 = vmatpush1.msra.mxu0 0.0
    %999 = vmatprep.subr.mxu0 0.0
    %1000 = vmatpush1.msra.mxu0 0.0
    %1001 = vmatprep.subr.mxu0 0.0
    %1002 = vmatpush1.msra.mxu0 0.0
    %1003 = vmatprep.mubr.f32.mxu0 0.0
    %1004 = vmatmul.mubr.f32.gmra.mrb[0].mxu0 %v934
    %v1005 = vpop.f32.mrb[0].mxu0
    %v1006 = vadd.f32 0.0, %v1005
    %v1007 = vpop.f32.mrb[0].mxu0
    %1008 = vmatprep.mubr.f32.mxu0 0.0
    %1009 = vmatmul.mubr.f32.gmra.mrb[0].mxu0 %v937
    %v1010 = vpop.f32.mrb[0].mxu0
    %v1011 = vadd.f32 0.0, %v1010
    %v1012 = vpop.f32.mrb[0].mxu0
    %1013 = vdwg.mxu0
    %1014 = vrot.lane.b32.xlu0 %v295, 112
    %v1015 = vpop.permute.xlu0 %1014
    %1016 = vrot.lane.b32.xlu0 %v300, 112
    %v1017 = vpop.permute.xlu0 %1016
    %v1021 = vsel %vm751, %v836, 0
    %v1024 = vsel %vm751, %v837, 0
    %1026 = vmatprep.subr.mxu0 0.0
    %1027 = vmatpush1.msra.mxu0 %v1015
    %1028 = vmatprep.subr.mxu0 0.0
    %1029 = vmatpush1.msra.mxu0 %v1017
    %1030 = vmatprep.subr.mxu0 0.0
    %1031 = vmatpush1.msra.mxu0 0.0
    %1032 = vmatprep.subr.mxu0 0.0
    %1033 = vmatpush1.msra.mxu0 0.0
    %1034 = vmatprep.subr.mxu0 0.0
    %1035 = vmatpush1.msra.mxu0 0.0
    %1036 = vmatprep.subr.mxu0 0.0
    %1037 = vmatpush1.msra.mxu0 0.0
    %1038 = vmatprep.subr.mxu0 0.0
    %1039 = vmatpush1.msra.mxu0 0.0
    %1040 = vmatprep.subr.mxu0 0.0
    %1041 = vmatpush1.msra.mxu0 0.0
    %1042 = vmatprep.subr.mxu0 0.0
    %1043 = vmatpush1.msra.mxu0 0.0
    %1044 = vmatprep.subr.mxu0 0.0
    %1045 = vmatpush1.msra.mxu0 0.0
    %1046 = vmatprep.subr.mxu0 0.0
    %1047 = vmatpush1.msra.mxu0 0.0
    %1048 = vmatprep.subr.mxu0 0.0
    %1049 = vmatpush1.msra.mxu0 0.0
    %1050 = vmatprep.subr.mxu0 0.0
    %1051 = vmatpush1.msra.mxu0 0.0
    %1052 = vmatprep.subr.mxu0 0.0
    %1053 = vmatpush1.msra.mxu0 0.0
    %1054 = vmatprep.subr.mxu0 0.0
    %1055 = vmatpush1.msra.mxu0 0.0
    %1056 = vmatprep.subr.mxu0 0.0
    %1057 = vmatpush1.msra.mxu0 0.0
    %1058 = vmatprep.subr.mxu0 0.0
    %1059 = vmatpush1.msra.mxu0 0.0
    %1060 = vmatprep.subr.mxu0 0.0
    %1061 = vmatpush1.msra.mxu0 0.0
    %1062 = vmatprep.subr.mxu0 0.0
    %1063 = vmatpush1.msra.mxu0 0.0
    %1064 = vmatprep.subr.mxu0 0.0
    %1065 = vmatpush1.msra.mxu0 0.0
    %1066 = vmatprep.subr.mxu0 0.0
    %1067 = vmatpush1.msra.mxu0 0.0
    %1068 = vmatprep.subr.mxu0 0.0
    %1069 = vmatpush1.msra.mxu0 0.0
    %1070 = vmatprep.subr.mxu0 0.0
    %1071 = vmatpush1.msra.mxu0 0.0
    %1072 = vmatprep.subr.mxu0 0.0
    %1073 = vmatpush1.msra.mxu0 0.0
    %1074 = vmatprep.subr.mxu0 0.0
    %1075 = vmatpush1.msra.mxu0 0.0
    %1076 = vmatprep.subr.mxu0 0.0
    %1077 = vmatpush1.msra.mxu0 0.0
    %1078 = vmatprep.subr.mxu0 0.0
    %1079 = vmatpush1.msra.mxu0 0.0
    %1080 = vmatprep.subr.mxu0 0.0
    %1081 = vmatpush1.msra.mxu0 0.0
    %1082 = vmatprep.subr.mxu0 0.0
    %1083 = vmatpush1.msra.mxu0 0.0
    %1084 = vmatprep.subr.mxu0 0.0
    %1085 = vmatpush1.msra.mxu0 0.0
    %1086 = vmatprep.subr.mxu0 0.0
    %1087 = vmatpush1.msra.mxu0 0.0
    %1088 = vmatprep.subr.mxu0 0.0
    %1089 = vmatpush1.msra.mxu0 0.0
    %1090 = vmatprep.mubr.f32.mxu0 0.0
    %1091 = vmatmul.mubr.f32.gmra.mrb[0].mxu0 %v1021
    %v1092 = vpop.f32.mrb[0].mxu0
    %v1093 = vadd.f32 0.0, %v1092
    %v1094 = vpop.f32.mrb[0].mxu0
    %1095 = vmatprep.mubr.f32.mxu0 0.0
    %1096 = vmatmul.mubr.f32.gmra.mrb[0].mxu0 %v1024
    %v1097 = vpop.f32.mrb[0].mxu0
    %v1098 = vadd.f32 0.0, %v1097
    %v1099 = vpop.f32.mrb[0].mxu0
    %1100 = vdwg.mxu0
    %1101 = vrot.lane.b32.xlu0 %v370, 112
    %v1102 = vpop.permute.xlu0 %1101
    %1103 = vrot.lane.b32.xlu0 %v375, 112
    %v1104 = vpop.permute.xlu0 %1103
    %v1108 = vsel %vm751, %v838, 0
    %v1111 = vsel %vm751, %v839, 0
    %1113 = vmatprep.subr.mxu0 0.0
    %1114 = vmatpush1.msra.mxu0 %v1102
    %1115 = vmatprep.subr.mxu0 0.0
    %1116 = vmatpush1.msra.mxu0 %v1104
    %1117 = vmatprep.subr.mxu0 0.0
    %1118 = vmatpush1.msra.mxu0 0.0
    %1119 = vmatprep.subr.mxu0 0.0
    %1120 = vmatpush1.msra.mxu0 0.0
    %1121 = vmatprep.subr.mxu0 0.0
    %1122 = vmatpush1.msra.mxu0 0.0
    %1123 = vmatprep.subr.mxu0 0.0
    %1124 = vmatpush1.msra.mxu0 0.0
    %1125 = vmatprep.subr.mxu0 0.0
    %1126 = vmatpush1.msra.mxu0 0.0
    %1127 = vmatprep.subr.mxu0 0.0
    %1128 = vmatpush1.msra.mxu0 0.0
    %1129 = vmatprep.subr.mxu0 0.0
    %1130 = vmatpush1.msra.mxu0 0.0
    %1131 = vmatprep.subr.mxu0 0.0
    %1132 = vmatpush1.msra.mxu0 0.0
    %1133 = vmatprep.subr.mxu0 0.0
    %1134 = vmatpush1.msra.mxu0 0.0
    %1135 = vmatprep.subr.mxu0 0.0
    %1136 = vmatpush1.msra.mxu0 0.0
    %1137 = vmatprep.subr.mxu0 0.0
    %1138 = vmatpush1.msra.mxu0 0.0
    %1139 = vmatprep.subr.mxu0 0.0
    %1140 = vmatpush1.msra.mxu0 0.0
    %1141 = vmatprep.subr.mxu0 0.0
    %1142 = vmatpush1.msra.mxu0 0.0
    %1143 = vmatprep.subr.mxu0 0.0
    %1144 = vmatpush1.msra.mxu0 0.0
    %1145 = vmatprep.subr.mxu0 0.0
    %1146 = vmatpush1.msra.mxu0 0.0
    %1147 = vmatprep.subr.mxu0 0.0
    %1148 = vmatpush1.msra.mxu0 0.0
    %1149 = vmatprep.subr.mxu0 0.0
    %1150 = vmatpush1.msra.mxu0 0.0
    %1151 = vmatprep.subr.mxu0 0.0
    %1152 = vmatpush1.msra.mxu0 0.0
    %1153 = vmatprep.subr.mxu0 0.0
    %1154 = vmatpush1.msra.mxu0 0.0
    %1155 = vmatprep.subr.mxu0 0.0
    %1156 = vmatpush1.msra.mxu0 0.0
    %1157 = vmatprep.subr.mxu0 0.0
    %1158 = vmatpush1.msra.mxu0 0.0
    %1159 = vmatprep.subr.mxu0 0.0
    %1160 = vmatpush1.msra.mxu0 0.0
    %1161 = vmatprep.subr.mxu0 0.0
    %1162 = vmatpush1.msra.mxu0 0.0
    %1163 = vmatprep.subr.mxu0 0.0
    %1164 = vmatpush1.msra.mxu0 0.0
    %1165 = vmatprep.subr.mxu0 0.0
    %1166 = vmatpush1.msra.mxu0 0.0
    %1167 = vmatprep.subr.mxu0 0.0
    %1168 = vmatpush1.msra.mxu0 0.0
    %1169 = vmatprep.subr.mxu0 0.0
    %1170 = vmatpush1.msra.mxu0 0.0
    %1171 = vmatprep.subr.mxu0 0.0
    %1172 = vmatpush1.msra.mxu0 0.0
    %1173 = vmatprep.subr.mxu0 0.0
    %1174 = vmatpush1.msra.mxu0 0.0
    %1175 = vmatprep.subr.mxu0 0.0
    %1176 = vmatpush1.msra.mxu0 0.0
    %1177 = vmatprep.mubr.f32.mxu0 0.0
    %1178 = vmatmul.mubr.f32.gmra.mrb[0].mxu0 %v1108
    %v1179 = vpop.f32.mrb[0].mxu0
    %v1180 = vadd.f32 0.0, %v1179
    %v1181 = vpop.f32.mrb[0].mxu0
    %1182 = vmatprep.mubr.f32.mxu0 0.0
    %1183 = vmatmul.mubr.f32.gmra.mrb[0].mxu0 %v1111
    %v1184 = vpop.f32.mrb[0].mxu0
    %v1185 = vadd.f32 0.0, %v1184
    %v1186 = vpop.f32.mrb[0].mxu0
    %1187 = vdwg.mxu0
    %v1189 = vsel %vm384, %v919, 0
    %v1192 = vsel %vm384, %v924, 0
    %1194 = vmatprep.subr.mxu0 0.0
    %1195 = vmatpush1.msra.mxu0 %v54
    %1196 = vmatprep.subr.mxu0 0.0
    %1197 = vmatpush1.msra.mxu0 0.0
    %1198 = vmatprep.subr.mxu0 0.0
    %1199 = vmatpush1.msra.mxu0 0.0
    %1200 = vmatprep.subr.mxu0 0.0
    %1201 = vmatpush1.msra.mxu0 0.0
    %1202 = vmatprep.subr.mxu0 0.0
    %1203 = vmatpush1.msra.mxu0 0.0
    %1204 = vmatprep.subr.mxu0 0.0
    %1205 = vmatpush1.msra.mxu0 0.0
    %1206 = vmatprep.subr.mxu0 0.0
    %1207 = vmatpush1.msra.mxu0 0.0
    %1208 = vmatprep.subr.mxu0 0.0
    %1209 = vmatpush1.msra.mxu0 0.0
    %1210 = vmatprep.subr.mxu0 0.0
    %1211 = vmatpush1.msra.mxu0 0.0
    %1212 = vmatprep.subr.mxu0 0.0
    %1213 = vmatpush1.msra.mxu0 0.0
    %1214 = vmatprep.subr.mxu0 0.0
    %1215 = vmatpush1.msra.mxu0 0.0
    %1216 = vmatprep.subr.mxu0 0.0
    %1217 = vmatpush1.msra.mxu0 0.0
    %1218 = vmatprep.subr.mxu0 0.0
    %1219 = vmatpush1.msra.mxu0 0.0
    %1220 = vmatprep.subr.mxu0 0.0
    %1221 = vmatpush1.msra.mxu0 0.0
    %1222 = vmatprep.subr.mxu0 0.0
    %1223 = vmatpush1.msra.mxu0 0.0
    %1224 = vmatprep.subr.mxu0 0.0
    %1225 = vmatpush1.msra.mxu0 0.0
    %1226 = vmatprep.subr.mxu0 0.0
    %1227 = vmatpush1.msra.mxu0 0.0
    %1228 = vmatprep.subr.mxu0 0.0
    %1229 = vmatpush1.msra.mxu0 0.0
    %1230 = vmatprep.subr.mxu0 0.0
    %1231 = vmatpush1.msra.mxu0 0.0
    %1232 = vmatprep.subr.mxu0 0.0
    %1233 = vmatpush1.msra.mxu0 0.0
    %1234 = vmatprep.subr.mxu0 0.0
    %1235 = vmatpush1.msra.mxu0 0.0
    %1236 = vmatprep.subr.mxu0 0.0
    %1237 = vmatpush1.msra.mxu0 0.0
    %1238 = vmatprep.subr.mxu0 0.0
    %1239 = vmatpush1.msra.mxu0 0.0
    %1240 = vmatprep.subr.mxu0 0.0
    %1241 = vmatpush1.msra.mxu0 0.0
    %1242 = vmatprep.subr.mxu0 0.0
    %1243 = vmatpush1.msra.mxu0 0.0
    %1244 = vmatprep.subr.mxu0 0.0
    %1245 = vmatpush1.msra.mxu0 0.0
    %1246 = vmatprep.subr.mxu0 0.0
    %1247 = vmatpush1.msra.mxu0 0.0
    %1248 = vmatprep.subr.mxu0 0.0
    %1249 = vmatpush1.msra.mxu0 0.0
    %1250 = vmatprep.subr.mxu0 0.0
    %1251 = vmatpush1.msra.mxu0 0.0
    %1252 = vmatprep.subr.mxu0 0.0
    %1253 = vmatpush1.msra.mxu0 0.0
    %1254 = vmatprep.subr.mxu0 0.0
    %1255 = vmatpush1.msra.mxu0 0.0
    %1256 = vmatprep.subr.mxu0 0.0
    %1257 = vmatpush1.msra.mxu0 0.0
    %1258 = vmatprep.mubr.f32.mxu0 0.0
    %1259 = vmatmul.mubr.f32.gmra.mrb[0].mxu0 %v1189
    %v1260 = vpop.f32.mrb[0].mxu0
    %v1261 = vadd.f32 0.0, %v1260
    %v1262 = vpop.f32.mrb[0].mxu0
    %1263 = vmatprep.mubr.f32.mxu0 0.0
    %1264 = vmatmul.mubr.f32.gmra.mrb[0].mxu0 %v1192
    %v1265 = vpop.f32.mrb[0].mxu0
    %v1266 = vadd.f32 0.0, %v1265
    %v1267 = vpop.f32.mrb[0].mxu0
    %1268 = vdwg.mxu0
    %v1270 = vsel %vm384, %v1006, 0
    %v1273 = vsel %vm384, %v1011, 0
    %1275 = vmatprep.subr.mxu0 0.0
    %1276 = vmatpush1.msra.mxu0 %v55
    %1277 = vmatprep.subr.mxu0 0.0
    %1278 = vmatpush1.msra.mxu0 0.0
    %1279 = vmatprep.subr.mxu0 0.0
    %1280 = vmatpush1.msra.mxu0 0.0
    %1281 = vmatprep.subr.mxu0 0.0
    %1282 = vmatpush1.msra.mxu0 0.0
    %1283 = vmatprep.subr.mxu0 0.0
    %1284 = vmatpush1.msra.mxu0 0.0
    %1285 = vmatprep.subr.mxu0 0.0
    %1286 = vmatpush1.msra.mxu0 0.0
    %1287 = vmatprep.subr.mxu0 0.0
    %1288 = vmatpush1.msra.mxu0 0.0
    %1289 = vmatprep.subr.mxu0 0.0
    %1290 = vmatpush1.msra.mxu0 0.0
    %1291 = vmatprep.subr.mxu0 0.0
    %1292 = vmatpush1.msra.mxu0 0.0
    %1293 = vmatprep.subr.mxu0 0.0
    %1294 = vmatpush1.msra.mxu0 0.0
    %1295 = vmatprep.subr.mxu0 0.0
    %1296 = vmatpush1.msra.mxu0 0.0
    %1297 = vmatprep.subr.mxu0 0.0
    %1298 = vmatpush1.msra.mxu0 0.0
    %1299 = vmatprep.subr.mxu0 0.0
    %1300 = vmatpush1.msra.mxu0 0.0
    %1301 = vmatprep.subr.mxu0 0.0
    %1302 = vmatpush1.msra.mxu0 0.0
    %1303 = vmatprep.subr.mxu0 0.0
    %1304 = vmatpush1.msra.mxu0 0.0
    %1305 = vmatprep.subr.mxu0 0.0
    %1306 = vmatpush1.msra.mxu0 0.0
    %1307 = vmatprep.subr.mxu0 0.0
    %1308 = vmatpush1.msra.mxu0 0.0
    %1309 = vmatprep.subr.mxu0 0.0
    %1310 = vmatpush1.msra.mxu0 0.0
    %1311 = vmatprep.subr.mxu0 0.0
    %1312 = vmatpush1.msra.mxu0 0.0
    %1313 = vmatprep.subr.mxu0 0.0
    %1314 = vmatpush1.msra.mxu0 0.0
    %1315 = vmatprep.subr.mxu0 0.0
    %1316 = vmatpush1.msra.mxu0 0.0
    %1317 = vmatprep.subr.mxu0 0.0
    %1318 = vmatpush1.msra.mxu0 0.0
    %1319 = vmatprep.subr.mxu0 0.0
    %1320 = vmatpush1.msra.mxu0 0.0
    %1321 = vmatprep.subr.mxu0 0.0
    %1322 = vmatpush1.msra.mxu0 0.0
    %1323 = vmatprep.subr.mxu0 0.0
    %1324 = vmatpush1.msra.mxu0 0.0
    %1325 = vmatprep.subr.mxu0 0.0
    %1326 = vmatpush1.msra.mxu0 0.0
    %1327 = vmatprep.subr.mxu0 0.0
    %1328 = vmatpush1.msra.mxu0 0.0
    %1329 = vmatprep.subr.mxu0 0.0
    %1330 = vmatpush1.msra.mxu0 0.0
    %1331 = vmatprep.subr.mxu0 0.0
    %1332 = vmatpush1.msra.mxu0 0.0
    %1333 = vmatprep.subr.mxu0 0.0
    %1334 = vmatpush1.msra.mxu0 0.0
    %1335 = vmatprep.subr.mxu0 0.0
    %1336 = vmatpush1.msra.mxu0 0.0
    %1337 = vmatprep.subr.mxu0 0.0
    %1338 = vmatpush1.msra.mxu0 0.0
    %1339 = vmatprep.mubr.f32.mxu0 0.0
    %1340 = vmatmul.mubr.f32.gmra.mrb[0].mxu0 %v1270
    %v1341 = vpop.f32.mrb[0].mxu0
    %v1342 = vadd.f32 0.0, %v1341
    %v1343 = vpop.f32.mrb[0].mxu0
    %1344 = vmatprep.mubr.f32.mxu0 0.0
    %1345 = vmatmul.mubr.f32.gmra.mrb[0].mxu0 %v1273
    %v1346 = vpop.f32.mrb[0].mxu0
    %v1347 = vadd.f32 0.0, %v1346
    %v1348 = vpop.f32.mrb[0].mxu0
    %1349 = vdwg.mxu0
    %v1351 = vsel %vm384, %v1093, 0
    %v1354 = vsel %vm384, %v1098, 0
    %1356 = vmatprep.subr.mxu0 0.0
    %1357 = vmatpush1.msra.mxu0 %v56
    %1358 = vmatprep.subr.mxu0 0.0
    %1359 = vmatpush1.msra.mxu0 0.0
    %1360 = vmatprep.subr.mxu0 0.0
    %1361 = vmatpush1.msra.mxu0 0.0
    %1362 = vmatprep.subr.mxu0 0.0
    %1363 = vmatpush1.msra.mxu0 0.0
    %1364 = vmatprep.subr.mxu0 0.0
    %1365 = vmatpush1.msra.mxu0 0.0
    %1366 = vmatprep.subr.mxu0 0.0
    %1367 = vmatpush1.msra.mxu0 0.0
    %1368 = vmatprep.subr.mxu0 0.0
    %1369 = vmatpush1.msra.mxu0 0.0
    %1370 = vmatprep.subr.mxu0 0.0
    %1371 = vmatpush1.msra.mxu0 0.0
    %1372 = vmatprep.subr.mxu0 0.0
    %1373 = vmatpush1.msra.mxu0 0.0
    %1374 = vmatprep.subr.mxu0 0.0
    %1375 = vmatpush1.msra.mxu0 0.0
    %1376 = vmatprep.subr.mxu0 0.0
    %1377 = vmatpush1.msra.mxu0 0.0
    %1378 = vmatprep.subr.mxu0 0.0
    %1379 = vmatpush1.msra.mxu0 0.0
    %1380 = vmatprep.subr.mxu0 0.0
    %1381 = vmatpush1.msra.mxu0 0.0
    %1382 = vmatprep.subr.mxu0 0.0
    %1383 = vmatpush1.msra.mxu0 0.0
    %1384 = vmatprep.subr.mxu0 0.0
    %1385 = vmatpush1.msra.mxu0 0.0
    %1386 = vmatprep.subr.mxu0 0.0
    %1387 = vmatpush1.msra.mxu0 0.0
    %1388 = vmatprep.subr.mxu0 0.0
    %1389 = vmatpush1.msra.mxu0 0.0
    %1390 = vmatprep.subr.mxu0 0.0
    %1391 = vmatpush1.msra.mxu0 0.0
    %1392 = vmatprep.subr.mxu0 0.0
    %1393 = vmatpush1.msra.mxu0 0.0
    %1394 = vmatprep.subr.mxu0 0.0
    %1395 = vmatpush1.msra.mxu0 0.0
    %1396 = vmatprep.subr.mxu0 0.0
    %1397 = vmatpush1.msra.mxu0 0.0
    %1398 = vmatprep.subr.mxu0 0.0
    %1399 = vmatpush1.msra.mxu0 0.0
    %1400 = vmatprep.subr.mxu0 0.0
    %1401 = vmatpush1.msra.mxu0 0.0
    %1402 = vmatprep.subr.mxu0 0.0
    %1403 = vmatpush1.msra.mxu0 0.0
    %1404 = vmatprep.subr.mxu0 0.0
    %1405 = vmatpush1.msra.mxu0 0.0
    %1406 = vmatprep.subr.mxu0 0.0
    %1407 = vmatpush1.msra.mxu0 0.0
    %1408 = vmatprep.subr.mxu0 0.0
    %1409 = vmatpush1.msra.mxu0 0.0
    %1410 = vmatprep.subr.mxu0 0.0
    %1411 = vmatpush1.msra.mxu0 0.0
    %1412 = vmatprep.subr.mxu0 0.0
    %1413 = vmatpush1.msra.mxu0 0.0
    %1414 = vmatprep.subr.mxu0 0.0
    %1415 = vmatpush1.msra.mxu0 0.0
    %1416 = vmatprep.subr.mxu0 0.0
    %1417 = vmatpush1.msra.mxu0 0.0
    %1418 = vmatprep.subr.mxu0 0.0
    %1419 = vmatpush1.msra.mxu0 0.0
    %1420 = vmatprep.mubr.f32.mxu0 0.0
    %1421 = vmatmul.mubr.f32.gmra.mrb[0].mxu0 %v1351
    %v1422 = vpop.f32.mrb[0].mxu0
    %v1423 = vadd.f32 0.0, %v1422
    %v1424 = vpop.f32.mrb[0].mxu0
    %1425 = vmatprep.mubr.f32.mxu0 0.0
    %1426 = vmatmul.mubr.f32.gmra.mrb[0].mxu0 %v1354
    %v1427 = vpop.f32.mrb[0].mxu0
    %v1428 = vadd.f32 0.0, %v1427
    %v1429 = vpop.f32.mrb[0].mxu0
    %1430 = vdwg.mxu0
    %v1432 = vsel %vm384, %v1180, 0
    %v1435 = vsel %vm384, %v1185, 0
    %1437 = vmatprep.subr.mxu0 0.0
    %1438 = vmatpush1.msra.mxu0 %v57
    %1439 = vmatprep.subr.mxu0 0.0
    %1440 = vmatpush1.msra.mxu0 0.0
    %1441 = vmatprep.subr.mxu0 0.0
    %1442 = vmatpush1.msra.mxu0 0.0
    %1443 = vmatprep.subr.mxu0 0.0
    %1444 = vmatpush1.msra.mxu0 0.0
    %1445 = vmatprep.subr.mxu0 0.0
    %1446 = vmatpush1.msra.mxu0 0.0
    %1447 = vmatprep.subr.mxu0 0.0
    %1448 = vmatpush1.msra.mxu0 0.0
    %1449 = vmatprep.subr.mxu0 0.0
    %1450 = vmatpush1.msra.mxu0 0.0
    %1451 = vmatprep.subr.mxu0 0.0
    %1452 = vmatpush1.msra.mxu0 0.0
    %1453 = vmatprep.subr.mxu0 0.0
    %1454 = vmatpush1.msra.mxu0 0.0
    %1455 = vmatprep.subr.mxu0 0.0
    %1456 = vmatpush1.msra.mxu0 0.0
    %1457 = vmatprep.subr.mxu0 0.0
    %1458 = vmatpush1.msra.mxu0 0.0
    %1459 = vmatprep.subr.mxu0 0.0
    %1460 = vmatpush1.msra.mxu0 0.0
    %1461 = vmatprep.subr.mxu0 0.0
    %1462 = vmatpush1.msra.mxu0 0.0
    %1463 = vmatprep.subr.mxu0 0.0
    %1464 = vmatpush1.msra.mxu0 0.0
    %1465 = vmatprep.subr.mxu0 0.0
    %1466 = vmatpush1.msra.mxu0 0.0
    %1467 = vmatprep.subr.mxu0 0.0
    %1468 = vmatpush1.msra.mxu0 0.0
    %1469 = vmatprep.subr.mxu0 0.0
    %1470 = vmatpush1.msra.mxu0 0.0
    %1471 = vmatprep.subr.mxu0 0.0
    %1472 = vmatpush1.msra.mxu0 0.0
    %1473 = vmatprep.subr.mxu0 0.0
    %1474 = vmatpush1.msra.mxu0 0.0
    %1475 = vmatprep.subr.mxu0 0.0
    %1476 = vmatpush1.msra.mxu0 0.0
    %1477 = vmatprep.subr.mxu0 0.0
    %1478 = vmatpush1.msra.mxu0 0.0
    %1479 = vmatprep.subr.mxu0 0.0
    %1480 = vmatpush1.msra.mxu0 0.0
    %1481 = vmatprep.subr.mxu0 0.0
    %1482 = vmatpush1.msra.mxu0 0.0
    %1483 = vmatprep.subr.mxu0 0.0
    %1484 = vmatpush1.msra.mxu0 0.0
    %1485 = vmatprep.subr.mxu0 0.0
    %1486 = vmatpush1.msra.mxu0 0.0
    %1487 = vmatprep.subr.mxu0 0.0
    %1488 = vmatpush1.msra.mxu0 0.0
    %1489 = vmatprep.subr.mxu0 0.0
    %1490 = vmatpush1.msra.mxu0 0.0
    %1491 = vmatprep.subr.mxu0 0.0
    %1492 = vmatpush1.msra.mxu0 0.0
    %1493 = vmatprep.subr.mxu0 0.0
    %1494 = vmatpush1.msra.mxu0 0.0
    %1495 = vmatprep.subr.mxu0 0.0
    %1496 = vmatpush1.msra.mxu0 0.0
    %1497 = vmatprep.subr.mxu0 0.0
    %1498 = vmatpush1.msra.mxu0 0.0
    %1499 = vmatprep.subr.mxu0 0.0
    %1500 = vmatpush1.msra.mxu0 0.0
    %1501 = vmatprep.mubr.f32.mxu0 0.0
    %1502 = vmatmul.mubr.f32.gmra.mrb[0].mxu0 %v1432
    %v1503 = vpop.f32.mrb[0].mxu0
    %v1504 = vadd.f32 0.0, %v1503
    %v1505 = vpop.f32.mrb[0].mxu0
    %1506 = vmatprep.mubr.f32.mxu0 0.0
    %1507 = vmatmul.mubr.f32.gmra.mrb[0].mxu0 %v1435
    %v1508 = vpop.f32.mrb[0].mxu0
    %v1509 = vadd.f32 0.0, %v1508
    %v1510 = vpop.f32.mrb[0].mxu0
    %1511 = vdwg.mxu0
    %v1512 = vadd.f32 %v1261, %v1342
    %v1513 = vadd.f32 %v1266, %v1347
    %v1514 = vadd.f32 %v1512, %v1423
    %v1515 = vadd.f32 %v1513, %v1428
    %v1516 = vadd.f32 %v1514, %v1504
    %v1517 = vadd.f32 %v1515, %v1509
    %v1518 = vadd.f32 %v34, %v1516
    %v1519 = vadd.f32 %v35, %v1517
    %v1520 = vsel %vm71, %v1518, 0.0
    %1521 = vadd.xlane.f32.xlu0 %v1520
    %v1522 = vpop.xlane.xlu0 %1521
    %v1523 = vsel %vm71, %v1519, 0.0
    %1524 = vadd.xlane.f32.xlu0 %v1523
    %v1525 = vpop.xlane.xlu0 %1524
    %v1526 = vrcp.pop 32.0
    %v1527 = vmul.f32 %v1522, %v1526
    %v1528 = vmul.f32 %v1525, %v1526
    %v1529 = vsub.f32 %v1518, %v1527
    %v1530 = vsub.f32 %v1519, %v1528
    %v1531 = vmul.f32 %v1529, %v1529
    %v1532 = vmul.f32 %v1530, %v1530
    %v1533 = vsel %vm71, %v1531, 0.0
    %1534 = vadd.xlane.f32.xlu0 %v1533
    %v1535 = vpop.xlane.xlu0 %1534
    %v1536 = vsel %vm71, %v1532, 0.0
    %1537 = vadd.xlane.f32.xlu0 %v1536
    %v1538 = vpop.xlane.xlu0 %1537
    %v1539 = vmul.f32 %v1535, 0.032258064
    %v1540 = vmul.f32 %v1538, 0.032258064
    %v1541 = vrsqrt.pop %v1539
    %v1542 = vmul.f32 %v1539, %v1541
    %vm1543 = vcmp.eq.f32.partialorder %v1539, inf
    %v1544 = vsel %vm1543, %v1539, %v1542
    %vm1545 = vcmp.eq.f32.partialorder %v1539, 0.0
    %v1546 = vand.u32 %v1539, 2147483648
    %v1547 = vsel %vm1545, %v1546, %v1544
    %v1548 = vrsqrt.pop %v1540
    %v1549 = vmul.f32 %v1540, %v1548
    %vm1550 = vcmp.eq.f32.partialorder %v1540, inf
    %v1551 = vsel %vm1550, %v1540, %v1549
    %vm1552 = vcmp.eq.f32.partialorder %v1540, 0.0
    %v1553 = vand.u32 %v1540, 2147483648
    %v1554 = vsel %vm1552, %v1553, %v1551
    %v1555 = vadd.f32 %v1547, 1e-06
    %v1556 = vadd.f32 %v1554, 1e-06
    %v1557 = vrcp.pop %v1555
    %v1558 = vrcp.pop %v1556
    %v1559 = vmul.f32 %v1529, %v1557
    %v1560 = vmul.f32 %v1530, %v1558
    %v1561 = vlaneseq
    %v1562 = vshrl.u32 %v1561, 7
    %v1563 = vsub.s32 2, %v1562
    %v1564 = vrot.slane %v70, %v1563
    %v1565 = vmul.f32 %v1564, %v1559
    %v1566 = vmul.f32 %v1564, %v1560
    %v1567 = vlaneseq
    %v1568 = vshrl.u32 %v1567, 7
    %v1569 = vsub.s32 3, %v1568
    %v1570 = vrot.slane %v70, %v1569
    %v1571 = vadd.f32 %v1565, %v1570
    %v1572 = vadd.f32 %v1566, %v1570
    %v1573 = vlaneseq
    %v1574 = vshrl.u32 %v1573, 7
    %v1575 = vsub.s32 0, %v1574
    %v1576 = vrot.slane %v70, %v1575
    %v1578 = vsel %vm71, %v1571, 0
    %v1581 = vsel %vm71, %v1572, 0
    %1583 = vmatprep.subr.mxu0 0.0
    %1584 = vmatpush1.msra.mxu0 %v58
    %1585 = vmatprep.subr.mxu0 0.0
    %1586 = vmatpush1.msra.mxu0 %v59
    %1587 = vmatprep.subr.mxu0 0.0
    %1588 = vmatpush1.msra.mxu0 %v60
    %1589 = vmatprep.subr.mxu0 0.0
    %1590 = vmatpush1.msra.mxu0 %v61
    %1591 = vmatprep.subr.mxu0 0.0
    %1592 = vmatpush1.msra.mxu0 0.0
    %1593 = vmatprep.subr.mxu0 0.0
    %1594 = vmatpush1.msra.mxu0 0.0
    %1595 = vmatprep.subr.mxu0 0.0
    %1596 = vmatpush1.msra.mxu0 0.0
    %1597 = vmatprep.subr.mxu0 0.0
    %1598 = vmatpush1.msra.mxu0 0.0
    %1599 = vmatprep.subr.mxu0 0.0
    %1600 = vmatpush1.msra.mxu0 0.0
    %1601 = vmatprep.subr.mxu0 0.0
    %1602 = vmatpush1.msra.mxu0 0.0
    %1603 = vmatprep.subr.mxu0 0.0
    %1604 = vmatpush1.msra.mxu0 0.0
    %1605 = vmatprep.subr.mxu0 0.0
    %1606 = vmatpush1.msra.mxu0 0.0
    %1607 = vmatprep.subr.mxu0 0.0
    %1608 = vmatpush1.msra.mxu0 0.0
    %1609 = vmatprep.subr.mxu0 0.0
    %1610 = vmatpush1.msra.mxu0 0.0
    %1611 = vmatprep.subr.mxu0 0.0
    %1612 = vmatpush1.msra.mxu0 0.0
    %1613 = vmatprep.subr.mxu0 0.0
    %1614 = vmatpush1.msra.mxu0 0.0
    %1615 = vmatprep.subr.mxu0 0.0
    %1616 = vmatpush1.msra.mxu0 0.0
    %1617 = vmatprep.subr.mxu0 0.0
    %1618 = vmatpush1.msra.mxu0 0.0
    %1619 = vmatprep.subr.mxu0 0.0
    %1620 = vmatpush1.msra.mxu0 0.0
    %1621 = vmatprep.subr.mxu0 0.0
    %1622 = vmatpush1.msra.mxu0 0.0
    %1623 = vmatprep.subr.mxu0 0.0
    %1624 = vmatpush1.msra.mxu0 0.0
    %1625 = vmatprep.subr.mxu0 0.0
    %1626 = vmatpush1.msra.mxu0 0.0
    %1627 = vmatprep.subr.mxu0 0.0
    %1628 = vmatpush1.msra.mxu0 0.0
    %1629 = vmatprep.subr.mxu0 0.0
    %1630 = vmatpush1.msra.mxu0 0.0
    %1631 = vmatprep.subr.mxu0 0.0
    %1632 = vmatpush1.msra.mxu0 0.0
    %1633 = vmatprep.subr.mxu0 0.0
    %1634 = vmatpush1.msra.mxu0 0.0
    %1635 = vmatprep.subr.mxu0 0.0
    %1636 = vmatpush1.msra.mxu0 0.0
    %1637 = vmatprep.subr.mxu0 0.0
    %1638 = vmatpush1.msra.mxu0 0.0
    %1639 = vmatprep.subr.mxu0 0.0
    %1640 = vmatpush1.msra.mxu0 0.0
    %1641 = vmatprep.subr.mxu0 0.0
    %1642 = vmatpush1.msra.mxu0 0.0
    %1643 = vmatprep.subr.mxu0 0.0
    %1644 = vmatpush1.msra.mxu0 0.0
    %1645 = vmatprep.subr.mxu0 0.0
    %1646 = vmatpush1.msra.mxu0 0.0
    %1647 = vmatprep.mubr.f32.mxu0 0.0
    %1648 = vmatmul.mubr.f32.gmra.mrb[0].mxu0 %v1578
    %v1649 = vpop.f32.mrb[0].mxu0
    %v1650 = vadd.f32 %v1576, %v1649
    %v1651 = vpop.f32.mrb[0].mxu0
    %1652 = vmatprep.mubr.f32.mxu0 0.0
    %1653 = vmatmul.mubr.f32.gmra.mrb[0].mxu0 %v1581
    %v1654 = vpop.f32.mrb[0].mxu0
    %v1655 = vadd.f32 %v1576, %v1654
    %v1656 = vpop.f32.mrb[0].mxu0
    %1657 = vdwg.mxu0
    %v1658 = vmax.f32 %v1650, 0.0
    %v1659 = vmax.f32 %v1655, 0.0
    %v1660 = vlaneseq
    %v1661 = vshrl.u32 %v1660, 7
    %v1662 = vsub.s32 1, %v1661
    %v1663 = vrot.slane %v70, %v1662
    %vm1664 = vcmask 523264
    %v1666 = vsel %vm1664, %v1658, 0
    %v1669 = vsel %vm1664, %v1659, 0
    %1671 = vmatprep.subr.mxu0 0.0
    %1672 = vmatpush1.msra.mxu0 %v62
    %1673 = vmatprep.subr.mxu0 0.0
    %1674 = vmatpush1.msra.mxu0 %v63
    %1675 = vmatprep.subr.mxu0 0.0
    %1676 = vmatpush1.msra.mxu0 %v64
    %1677 = vmatprep.subr.mxu0 0.0
    %1678 = vmatpush1.msra.mxu0 %v65
    %1679 = vmatprep.subr.mxu0 0.0
    %1680 = vmatpush1.msra.mxu0 %v66
    %1681 = vmatprep.subr.mxu0 0.0
    %1682 = vmatpush1.msra.mxu0 %v67
    %1683 = vmatprep.subr.mxu0 0.0
    %1684 = vmatpush1.msra.mxu0 %v68
    %1685 = vmatprep.subr.mxu0 0.0
    %1686 = vmatpush1.msra.mxu0 %v69
    %1687 = vmatprep.subr.mxu0 0.0
    %1688 = vmatpush1.msra.mxu0 0.0
    %1689 = vmatprep.subr.mxu0 0.0
    %1690 = vmatpush1.msra.mxu0 0.0
    %1691 = vmatprep.subr.mxu0 0.0
    %1692 = vmatpush1.msra.mxu0 0.0
    %1693 = vmatprep.subr.mxu0 0.0
    %1694 = vmatpush1.msra.mxu0 0.0
    %1695 = vmatprep.subr.mxu0 0.0
    %1696 = vmatpush1.msra.mxu0 0.0
    %1697 = vmatprep.subr.mxu0 0.0
    %1698 = vmatpush1.msra.mxu0 0.0
    %1699 = vmatprep.subr.mxu0 0.0
    %1700 = vmatpush1.msra.mxu0 0.0
    %1701 = vmatprep.subr.mxu0 0.0
    %1702 = vmatpush1.msra.mxu0 0.0
    %1703 = vmatprep.subr.mxu0 0.0
    %1704 = vmatpush1.msra.mxu0 0.0
    %1705 = vmatprep.subr.mxu0 0.0
    %1706 = vmatpush1.msra.mxu0 0.0
    %1707 = vmatprep.subr.mxu0 0.0
    %1708 = vmatpush1.msra.mxu0 0.0
    %1709 = vmatprep.subr.mxu0 0.0
    %1710 = vmatpush1.msra.mxu0 0.0
    %1711 = vmatprep.subr.mxu0 0.0
    %1712 = vmatpush1.msra.mxu0 0.0
    %1713 = vmatprep.subr.mxu0 0.0
    %1714 = vmatpush1.msra.mxu0 0.0
    %1715 = vmatprep.subr.mxu0 0.0
    %1716 = vmatpush1.msra.mxu0 0.0
    %1717 = vmatprep.subr.mxu0 0.0
    %1718 = vmatpush1.msra.mxu0 0.0
    %1719 = vmatprep.subr.mxu0 0.0
    %1720 = vmatpush1.msra.mxu0 0.0
    %1721 = vmatprep.subr.mxu0 0.0
    %1722 = vmatpush1.msra.mxu0 0.0
    %1723 = vmatprep.subr.mxu0 0.0
    %1724 = vmatpush1.msra.mxu0 0.0
    %1725 = vmatprep.subr.mxu0 0.0
    %1726 = vmatpush1.msra.mxu0 0.0
    %1727 = vmatprep.subr.mxu0 0.0
    %1728 = vmatpush1.msra.mxu0 0.0
    %1729 = vmatprep.subr.mxu0 0.0
    %1730 = vmatpush1.msra.mxu0 0.0
    %1731 = vmatprep.subr.mxu0 0.0
    %1732 = vmatpush1.msra.mxu0 0.0
    %1733 = vmatprep.subr.mxu0 0.0
    %1734 = vmatpush1.msra.mxu0 0.0
    %1735 = vmatprep.mubr.f32.mxu0 0.0
    %1736 = vmatmul.mubr.f32.gmra.mrb[0].mxu0 %v1666
    %v1737 = vpop.f32.mrb[0].mxu0
    %v1738 = vadd.f32 %v1663, %v1737
    %v1739 = vpop.f32.mrb[0].mxu0
    %1740 = vmatprep.mubr.f32.mxu0 0.0
    %1741 = vmatmul.mubr.f32.gmra.mrb[0].mxu0 %v1669
    %v1742 = vpop.f32.mrb[0].mxu0
    %v1743 = vadd.f32 %v1663, %v1742
    %v1744 = vpop.f32.mrb[0].mxu0
    %1745 = vdwg.mxu0
    %v1746 = vadd.f32 %v1571, %v1738
    %v1747 = vadd.f32 %v1572, %v1743
    %v1748 = vsel %vm71, %v1746, 0.0
    %1749 = vadd.xlane.f32.xlu0 %v1748
    %v1750 = vpop.xlane.xlu0 %1749
    %v1751 = vsel %vm71, %v1747, 0.0
    %1752 = vadd.xlane.f32.xlu0 %v1751
    %v1753 = vpop.xlane.xlu0 %1752
    %v1754 = vmul.f32 %v1750, %v1526
    %v1755 = vmul.f32 %v1753, %v1526
    %v1756 = vsub.f32 %v1746, %v1754
    %v1757 = vsub.f32 %v1747, %v1755
    %v1758 = vmul.f32 %v1756, %v1756
    %v1759 = vmul.f32 %v1757, %v1757
    %v1760 = vsel %vm71, %v1758, 0.0
    %1761 = vadd.xlane.f32.xlu0 %v1760
    %v1762 = vpop.xlane.xlu0 %1761
    %v1763 = vsel %vm71, %v1759, 0.0
    %1764 = vadd.xlane.f32.xlu0 %v1763
    %v1765 = vpop.xlane.xlu0 %1764
    %v1766 = vmul.f32 %v1762, 0.032258064
    %v1767 = vmul.f32 %v1765, 0.032258064
    %v1768 = vrsqrt.pop %v1766
    %v1769 = vmul.f32 %v1766, %v1768
    %vm1770 = vcmp.eq.f32.partialorder %v1766, inf
    %v1771 = vsel %vm1770, %v1766, %v1769
    %vm1772 = vcmp.eq.f32.partialorder %v1766, 0.0
    %v1773 = vand.u32 %v1766, 2147483648
    %v1774 = vsel %vm1772, %v1773, %v1771
    %v1775 = vrsqrt.pop %v1767
    %v1776 = vmul.f32 %v1767, %v1775
    %vm1777 = vcmp.eq.f32.partialorder %v1767, inf
    %v1778 = vsel %vm1777, %v1767, %v1776
    %vm1779 = vcmp.eq.f32.partialorder %v1767, 0.0
    %v1780 = vand.u32 %v1767, 2147483648
    %v1781 = vsel %vm1779, %v1780, %v1778
    %v1782 = vadd.f32 %v1774, 1e-06
    %v1783 = vadd.f32 %v1781, 1e-06
    %v1784 = vrcp.pop %v1782
    %v1785 = vrcp.pop %v1783
    %v1786 = vmul.f32 %v1756, %v1784
    %v1787 = vmul.f32 %v1757, %v1785
    %v1788 = vlaneseq
    %v1789 = vshrl.u32 %v1788, 7
    %v1790 = vsub.s32 4, %v1789
    %v1791 = vrot.slane %v70, %v1790
    %v1792 = vmul.f32 %v1791, %v1786
    %v1793 = vmul.f32 %v1791, %v1787
    %v1794 = vlaneseq
    %v1795 = vshrl.u32 %v1794, 7
    %v1796 = vsub.s32 5, %v1795
    %v1797 = vrot.slane %v70, %v1796
    %v1798 = vadd.f32 %v1792, %v1797
    %v1799 = vadd.f32 %v1793, %v1797
    %s1800 = scalar_lea.vmem %s3, 128
    %v1801 = vld [vmem:[%s1800] sm:$0xff]
    %v1802 = vld [vmem:[%s1800 + $0x8] sm:$0xff]
    %v1803 = vld [vmem:[%s1800 + $0x10] sm:$0xff]
    %v1804 = vld [vmem:[%s1800 + $0x18] sm:$0xff]
    %v1805 = vld [vmem:[%s1800 + $0x20] sm:$0xff]
    %v1806 = vld [vmem:[%s1800 + $0x28] sm:$0xff]
    %v1807 = vld [vmem:[%s1800 + $0x30] sm:$0xff]
    %v1808 = vld [vmem:[%s1800 + $0x38] sm:$0xff]
    %v1809 = vld [vmem:[%s1800 + $0x40] sm:$0xff]
    %v1810 = vld [vmem:[%s1800 + $0x48] sm:$0xff]
    %v1811 = vld [vmem:[%s1800 + $0x50] sm:$0xff]
    %v1812 = vld [vmem:[%s1800 + $0x58] sm:$0xff]
    %v1813 = vld [vmem:[%s1800 + $0x60] sm:$0xff]
    %v1814 = vld [vmem:[%s1800 + $0x68] sm:$0xff]
    %v1815 = vld [vmem:[%s1800 + $0x70] sm:$0xff]
    %v1816 = vld [vmem:[%s1800 + $0x78] sm:$0xff]
    %s1817 = scalar_lea.vmem %s4, 32
    %v1818 = vld [vmem:[%s1817] sm:$0xff]
    %v1819 = vld [vmem:[%s1817 + $0x8] sm:$0xff]
    %v1820 = vld [vmem:[%s1817 + $0x10] sm:$0xff]
    %v1821 = vld [vmem:[%s1817 + $0x18] sm:$0xff]
    %s1822 = scalar_lea.vmem %s5, 32
    %v1823 = vld [vmem:[%s1822] sm:$0xff]
    %v1824 = vld [vmem:[%s1822 + $0x8] sm:$0xff]
    %v1825 = vld [vmem:[%s1822 + $0x10] sm:$0xff]
    %v1826 = vld [vmem:[%s1822 + $0x18] sm:$0xff]
    %s1827 = scalar_lea.vmem %s6, 64
    %v1828 = vld [vmem:[%s1827] sm:$0xff]
    %v1829 = vld [vmem:[%s1827 + $0x8] sm:$0xff]
    %v1830 = vld [vmem:[%s1827 + $0x10] sm:$0xff]
    %v1831 = vld [vmem:[%s1827 + $0x18] sm:$0xff]
    %v1832 = vld [vmem:[%s1827 + $0x20] sm:$0xff]
    %v1833 = vld [vmem:[%s1827 + $0x28] sm:$0xff]
    %v1834 = vld [vmem:[%s1827 + $0x30] sm:$0xff]
    %v1835 = vld [vmem:[%s1827 + $0x38] sm:$0xff]
    %s1836 = scalar_lea.vmem %s7, 8
    %v1837 = vld [vmem:[%s1836] sm:$0x3f]
    %v1839 = vsel %vm71, %v1798, 0
    %v1842 = vsel %vm71, %v1799, 0
    %1844 = vmatprep.subr.mxu0 0.0
    %1845 = vmatpush1.msra.mxu0 %v1801
    %1846 = vmatprep.subr.mxu0 0.0
    %1847 = vmatpush1.msra.mxu0 %v1802
    %1848 = vmatprep.subr.mxu0 0.0
    %1849 = vmatpush1.msra.mxu0 %v1803
    %1850 = vmatprep.subr.mxu0 0.0
    %1851 = vmatpush1.msra.mxu0 %v1804
    %1852 = vmatprep.subr.mxu0 0.0
    %1853 = vmatpush1.msra.mxu0 0.0
    %1854 = vmatprep.subr.mxu0 0.0
    %1855 = vmatpush1.msra.mxu0 0.0
    %1856 = vmatprep.subr.mxu0 0.0
    %1857 = vmatpush1.msra.mxu0 0.0
    %1858 = vmatprep.subr.mxu0 0.0
    %1859 = vmatpush1.msra.mxu0 0.0
    %1860 = vmatprep.subr.mxu0 0.0
    %1861 = vmatpush1.msra.mxu0 0.0
    %1862 = vmatprep.subr.mxu0 0.0
    %1863 = vmatpush1.msra.mxu0 0.0
    %1864 = vmatprep.subr.mxu0 0.0
    %1865 = vmatpush1.msra.mxu0 0.0
    %1866 = vmatprep.subr.mxu0 0.0
    %1867 = vmatpush1.msra.mxu0 0.0
    %1868 = vmatprep.subr.mxu0 0.0
    %1869 = vmatpush1.msra.mxu0 0.0
    %1870 = vmatprep.subr.mxu0 0.0
    %1871 = vmatpush1.msra.mxu0 0.0
    %1872 = vmatprep.subr.mxu0 0.0
    %1873 = vmatpush1.msra.mxu0 0.0
    %1874 = vmatprep.subr.mxu0 0.0
    %1875 = vmatpush1.msra.mxu0 0.0
    %1876 = vmatprep.subr.mxu0 0.0
    %1877 = vmatpush1.msra.mxu0 0.0
    %1878 = vmatprep.subr.mxu0 0.0
    %1879 = vmatpush1.msra.mxu0 0.0
    %1880 = vmatprep.subr.mxu0 0.0
    %1881 = vmatpush1.msra.mxu0 0.0
    %1882 = vmatprep.subr.mxu0 0.0
    %1883 = vmatpush1.msra.mxu0 0.0
    %1884 = vmatprep.subr.mxu0 0.0
    %1885 = vmatpush1.msra.mxu0 0.0
    %1886 = vmatprep.subr.mxu0 0.0
    %1887 = vmatpush1.msra.mxu0 0.0
    %1888 = vmatprep.subr.mxu0 0.0
    %1889 = vmatpush1.msra.mxu0 0.0
    %1890 = vmatprep.subr.mxu0 0.0
    %1891 = vmatpush1.msra.mxu0 0.0
    %1892 = vmatprep.subr.mxu0 0.0
    %1893 = vmatpush1.msra.mxu0 0.0
    %1894 = vmatprep.subr.mxu0 0.0
    %1895 = vmatpush1.msra.mxu0 0.0
    %1896 = vmatprep.subr.mxu0 0.0
    %1897 = vmatpush1.msra.mxu0 0.0
    %1898 = vmatprep.subr.mxu0 0.0
    %1899 = vmatpush1.msra.mxu0 0.0
    %1900 = vmatprep.subr.mxu0 0.0
    %1901 = vmatpush1.msra.mxu0 0.0
    %1902 = vmatprep.subr.mxu0 0.0
    %1903 = vmatpush1.msra.mxu0 0.0
    %1904 = vmatprep.subr.mxu0 0.0
    %1905 = vmatpush1.msra.mxu0 0.0
    %1906 = vmatprep.subr.mxu0 0.0
    %1907 = vmatpush1.msra.mxu0 0.0
    %1908 = vmatprep.mubr.f32.mxu0 0.0
    %1909 = vmatmul.mubr.f32.gmra.mrb[0].mxu0 %v1839
    %v1910 = vpop.f32.mrb[0].mxu0
    %v1911 = vadd.f32 0.0, %v1910
    %v1912 = vpop.f32.mrb[0].mxu0
    %1913 = vmatprep.mubr.f32.mxu0 0.0
    %1914 = vmatmul.mubr.f32.gmra.mrb[0].mxu0 %v1842
    %v1915 = vpop.f32.mrb[0].mxu0
    %v1916 = vadd.f32 0.0, %v1915
    %v1917 = vpop.f32.mrb[0].mxu0
    %1918 = vdwg.mxu0
    %1919 = vmatprep.subr.mxu0 0.0
    %1920 = vmatpush1.msra.mxu0 %v1805
    %1921 = vmatprep.subr.mxu0 0.0
    %1922 = vmatpush1.msra.mxu0 %v1806
    %1923 = vmatprep.subr.mxu0 0.0
    %1924 = vmatpush1.msra.mxu0 %v1807
    %1925 = vmatprep.subr.mxu0 0.0
    %1926 = vmatpush1.msra.mxu0 %v1808
    %1927 = vmatprep.subr.mxu0 0.0
    %1928 = vmatpush1.msra.mxu0 0.0
    %1929 = vmatprep.subr.mxu0 0.0
    %1930 = vmatpush1.msra.mxu0 0.0
    %1931 = vmatprep.subr.mxu0 0.0
    %1932 = vmatpush1.msra.mxu0 0.0
    %1933 = vmatprep.subr.mxu0 0.0
    %1934 = vmatpush1.msra.mxu0 0.0
    %1935 = vmatprep.subr.mxu0 0.0
    %1936 = vmatpush1.msra.mxu0 0.0
    %1937 = vmatprep.subr.mxu0 0.0
    %1938 = vmatpush1.msra.mxu0 0.0
    %1939 = vmatprep.subr.mxu0 0.0
    %1940 = vmatpush1.msra.mxu0 0.0
    %1941 = vmatprep.subr.mxu0 0.0
    %1942 = vmatpush1.msra.mxu0 0.0
    %1943 = vmatprep.subr.mxu0 0.0
    %1944 = vmatpush1.msra.mxu0 0.0
    %1945 = vmatprep.subr.mxu0 0.0
    %1946 = vmatpush1.msra.mxu0 0.0
    %1947 = vmatprep.subr.mxu0 0.0
    %1948 = vmatpush1.msra.mxu0 0.0
    %1949 = vmatprep.subr.mxu0 0.0
    %1950 = vmatpush1.msra.mxu0 0.0
    %1951 = vmatprep.subr.mxu0 0.0
    %1952 = vmatpush1.msra.mxu0 0.0
    %1953 = vmatprep.subr.mxu0 0.0
    %1954 = vmatpush1.msra.mxu0 0.0
    %1955 = vmatprep.subr.mxu0 0.0
    %1956 = vmatpush1.msra.mxu0 0.0
    %1957 = vmatprep.subr.mxu0 0.0
    %1958 = vmatpush1.msra.mxu0 0.0
    %1959 = vmatprep.subr.mxu0 0.0
    %1960 = vmatpush1.msra.mxu0 0.0
    %1961 = vmatprep.subr.mxu0 0.0
    %1962 = vmatpush1.msra.mxu0 0.0
    %1963 = vmatprep.subr.mxu0 0.0
    %1964 = vmatpush1.msra.mxu0 0.0
    %1965 = vmatprep.subr.mxu0 0.0
    %1966 = vmatpush1.msra.mxu0 0.0
    %1967 = vmatprep.subr.mxu0 0.0
    %1968 = vmatpush1.msra.mxu0 0.0
    %1969 = vmatprep.subr.mxu0 0.0
    %1970 = vmatpush1.msra.mxu0 0.0
    %1971 = vmatprep.subr.mxu0 0.0
    %1972 = vmatpush1.msra.mxu0 0.0
    %1973 = vmatprep.subr.mxu0 0.0
    %1974 = vmatpush1.msra.mxu0 0.0
    %1975 = vmatprep.subr.mxu0 0.0
    %1976 = vmatpush1.msra.mxu0 0.0
    %1977 = vmatprep.subr.mxu0 0.0
    %1978 = vmatpush1.msra.mxu0 0.0
    %1979 = vmatprep.subr.mxu0 0.0
    %1980 = vmatpush1.msra.mxu0 0.0
    %1981 = vmatprep.subr.mxu0 0.0
    %1982 = vmatpush1.msra.mxu0 0.0
    %1983 = vmatprep.mubr.f32.mxu0 0.0
    %1984 = vmatmul.mubr.f32.gmra.mrb[0].mxu0 %v1839
    %v1985 = vpop.f32.mrb[0].mxu0
    %v1986 = vadd.f32 0.0, %v1985
    %v1987 = vpop.f32.mrb[0].mxu0
    %1988 = vmatprep.mubr.f32.mxu0 0.0
    %1989 = vmatmul.mubr.f32.gmra.mrb[0].mxu0 %v1842
    %v1990 = vpop.f32.mrb[0].mxu0
    %v1991 = vadd.f32 0.0, %v1990
    %v1992 = vpop.f32.mrb[0].mxu0
    %1993 = vdwg.mxu0
    %1994 = vmatprep.subr.mxu0 0.0
    %1995 = vmatpush1.msra.mxu0 %v1809
    %1996 = vmatprep.subr.mxu0 0.0
    %1997 = vmatpush1.msra.mxu0 %v1810
    %1998 = vmatprep.subr.mxu0 0.0
    %1999 = vmatpush1.msra.mxu0 %v1811
    %2000 = vmatprep.subr.mxu0 0.0
    %2001 = vmatpush1.msra.mxu0 %v1812
    %2002 = vmatprep.subr.mxu0 0.0
    %2003 = vmatpush1.msra.mxu0 0.0
    %2004 = vmatprep.subr.mxu0 0.0
    %2005 = vmatpush1.msra.mxu0 0.0
    %2006 = vmatprep.subr.mxu0 0.0
    %2007 = vmatpush1.msra.mxu0 0.0
    %2008 = vmatprep.subr.mxu0 0.0
    %2009 = vmatpush1.msra.mxu0 0.0
    %2010 = vmatprep.subr.mxu0 0.0
    %2011 = vmatpush1.msra.mxu0 0.0
    %2012 = vmatprep.subr.mxu0 0.0
    %2013 = vmatpush1.msra.mxu0 0.0
    %2014 = vmatprep.subr.mxu0 0.0
    %2015 = vmatpush1.msra.mxu0 0.0
    %2016 = vmatprep.subr.mxu0 0.0
    %2017 = vmatpush1.msra.mxu0 0.0
    %2018 = vmatprep.subr.mxu0 0.0
    %2019 = vmatpush1.msra.mxu0 0.0
    %2020 = vmatprep.subr.mxu0 0.0
    %2021 = vmatpush1.msra.mxu0 0.0
    %2022 = vmatprep.subr.mxu0 0.0
    %2023 = vmatpush1.msra.mxu0 0.0
    %2024 = vmatprep.subr.mxu0 0.0
    %2025 = vmatpush1.msra.mxu0 0.0
    %2026 = vmatprep.subr.mxu0 0.0
    %2027 = vmatpush1.msra.mxu0 0.0
    %2028 = vmatprep.subr.mxu0 0.0
    %2029 = vmatpush1.msra.mxu0 0.0
    %2030 = vmatprep.subr.mxu0 0.0
    %2031 = vmatpush1.msra.mxu0 0.0
    %2032 = vmatprep.subr.mxu0 0.0
    %2033 = vmatpush1.msra.mxu0 0.0
    %2034 = vmatprep.subr.mxu0 0.0
    %2035 = vmatpush1.msra.mxu0 0.0
    %2036 = vmatprep.subr.mxu0 0.0
    %2037 = vmatpush1.msra.mxu0 0.0
    %2038 = vmatprep.subr.mxu0 0.0
    %2039 = vmatpush1.msra.mxu0 0.0
    %2040 = vmatprep.subr.mxu0 0.0
    %2041 = vmatpush1.msra.mxu0 0.0
    %2042 = vmatprep.subr.mxu0 0.0
    %2043 = vmatpush1.msra.mxu0 0.0
    %2044 = vmatprep.subr.mxu0 0.0
    %2045 = vmatpush1.msra.mxu0 0.0
    %2046 = vmatprep.subr.mxu0 0.0
    %2047 = vmatpush1.msra.mxu0 0.0
    %2048 = vmatprep.subr.mxu0 0.0
    %2049 = vmatpush1.msra.mxu0 0.0
    %2050 = vmatprep.subr.mxu0 0.0
    %2051 = vmatpush1.msra.mxu0 0.0
    %2052 = vmatprep.subr.mxu0 0.0
    %2053 = vmatpush1.msra.mxu0 0.0
    %2054 = vmatprep.subr.mxu0 0.0
    %2055 = vmatpush1.msra.mxu0 0.0
    %2056 = vmatprep.subr.mxu0 0.0
    %2057 = vmatpush1.msra.mxu0 0.0
    %2058 = vmatprep.mubr.f32.mxu0 0.0
    %2059 = vmatmul.mubr.f32.gmra.mrb[0].mxu0 %v1839
    %v2060 = vpop.f32.mrb[0].mxu0
    %v2061 = vadd.f32 0.0, %v2060
    %v2062 = vpop.f32.mrb[0].mxu0
    %2063 = vmatprep.mubr.f32.mxu0 0.0
    %2064 = vmatmul.mubr.f32.gmra.mrb[0].mxu0 %v1842
    %v2065 = vpop.f32.mrb[0].mxu0
    %v2066 = vadd.f32 0.0, %v2065
    %v2067 = vpop.f32.mrb[0].mxu0
    %2068 = vdwg.mxu0
    %2069 = vmatprep.subr.mxu0 0.0
    %2070 = vmatpush1.msra.mxu0 %v1813
    %2071 = vmatprep.subr.mxu0 0.0
    %2072 = vmatpush1.msra.mxu0 %v1814
    %2073 = vmatprep.subr.mxu0 0.0
    %2074 = vmatpush1.msra.mxu0 %v1815
    %2075 = vmatprep.subr.mxu0 0.0
    %2076 = vmatpush1.msra.mxu0 %v1816
    %2077 = vmatprep.subr.mxu0 0.0
    %2078 = vmatpush1.msra.mxu0 0.0
    %2079 = vmatprep.subr.mxu0 0.0
    %2080 = vmatpush1.msra.mxu0 0.0
    %2081 = vmatprep.subr.mxu0 0.0
    %2082 = vmatpush1.msra.mxu0 0.0
    %2083 = vmatprep.subr.mxu0 0.0
    %2084 = vmatpush1.msra.mxu0 0.0
    %2085 = vmatprep.subr.mxu0 0.0
    %2086 = vmatpush1.msra.mxu0 0.0
    %2087 = vmatprep.subr.mxu0 0.0
    %2088 = vmatpush1.msra.mxu0 0.0
    %2089 = vmatprep.subr.mxu0 0.0
    %2090 = vmatpush1.msra.mxu0 0.0
    %2091 = vmatprep.subr.mxu0 0.0
    %2092 = vmatpush1.msra.mxu0 0.0
    %2093 = vmatprep.subr.mxu0 0.0
    %2094 = vmatpush1.msra.mxu0 0.0
    %2095 = vmatprep.subr.mxu0 0.0
    %2096 = vmatpush1.msra.mxu0 0.0
    %2097 = vmatprep.subr.mxu0 0.0
    %2098 = vmatpush1.msra.mxu0 0.0
    %2099 = vmatprep.subr.mxu0 0.0
    %2100 = vmatpush1.msra.mxu0 0.0
    %2101 = vmatprep.subr.mxu0 0.0
    %2102 = vmatpush1.msra.mxu0 0.0
    %2103 = vmatprep.subr.mxu0 0.0
    %2104 = vmatpush1.msra.mxu0 0.0
    %2105 = vmatprep.subr.mxu0 0.0
    %2106 = vmatpush1.msra.mxu0 0.0
    %2107 = vmatprep.subr.mxu0 0.0
    %2108 = vmatpush1.msra.mxu0 0.0
    %2109 = vmatprep.subr.mxu0 0.0
    %2110 = vmatpush1.msra.mxu0 0.0
    %2111 = vmatprep.subr.mxu0 0.0
    %2112 = vmatpush1.msra.mxu0 0.0
    %2113 = vmatprep.subr.mxu0 0.0
    %2114 = vmatpush1.msra.mxu0 0.0
    %2115 = vmatprep.subr.mxu0 0.0
    %2116 = vmatpush1.msra.mxu0 0.0
    %2117 = vmatprep.subr.mxu0 0.0
    %2118 = vmatpush1.msra.mxu0 0.0
    %2119 = vmatprep.subr.mxu0 0.0
    %2120 = vmatpush1.msra.mxu0 0.0
    %2121 = vmatprep.subr.mxu0 0.0
    %2122 = vmatpush1.msra.mxu0 0.0
    %2123 = vmatprep.subr.mxu0 0.0
    %2124 = vmatpush1.msra.mxu0 0.0
    %2125 = vmatprep.subr.mxu0 0.0
    %2126 = vmatpush1.msra.mxu0 0.0
    %2127 = vmatprep.subr.mxu0 0.0
    %2128 = vmatpush1.msra.mxu0 0.0
    %2129 = vmatprep.subr.mxu0 0.0
    %2130 = vmatpush1.msra.mxu0 0.0
    %2131 = vmatprep.subr.mxu0 0.0
    %2132 = vmatpush1.msra.mxu0 0.0
    %2133 = vmatprep.mubr.f32.mxu0 0.0
    %2134 = vmatmul.mubr.f32.gmra.mrb[0].mxu0 %v1839
    %v2135 = vpop.f32.mrb[0].mxu0
    %v2136 = vadd.f32 0.0, %v2135
    %v2137 = vpop.f32.mrb[0].mxu0
    %2138 = vmatprep.mubr.f32.mxu0 0.0
    %2139 = vmatmul.mubr.f32.gmra.mrb[0].mxu0 %v1842
    %v2140 = vpop.f32.mrb[0].mxu0
    %v2141 = vadd.f32 0.0, %v2140
    %v2142 = vpop.f32.mrb[0].mxu0
    %2143 = vdwg.mxu0
    %2146 = vrot.lane.b32.xlu0 %v1911, 120
    %v2147 = vpop.permute.xlu0 %2146
    %2148 = vrot.lane.b32.xlu0 %v1916, 120
    %v2149 = vpop.permute.xlu0 %2148
    %v2150 = vsel %vm384, %v1911, 0
    %v2152 = vsel %vm384, %v1916, 0
    %v2154 = vsel %vm384, %v2147, 0
    %v2156 = vsel %vm384, %v2149, 0
    %2158 = vmatprep.subr.mxu0 0.0
    %2159 = vmatpush1.xpose.msra.mxu0 %v2154
    %2160 = vmatprep.subr.mxu0 0.0
    %2161 = vmatpush1.xpose.msra.mxu0 %v2156
    %2162 = vmatprep.subr.mxu0 0.0
    %2163 = vmatpush1.xpose.msra.mxu0 0.0
    %2164 = vmatprep.subr.mxu0 0.0
    %2165 = vmatpush1.xpose.msra.mxu0 0.0
    %2166 = vmatprep.subr.mxu0 0.0
    %2167 = vmatpush1.xpose.msra.mxu0 0.0
    %2168 = vmatprep.subr.mxu0 0.0
    %2169 = vmatpush1.xpose.msra.mxu0 0.0
    %2170 = vmatprep.subr.mxu0 0.0
    %2171 = vmatpush1.xpose.msra.mxu0 0.0
    %2172 = vmatprep.subr.mxu0 0.0
    %2173 = vmatpush1.xpose.msra.mxu0 0.0
    %2174 = vmatprep.subr.mxu0 0.0
    %2175 = vmatpush1.xpose.msra.mxu0 0.0
    %2176 = vmatprep.subr.mxu0 0.0
    %2177 = vmatpush1.xpose.msra.mxu0 0.0
    %2178 = vmatprep.subr.mxu0 0.0
    %2179 = vmatpush1.xpose.msra.mxu0 0.0
    %2180 = vmatprep.subr.mxu0 0.0
    %2181 = vmatpush1.xpose.msra.mxu0 0.0
    %2182 = vmatprep.subr.mxu0 0.0
    %2183 = vmatpush1.xpose.msra.mxu0 0.0
    %2184 = vmatprep.subr.mxu0 0.0
    %2185 = vmatpush1.xpose.msra.mxu0 0.0
    %2186 = vmatprep.subr.mxu0 0.0
    %2187 = vmatpush1.xpose.msra.mxu0 0.0
    %2188 = vmatprep.subr.mxu0 0.0
    %2189 = vmatpush1.xpose.msra.mxu0 0.0
    %2190 = vmatprep.subr.mxu0 0.0
    %2191 = vmatpush1.xpose.msra.mxu0 0.0
    %2192 = vmatprep.subr.mxu0 0.0
    %2193 = vmatpush1.xpose.msra.mxu0 0.0
    %2194 = vmatprep.subr.mxu0 0.0
    %2195 = vmatpush1.xpose.msra.mxu0 0.0
    %2196 = vmatprep.subr.mxu0 0.0
    %2197 = vmatpush1.xpose.msra.mxu0 0.0
    %2198 = vmatprep.subr.mxu0 0.0
    %2199 = vmatpush1.xpose.msra.mxu0 0.0
    %2200 = vmatprep.subr.mxu0 0.0
    %2201 = vmatpush1.xpose.msra.mxu0 0.0
    %2202 = vmatprep.subr.mxu0 0.0
    %2203 = vmatpush1.xpose.msra.mxu0 0.0
    %2204 = vmatprep.subr.mxu0 0.0
    %2205 = vmatpush1.xpose.msra.mxu0 0.0
    %2206 = vmatprep.subr.mxu0 0.0
    %2207 = vmatpush1.xpose.msra.mxu0 0.0
    %2208 = vmatprep.subr.mxu0 0.0
    %2209 = vmatpush1.xpose.msra.mxu0 0.0
    %2210 = vmatprep.subr.mxu0 0.0
    %2211 = vmatpush1.xpose.msra.mxu0 0.0
    %2212 = vmatprep.subr.mxu0 0.0
    %2213 = vmatpush1.xpose.msra.mxu0 0.0
    %2214 = vmatprep.subr.mxu0 0.0
    %2215 = vmatpush1.xpose.msra.mxu0 0.0
    %2216 = vmatprep.subr.mxu0 0.0
    %2217 = vmatpush1.xpose.msra.mxu0 0.0
    %2218 = vmatprep.subr.mxu0 0.0
    %2219 = vmatpush1.xpose.msra.mxu0 0.0
    %2220 = vmatprep.subr.mxu0 0.0
    %2221 = vmatpush1.xpose.msra.mxu0 0.0
    %2222 = vmatprep.mubr.f32.mxu0 0.0
    %2223 = vmatmul.mubr.f32.gmra.mrb[0].mxu0 %v2150
    %v2224 = vpop.f32.mrb[0].mxu0
    %v2225 = vadd.f32 0.0, %v2224
    %v2226 = vpop.f32.mrb[0].mxu0
    %2227 = vmatprep.mubr.f32.mxu0 0.0
    %2228 = vmatmul.mubr.f32.gmra.mrb[0].mxu0 %v2152
    %v2229 = vpop.f32.mrb[0].mxu0
    %v2230 = vadd.f32 0.0, %v2229
    %v2231 = vpop.f32.mrb[0].mxu0
    %2232 = vdwg.mxu0
    %2235 = vrot.lane.b32.xlu0 %v1986, 120
    %v2236 = vpop.permute.xlu0 %2235
    %2237 = vrot.lane.b32.xlu0 %v1991, 120
    %v2238 = vpop.permute.xlu0 %2237
    %v2239 = vsel %vm384, %v1986, 0
    %v2241 = vsel %vm384, %v1991, 0
    %v2243 = vsel %vm384, %v2236, 0
    %v2245 = vsel %vm384, %v2238, 0
    %2247 = vmatprep.subr.mxu0 0.0
    %2248 = vmatpush1.xpose.msra.mxu0 %v2243
    %2249 = vmatprep.subr.mxu0 0.0
    %2250 = vmatpush1.xpose.msra.mxu0 %v2245
    %2251 = vmatprep.subr.mxu0 0.0
    %2252 = vmatpush1.xpose.msra.mxu0 0.0
    %2253 = vmatprep.subr.mxu0 0.0
    %2254 = vmatpush1.xpose.msra.mxu0 0.0
    %2255 = vmatprep.subr.mxu0 0.0
    %2256 = vmatpush1.xpose.msra.mxu0 0.0
    %2257 = vmatprep.subr.mxu0 0.0
    %2258 = vmatpush1.xpose.msra.mxu0 0.0
    %2259 = vmatprep.subr.mxu0 0.0
    %2260 = vmatpush1.xpose.msra.mxu0 0.0
    %2261 = vmatprep.subr.mxu0 0.0
    %2262 = vmatpush1.xpose.msra.mxu0 0.0
    %2263 = vmatprep.subr.mxu0 0.0
    %2264 = vmatpush1.xpose.msra.mxu0 0.0
    %2265 = vmatprep.subr.mxu0 0.0
    %2266 = vmatpush1.xpose.msra.mxu0 0.0
    %2267 = vmatprep.subr.mxu0 0.0
    %2268 = vmatpush1.xpose.msra.mxu0 0.0
    %2269 = vmatprep.subr.mxu0 0.0
    %2270 = vmatpush1.xpose.msra.mxu0 0.0
    %2271 = vmatprep.subr.mxu0 0.0
    %2272 = vmatpush1.xpose.msra.mxu0 0.0
    %2273 = vmatprep.subr.mxu0 0.0
    %2274 = vmatpush1.xpose.msra.mxu0 0.0
    %2275 = vmatprep.subr.mxu0 0.0
    %2276 = vmatpush1.xpose.msra.mxu0 0.0
    %2277 = vmatprep.subr.mxu0 0.0
    %2278 = vmatpush1.xpose.msra.mxu0 0.0
    %2279 = vmatprep.subr.mxu0 0.0
    %2280 = vmatpush1.xpose.msra.mxu0 0.0
    %2281 = vmatprep.subr.mxu0 0.0
    %2282 = vmatpush1.xpose.msra.mxu0 0.0
    %2283 = vmatprep.subr.mxu0 0.0
    %2284 = vmatpush1.xpose.msra.mxu0 0.0
    %2285 = vmatprep.subr.mxu0 0.0
    %2286 = vmatpush1.xpose.msra.mxu0 0.0
    %2287 = vmatprep.subr.mxu0 0.0
    %2288 = vmatpush1.xpose.msra.mxu0 0.0
    %2289 = vmatprep.subr.mxu0 0.0
    %2290 = vmatpush1.xpose.msra.mxu0 0.0
    %2291 = vmatprep.subr.mxu0 0.0
    %2292 = vmatpush1.xpose.msra.mxu0 0.0
    %2293 = vmatprep.subr.mxu0 0.0
    %2294 = vmatpush1.xpose.msra.mxu0 0.0
    %2295 = vmatprep.subr.mxu0 0.0
    %2296 = vmatpush1.xpose.msra.mxu0 0.0
    %2297 = vmatprep.subr.mxu0 0.0
    %2298 = vmatpush1.xpose.msra.mxu0 0.0
    %2299 = vmatprep.subr.mxu0 0.0
    %2300 = vmatpush1.xpose.msra.mxu0 0.0
    %2301 = vmatprep.subr.mxu0 0.0
    %2302 = vmatpush1.xpose.msra.mxu0 0.0
    %2303 = vmatprep.subr.mxu0 0.0
    %2304 = vmatpush1.xpose.msra.mxu0 0.0
    %2305 = vmatprep.subr.mxu0 0.0
    %2306 = vmatpush1.xpose.msra.mxu0 0.0
    %2307 = vmatprep.subr.mxu0 0.0
    %2308 = vmatpush1.xpose.msra.mxu0 0.0
    %2309 = vmatprep.subr.mxu0 0.0
    %2310 = vmatpush1.xpose.msra.mxu0 0.0
    %2311 = vmatprep.mubr.f32.mxu0 0.0
    %2312 = vmatmul.mubr.f32.gmra.mrb[0].mxu0 %v2239
    %v2313 = vpop.f32.mrb[0].mxu0
    %v2314 = vadd.f32 0.0, %v2313
    %v2315 = vpop.f32.mrb[0].mxu0
    %2316 = vmatprep.mubr.f32.mxu0 0.0
    %2317 = vmatmul.mubr.f32.gmra.mrb[0].mxu0 %v2241
    %v2318 = vpop.f32.mrb[0].mxu0
    %v2319 = vadd.f32 0.0, %v2318
    %v2320 = vpop.f32.mrb[0].mxu0
    %2321 = vdwg.mxu0
    %2324 = vrot.lane.b32.xlu0 %v2061, 120
    %v2325 = vpop.permute.xlu0 %2324
    %2326 = vrot.lane.b32.xlu0 %v2066, 120
    %v2327 = vpop.permute.xlu0 %2326
    %v2328 = vsel %vm384, %v2061, 0
    %v2330 = vsel %vm384, %v2066, 0
    %v2332 = vsel %vm384, %v2325, 0
    %v2334 = vsel %vm384, %v2327, 0
    %2336 = vmatprep.subr.mxu0 0.0
    %2337 = vmatpush1.xpose.msra.mxu0 %v2332
    %2338 = vmatprep.subr.mxu0 0.0
    %2339 = vmatpush1.xpose.msra.mxu0 %v2334
    %2340 = vmatprep.subr.mxu0 0.0
    %2341 = vmatpush1.xpose.msra.mxu0 0.0
    %2342 = vmatprep.subr.mxu0 0.0
    %2343 = vmatpush1.xpose.msra.mxu0 0.0
    %2344 = vmatprep.subr.mxu0 0.0
    %2345 = vmatpush1.xpose.msra.mxu0 0.0
    %2346 = vmatprep.subr.mxu0 0.0
    %2347 = vmatpush1.xpose.msra.mxu0 0.0
    %2348 = vmatprep.subr.mxu0 0.0
    %2349 = vmatpush1.xpose.msra.mxu0 0.0
    %2350 = vmatprep.subr.mxu0 0.0
    %2351 = vmatpush1.xpose.msra.mxu0 0.0
    %2352 = vmatprep.subr.mxu0 0.0
    %2353 = vmatpush1.xpose.msra.mxu0 0.0
    %2354 = vmatprep.subr.mxu0 0.0
    %2355 = vmatpush1.xpose.msra.mxu0 0.0
    %2356 = vmatprep.subr.mxu0 0.0
    %2357 = vmatpush1.xpose.msra.mxu0 0.0
    %2358 = vmatprep.subr.mxu0 0.0
    %2359 = vmatpush1.xpose.msra.mxu0 0.0
    %2360 = vmatprep.subr.mxu0 0.0
    %2361 = vmatpush1.xpose.msra.mxu0 0.0
    %2362 = vmatprep.subr.mxu0 0.0
    %2363 = vmatpush1.xpose.msra.mxu0 0.0
    %2364 = vmatprep.subr.mxu0 0.0
    %2365 = vmatpush1.xpose.msra.mxu0 0.0
    %2366 = vmatprep.subr.mxu0 0.0
    %2367 = vmatpush1.xpose.msra.mxu0 0.0
    %2368 = vmatprep.subr.mxu0 0.0
    %2369 = vmatpush1.xpose.msra.mxu0 0.0
    %2370 = vmatprep.subr.mxu0 0.0
    %2371 = vmatpush1.xpose.msra.mxu0 0.0
    %2372 = vmatprep.subr.mxu0 0.0
    %2373 = vmatpush1.xpose.msra.mxu0 0.0
    %2374 = vmatprep.subr.mxu0 0.0
    %2375 = vmatpush1.xpose.msra.mxu0 0.0
    %2376 = vmatprep.subr.mxu0 0.0
    %2377 = vmatpush1.xpose.msra.mxu0 0.0
    %2378 = vmatprep.subr.mxu0 0.0
    %2379 = vmatpush1.xpose.msra.mxu0 0.0
    %2380 = vmatprep.subr.mxu0 0.0
    %2381 = vmatpush1.xpose.msra.mxu0 0.0
    %2382 = vmatprep.subr.mxu0 0.0
    %2383 = vmatpush1.xpose.msra.mxu0 0.0
    %2384 = vmatprep.subr.mxu0 0.0
    %2385 = vmatpush1.xpose.msra.mxu0 0.0
    %2386 = vmatprep.subr.mxu0 0.0
    %2387 = vmatpush1.xpose.msra.mxu0 0.0
    %2388 = vmatprep.subr.mxu0 0.0
    %2389 = vmatpush1.xpose.msra.mxu0 0.0
    %2390 = vmatprep.subr.mxu0 0.0
    %2391 = vmatpush1.xpose.msra.mxu0 0.0
    %2392 = vmatprep.subr.mxu0 0.0
    %2393 = vmatpush1.xpose.msra.mxu0 0.0
    %2394 = vmatprep.subr.mxu0 0.0
    %2395 = vmatpush1.xpose.msra.mxu0 0.0
    %2396 = vmatprep.subr.mxu0 0.0
    %2397 = vmatpush1.xpose.msra.mxu0 0.0
    %2398 = vmatprep.subr.mxu0 0.0
    %2399 = vmatpush1.xpose.msra.mxu0 0.0
    %2400 = vmatprep.mubr.f32.mxu0 0.0
    %2401 = vmatmul.mubr.f32.gmra.mrb[0].mxu0 %v2328
    %v2402 = vpop.f32.mrb[0].mxu0
    %v2403 = vadd.f32 0.0, %v2402
    %v2404 = vpop.f32.mrb[0].mxu0
    %2405 = vmatprep.mubr.f32.mxu0 0.0
    %2406 = vmatmul.mubr.f32.gmra.mrb[0].mxu0 %v2330
    %v2407 = vpop.f32.mrb[0].mxu0
    %v2408 = vadd.f32 0.0, %v2407
    %v2409 = vpop.f32.mrb[0].mxu0
    %2410 = vdwg.mxu0
    %2413 = vrot.lane.b32.xlu0 %v2136, 120
    %v2414 = vpop.permute.xlu0 %2413
    %2415 = vrot.lane.b32.xlu0 %v2141, 120
    %v2416 = vpop.permute.xlu0 %2415
    %v2417 = vsel %vm384, %v2136, 0
    %v2419 = vsel %vm384, %v2141, 0
    %v2421 = vsel %vm384, %v2414, 0
    %v2423 = vsel %vm384, %v2416, 0
    %2425 = vmatprep.subr.mxu0 0.0
    %2426 = vmatpush1.xpose.msra.mxu0 %v2421
    %2427 = vmatprep.subr.mxu0 0.0
    %2428 = vmatpush1.xpose.msra.mxu0 %v2423
    %2429 = vmatprep.subr.mxu0 0.0
    %2430 = vmatpush1.xpose.msra.mxu0 0.0
    %2431 = vmatprep.subr.mxu0 0.0
    %2432 = vmatpush1.xpose.msra.mxu0 0.0
    %2433 = vmatprep.subr.mxu0 0.0
    %2434 = vmatpush1.xpose.msra.mxu0 0.0
    %2435 = vmatprep.subr.mxu0 0.0
    %2436 = vmatpush1.xpose.msra.mxu0 0.0
    %2437 = vmatprep.subr.mxu0 0.0
    %2438 = vmatpush1.xpose.msra.mxu0 0.0
    %2439 = vmatprep.subr.mxu0 0.0
    %2440 = vmatpush1.xpose.msra.mxu0 0.0
    %2441 = vmatprep.subr.mxu0 0.0
    %2442 = vmatpush1.xpose.msra.mxu0 0.0
    %2443 = vmatprep.subr.mxu0 0.0
    %2444 = vmatpush1.xpose.msra.mxu0 0.0
    %2445 = vmatprep.subr.mxu0 0.0
    %2446 = vmatpush1.xpose.msra.mxu0 0.0
    %2447 = vmatprep.subr.mxu0 0.0
    %2448 = vmatpush1.xpose.msra.mxu0 0.0
    %2449 = vmatprep.subr.mxu0 0.0
    %2450 = vmatpush1.xpose.msra.mxu0 0.0
    %2451 = vmatprep.subr.mxu0 0.0
    %2452 = vmatpush1.xpose.msra.mxu0 0.0
    %2453 = vmatprep.subr.mxu0 0.0
    %2454 = vmatpush1.xpose.msra.mxu0 0.0
    %2455 = vmatprep.subr.mxu0 0.0
    %2456 = vmatpush1.xpose.msra.mxu0 0.0
    %2457 = vmatprep.subr.mxu0 0.0
    %2458 = vmatpush1.xpose.msra.mxu0 0.0
    %2459 = vmatprep.subr.mxu0 0.0
    %2460 = vmatpush1.xpose.msra.mxu0 0.0
    %2461 = vmatprep.subr.mxu0 0.0
    %2462 = vmatpush1.xpose.msra.mxu0 0.0
    %2463 = vmatprep.subr.mxu0 0.0
    %2464 = vmatpush1.xpose.msra.mxu0 0.0
    %2465 = vmatprep.subr.mxu0 0.0
    %2466 = vmatpush1.xpose.msra.mxu0 0.0
    %2467 = vmatprep.subr.mxu0 0.0
    %2468 = vmatpush1.xpose.msra.mxu0 0.0
    %2469 = vmatprep.subr.mxu0 0.0
    %2470 = vmatpush1.xpose.msra.mxu0 0.0
    %2471 = vmatprep.subr.mxu0 0.0
    %2472 = vmatpush1.xpose.msra.mxu0 0.0
    %2473 = vmatprep.subr.mxu0 0.0
    %2474 = vmatpush1.xpose.msra.mxu0 0.0
    %2475 = vmatprep.subr.mxu0 0.0
    %2476 = vmatpush1.xpose.msra.mxu0 0.0
    %2477 = vmatprep.subr.mxu0 0.0
    %2478 = vmatpush1.xpose.msra.mxu0 0.0
    %2479 = vmatprep.subr.mxu0 0.0
    %2480 = vmatpush1.xpose.msra.mxu0 0.0
    %2481 = vmatprep.subr.mxu0 0.0
    %2482 = vmatpush1.xpose.msra.mxu0 0.0
    %2483 = vmatprep.subr.mxu0 0.0
    %2484 = vmatpush1.xpose.msra.mxu0 0.0
    %2485 = vmatprep.subr.mxu0 0.0
    %2486 = vmatpush1.xpose.msra.mxu0 0.0
    %2487 = vmatprep.subr.mxu0 0.0
    %2488 = vmatpush1.xpose.msra.mxu0 0.0
    %2489 = vmatprep.mubr.f32.mxu0 0.0
    %2490 = vmatmul.mubr.f32.gmra.mrb[0].mxu0 %v2417
    %v2491 = vpop.f32.mrb[0].mxu0
    %v2492 = vadd.f32 0.0, %v2491
    %v2493 = vpop.f32.mrb[0].mxu0
    %2494 = vmatprep.mubr.f32.mxu0 0.0
    %2495 = vmatmul.mubr.f32.gmra.mrb[0].mxu0 %v2419
    %v2496 = vpop.f32.mrb[0].mxu0
    %v2497 = vadd.f32 0.0, %v2496
    %v2498 = vpop.f32.mrb[0].mxu0
    %2499 = vdwg.mxu0
    %v2500 = vmul.f32 %v2225, 0.35355338
    %v2501 = vmul.f32 %v2230, 0.35355338
    %v2502 = vmul.f32 %v2314, 0.35355338
    %v2503 = vmul.f32 %v2319, 0.35355338
    %v2504 = vmul.f32 %v2403, 0.35355338
    %v2505 = vmul.f32 %v2408, 0.35355338
    %v2506 = vmul.f32 %v2492, 0.35355338
    %v2507 = vmul.f32 %v2497, 0.35355338
    %v2508 = vadd.f32 %v2500, %v36
    %v2509 = vadd.f32 %v2501, %v37
    %v2510 = vadd.f32 %v2502, %v36
    %v2511 = vadd.f32 %v2503, %v37
    %v2512 = vadd.f32 %v2504, %v36
    %v2513 = vadd.f32 %v2505, %v37
    %v2514 = vadd.f32 %v2506, %v36
    %v2515 = vadd.f32 %v2507, %v37
    %v2516 = vsel %vm751, %v2508, -inf
    %2517 = vmax.xlane.f32.xlu0 %v2516
    %v2518 = vpop.xlane.xlu0 %2517
    %v2519 = vsel %vm751, %v2509, -inf
    %2520 = vmax.xlane.f32.xlu0 %v2519
    %v2521 = vpop.xlane.xlu0 %2520
    %v2522 = vsel %vm751, %v2510, -inf
    %2523 = vmax.xlane.f32.xlu0 %v2522
    %v2524 = vpop.xlane.xlu0 %2523
    %v2525 = vsel %vm751, %v2511, -inf
    %2526 = vmax.xlane.f32.xlu0 %v2525
    %v2527 = vpop.xlane.xlu0 %2526
    %v2528 = vsel %vm751, %v2512, -inf
    %2529 = vmax.xlane.f32.xlu0 %v2528
    %v2530 = vpop.xlane.xlu0 %2529
    %v2531 = vsel %vm751, %v2513, -inf
    %2532 = vmax.xlane.f32.xlu0 %v2531
    %v2533 = vpop.xlane.xlu0 %2532
    %v2534 = vsel %vm751, %v2514, -inf
    %2535 = vmax.xlane.f32.xlu0 %v2534
    %v2536 = vpop.xlane.xlu0 %2535
    %v2537 = vsel %vm751, %v2515, -inf
    %2538 = vmax.xlane.f32.xlu0 %v2537
    %v2539 = vpop.xlane.xlu0 %2538
    %v2540 = vsub.f32 %v2508, %v2518
    %v2541 = vsub.f32 %v2509, %v2521
    %v2542 = vsub.f32 %v2510, %v2524
    %v2543 = vsub.f32 %v2511, %v2527
    %v2544 = vsub.f32 %v2512, %v2530
    %v2545 = vsub.f32 %v2513, %v2533
    %v2546 = vsub.f32 %v2514, %v2536
    %v2547 = vsub.f32 %v2515, %v2539
    %v2548 = vmul.f32 %v2540, 1.442695
    %v2549 = vpow.pop %v2548
    %v2550 = vmul.f32 %v2541, 1.442695
    %v2551 = vpow.pop %v2550
    %v2552 = vmul.f32 %v2542, 1.442695
    %v2553 = vpow.pop %v2552
    %v2554 = vmul.f32 %v2543, 1.442695
    %v2555 = vpow.pop %v2554
    %v2556 = vmul.f32 %v2544, 1.442695
    %v2557 = vpow.pop %v2556
    %v2558 = vmul.f32 %v2545, 1.442695
    %v2559 = vpow.pop %v2558
    %v2560 = vmul.f32 %v2546, 1.442695
    %v2561 = vpow.pop %v2560
    %v2562 = vmul.f32 %v2547, 1.442695
    %v2563 = vpow.pop %v2562
    %v2564 = vsel %vm751, %v2549, 0.0
    %2565 = vadd.xlane.f32.xlu0 %v2564
    %v2566 = vpop.xlane.xlu0 %2565
    %v2567 = vsel %vm751, %v2551, 0.0
    %2568 = vadd.xlane.f32.xlu0 %v2567
    %v2569 = vpop.xlane.xlu0 %2568
    %v2570 = vsel %vm751, %v2553, 0.0
    %2571 = vadd.xlane.f32.xlu0 %v2570
    %v2572 = vpop.xlane.xlu0 %2571
    %v2573 = vsel %vm751, %v2555, 0.0
    %2574 = vadd.xlane.f32.xlu0 %v2573
    %v2575 = vpop.xlane.xlu0 %2574
    %v2576 = vsel %vm751, %v2557, 0.0
    %2577 = vadd.xlane.f32.xlu0 %v2576
    %v2578 = vpop.xlane.xlu0 %2577
    %v2579 = vsel %vm751, %v2559, 0.0
    %2580 = vadd.xlane.f32.xlu0 %v2579
    %v2581 = vpop.xlane.xlu0 %2580
    %v2582 = vsel %vm751, %v2561, 0.0
    %2583 = vadd.xlane.f32.xlu0 %v2582
    %v2584 = vpop.xlane.xlu0 %2583
    %v2585 = vsel %vm751, %v2563, 0.0
    %2586 = vadd.xlane.f32.xlu0 %v2585
    %v2587 = vpop.xlane.xlu0 %2586
    %v2588 = vrcp.pop %v2566
    %v2589 = vrcp.pop %v2569
    %v2590 = vrcp.pop %v2572
    %v2591 = vrcp.pop %v2575
    %v2592 = vrcp.pop %v2578
    %v2593 = vrcp.pop %v2581
    %v2594 = vrcp.pop %v2584
    %v2595 = vrcp.pop %v2587
    %v2596 = vmul.f32 %v2549, %v2588
    %v2597 = vmul.f32 %v2551, %v2589
    %v2598 = vmul.f32 %v2553, %v2590
    %v2599 = vmul.f32 %v2555, %v2591
    %v2600 = vmul.f32 %v2557, %v2592
    %v2601 = vmul.f32 %v2559, %v2593
    %v2602 = vmul.f32 %v2561, %v2594
    %v2603 = vmul.f32 %v2563, %v2595
    %2604 = vrot.lane.b32.xlu0 %v1911, 112
    %v2605 = vpop.permute.xlu0 %2604
    %2606 = vrot.lane.b32.xlu0 %v1916, 112
    %v2607 = vpop.permute.xlu0 %2606
    %v2611 = vsel %vm751, %v2596, 0
    %v2614 = vsel %vm751, %v2597, 0
    %2616 = vmatprep.subr.mxu0 0.0
    %2617 = vmatpush1.msra.mxu0 %v2605
    %2618 = vmatprep.subr.mxu0 0.0
    %2619 = vmatpush1.msra.mxu0 %v2607
    %2620 = vmatprep.subr.mxu0 0.0
    %2621 = vmatpush1.msra.mxu0 0.0
    %2622 = vmatprep.subr.mxu0 0.0
    %2623 = vmatpush1.msra.mxu0 0.0
    %2624 = vmatprep.subr.mxu0 0.0
    %2625 = vmatpush1.msra.mxu0 0.0
    %2626 = vmatprep.subr.mxu0 0.0
    %2627 = vmatpush1.msra.mxu0 0.0
    %2628 = vmatprep.subr.mxu0 0.0
    %2629 = vmatpush1.msra.mxu0 0.0
    %2630 = vmatprep.subr.mxu0 0.0
    %2631 = vmatpush1.msra.mxu0 0.0
    %2632 = vmatprep.subr.mxu0 0.0
    %2633 = vmatpush1.msra.mxu0 0.0
    %2634 = vmatprep.subr.mxu0 0.0
    %2635 = vmatpush1.msra.mxu0 0.0
    %2636 = vmatprep.subr.mxu0 0.0
    %2637 = vmatpush1.msra.mxu0 0.0
    %2638 = vmatprep.subr.mxu0 0.0
    %2639 = vmatpush1.msra.mxu0 0.0
    %2640 = vmatprep.subr.mxu0 0.0
    %2641 = vmatpush1.msra.mxu0 0.0
    %2642 = vmatprep.subr.mxu0 0.0
    %2643 = vmatpush1.msra.mxu0 0.0
    %2644 = vmatprep.subr.mxu0 0.0
    %2645 = vmatpush1.msra.mxu0 0.0
    %2646 = vmatprep.subr.mxu0 0.0
    %2647 = vmatpush1.msra.mxu0 0.0
    %2648 = vmatprep.subr.mxu0 0.0
    %2649 = vmatpush1.msra.mxu0 0.0
    %2650 = vmatprep.subr.mxu0 0.0
    %2651 = vmatpush1.msra.mxu0 0.0
    %2652 = vmatprep.subr.mxu0 0.0
    %2653 = vmatpush1.msra.mxu0 0.0
    %2654 = vmatprep.subr.mxu0 0.0
    %2655 = vmatpush1.msra.mxu0 0.0
    %2656 = vmatprep.subr.mxu0 0.0
    %2657 = vmatpush1.msra.mxu0 0.0
    %2658 = vmatprep.subr.mxu0 0.0
    %2659 = vmatpush1.msra.mxu0 0.0
    %2660 = vmatprep.subr.mxu0 0.0
    %2661 = vmatpush1.msra.mxu0 0.0
    %2662 = vmatprep.subr.mxu0 0.0
    %2663 = vmatpush1.msra.mxu0 0.0
    %2664 = vmatprep.subr.mxu0 0.0
    %2665 = vmatpush1.msra.mxu0 0.0
    %2666 = vmatprep.subr.mxu0 0.0
    %2667 = vmatpush1.msra.mxu0 0.0
    %2668 = vmatprep.subr.mxu0 0.0
    %2669 = vmatpush1.msra.mxu0 0.0
    %2670 = vmatprep.subr.mxu0 0.0
    %2671 = vmatpush1.msra.mxu0 0.0
    %2672 = vmatprep.subr.mxu0 0.0
    %2673 = vmatpush1.msra.mxu0 0.0
    %2674 = vmatprep.subr.mxu0 0.0
    %2675 = vmatpush1.msra.mxu0 0.0
    %2676 = vmatprep.subr.mxu0 0.0
    %2677 = vmatpush1.msra.mxu0 0.0
    %2678 = vmatprep.subr.mxu0 0.0
    %2679 = vmatpush1.msra.mxu0 0.0
    %2680 = vmatprep.mubr.f32.mxu0 0.0
    %2681 = vmatmul.mubr.f32.gmra.mrb[0].mxu0 %v2611
    %v2682 = vpop.f32.mrb[0].mxu0
    %v2683 = vadd.f32 0.0, %v2682
    %v2684 = vpop.f32.mrb[0].mxu0
    %2685 = vmatprep.mubr.f32.mxu0 0.0
    %2686 = vmatmul.mubr.f32.gmra.mrb[0].mxu0 %v2614
    %v2687 = vpop.f32.mrb[0].mxu0
    %v2688 = vadd.f32 0.0, %v2687
    %v2689 = vpop.f32.mrb[0].mxu0
    %2690 = vdwg.mxu0
    %2691 = vrot.lane.b32.xlu0 %v1986, 112
    %v2692 = vpop.permute.xlu0 %2691
    %2693 = vrot.lane.b32.xlu0 %v1991, 112
    %v2694 = vpop.permute.xlu0 %2693
    %v2698 = vsel %vm751, %v2598, 0
    %v2701 = vsel %vm751, %v2599, 0
    %2703 = vmatprep.subr.mxu0 0.0
    %2704 = vmatpush1.msra.mxu0 %v2692
    %2705 = vmatprep.subr.mxu0 0.0
    %2706 = vmatpush1.msra.mxu0 %v2694
    %2707 = vmatprep.subr.mxu0 0.0
    %2708 = vmatpush1.msra.mxu0 0.0
    %2709 = vmatprep.subr.mxu0 0.0
    %2710 = vmatpush1.msra.mxu0 0.0
    %2711 = vmatprep.subr.mxu0 0.0
    %2712 = vmatpush1.msra.mxu0 0.0
    %2713 = vmatprep.subr.mxu0 0.0
    %2714 = vmatpush1.msra.mxu0 0.0
    %2715 = vmatprep.subr.mxu0 0.0
    %2716 = vmatpush1.msra.mxu0 0.0
    %2717 = vmatprep.subr.mxu0 0.0
    %2718 = vmatpush1.msra.mxu0 0.0
    %2719 = vmatprep.subr.mxu0 0.0
    %2720 = vmatpush1.msra.mxu0 0.0
    %2721 = vmatprep.subr.mxu0 0.0
    %2722 = vmatpush1.msra.mxu0 0.0
    %2723 = vmatprep.subr.mxu0 0.0
    %2724 = vmatpush1.msra.mxu0 0.0
    %2725 = vmatprep.subr.mxu0 0.0
    %2726 = vmatpush1.msra.mxu0 0.0
    %2727 = vmatprep.subr.mxu0 0.0
    %2728 = vmatpush1.msra.mxu0 0.0
    %2729 = vmatprep.subr.mxu0 0.0
    %2730 = vmatpush1.msra.mxu0 0.0
    %2731 = vmatprep.subr.mxu0 0.0
    %2732 = vmatpush1.msra.mxu0 0.0
    %2733 = vmatprep.subr.mxu0 0.0
    %2734 = vmatpush1.msra.mxu0 0.0
    %2735 = vmatprep.subr.mxu0 0.0
    %2736 = vmatpush1.msra.mxu0 0.0
    %2737 = vmatprep.subr.mxu0 0.0
    %2738 = vmatpush1.msra.mxu0 0.0
    %2739 = vmatprep.subr.mxu0 0.0
    %2740 = vmatpush1.msra.mxu0 0.0
    %2741 = vmatprep.subr.mxu0 0.0
    %2742 = vmatpush1.msra.mxu0 0.0
    %2743 = vmatprep.subr.mxu0 0.0
    %2744 = vmatpush1.msra.mxu0 0.0
    %2745 = vmatprep.subr.mxu0 0.0
    %2746 = vmatpush1.msra.mxu0 0.0
    %2747 = vmatprep.subr.mxu0 0.0
    %2748 = vmatpush1.msra.mxu0 0.0
    %2749 = vmatprep.subr.mxu0 0.0
    %2750 = vmatpush1.msra.mxu0 0.0
    %2751 = vmatprep.subr.mxu0 0.0
    %2752 = vmatpush1.msra.mxu0 0.0
    %2753 = vmatprep.subr.mxu0 0.0
    %2754 = vmatpush1.msra.mxu0 0.0
    %2755 = vmatprep.subr.mxu0 0.0
    %2756 = vmatpush1.msra.mxu0 0.0
    %2757 = vmatprep.subr.mxu0 0.0
    %2758 = vmatpush1.msra.mxu0 0.0
    %2759 = vmatprep.subr.mxu0 0.0
    %2760 = vmatpush1.msra.mxu0 0.0
    %2761 = vmatprep.subr.mxu0 0.0
    %2762 = vmatpush1.msra.mxu0 0.0
    %2763 = vmatprep.subr.mxu0 0.0
    %2764 = vmatpush1.msra.mxu0 0.0
    %2765 = vmatprep.subr.mxu0 0.0
    %2766 = vmatpush1.msra.mxu0 0.0
    %2767 = vmatprep.mubr.f32.mxu0 0.0
    %2768 = vmatmul.mubr.f32.gmra.mrb[0].mxu0 %v2698
    %v2769 = vpop.f32.mrb[0].mxu0
    %v2770 = vadd.f32 0.0, %v2769
    %v2771 = vpop.f32.mrb[0].mxu0
    %2772 = vmatprep.mubr.f32.mxu0 0.0
    %2773 = vmatmul.mubr.f32.gmra.mrb[0].mxu0 %v2701
    %v2774 = vpop.f32.mrb[0].mxu0
    %v2775 = vadd.f32 0.0, %v2774
    %v2776 = vpop.f32.mrb[0].mxu0
    %2777 = vdwg.mxu0
    %2778 = vrot.lane.b32.xlu0 %v2061, 112
    %v2779 = vpop.permute.xlu0 %2778
    %2780 = vrot.lane.b32.xlu0 %v2066, 112
    %v2781 = vpop.permute.xlu0 %2780
    %v2785 = vsel %vm751, %v2600, 0
    %v2788 = vsel %vm751, %v2601, 0
    %2790 = vmatprep.subr.mxu0 0.0
    %2791 = vmatpush1.msra.mxu0 %v2779
    %2792 = vmatprep.subr.mxu0 0.0
    %2793 = vmatpush1.msra.mxu0 %v2781
    %2794 = vmatprep.subr.mxu0 0.0
    %2795 = vmatpush1.msra.mxu0 0.0
    %2796 = vmatprep.subr.mxu0 0.0
    %2797 = vmatpush1.msra.mxu0 0.0
    %2798 = vmatprep.subr.mxu0 0.0
    %2799 = vmatpush1.msra.mxu0 0.0
    %2800 = vmatprep.subr.mxu0 0.0
    %2801 = vmatpush1.msra.mxu0 0.0
    %2802 = vmatprep.subr.mxu0 0.0
    %2803 = vmatpush1.msra.mxu0 0.0
    %2804 = vmatprep.subr.mxu0 0.0
    %2805 = vmatpush1.msra.mxu0 0.0
    %2806 = vmatprep.subr.mxu0 0.0
    %2807 = vmatpush1.msra.mxu0 0.0
    %2808 = vmatprep.subr.mxu0 0.0
    %2809 = vmatpush1.msra.mxu0 0.0
    %2810 = vmatprep.subr.mxu0 0.0
    %2811 = vmatpush1.msra.mxu0 0.0
    %2812 = vmatprep.subr.mxu0 0.0
    %2813 = vmatpush1.msra.mxu0 0.0
    %2814 = vmatprep.subr.mxu0 0.0
    %2815 = vmatpush1.msra.mxu0 0.0
    %2816 = vmatprep.subr.mxu0 0.0
    %2817 = vmatpush1.msra.mxu0 0.0
    %2818 = vmatprep.subr.mxu0 0.0
    %2819 = vmatpush1.msra.mxu0 0.0
    %2820 = vmatprep.subr.mxu0 0.0
    %2821 = vmatpush1.msra.mxu0 0.0
    %2822 = vmatprep.subr.mxu0 0.0
    %2823 = vmatpush1.msra.mxu0 0.0
    %2824 = vmatprep.subr.mxu0 0.0
    %2825 = vmatpush1.msra.mxu0 0.0
    %2826 = vmatprep.subr.mxu0 0.0
    %2827 = vmatpush1.msra.mxu0 0.0
    %2828 = vmatprep.subr.mxu0 0.0
    %2829 = vmatpush1.msra.mxu0 0.0
    %2830 = vmatprep.subr.mxu0 0.0
    %2831 = vmatpush1.msra.mxu0 0.0
    %2832 = vmatprep.subr.mxu0 0.0
    %2833 = vmatpush1.msra.mxu0 0.0
    %2834 = vmatprep.subr.mxu0 0.0
    %2835 = vmatpush1.msra.mxu0 0.0
    %2836 = vmatprep.subr.mxu0 0.0
    %2837 = vmatpush1.msra.mxu0 0.0
    %2838 = vmatprep.subr.mxu0 0.0
    %2839 = vmatpush1.msra.mxu0 0.0
    %2840 = vmatprep.subr.mxu0 0.0
    %2841 = vmatpush1.msra.mxu0 0.0
    %2842 = vmatprep.subr.mxu0 0.0
    %2843 = vmatpush1.msra.mxu0 0.0
    %2844 = vmatprep.subr.mxu0 0.0
    %2845 = vmatpush1.msra.mxu0 0.0
    %2846 = vmatprep.subr.mxu0 0.0
    %2847 = vmatpush1.msra.mxu0 0.0
    %2848 = vmatprep.subr.mxu0 0.0
    %2849 = vmatpush1.msra.mxu0 0.0
    %2850 = vmatprep.subr.mxu0 0.0
    %2851 = vmatpush1.msra.mxu0 0.0
    %2852 = vmatprep.subr.mxu0 0.0
    %2853 = vmatpush1.msra.mxu0 0.0
    %2854 = vmatprep.mubr.f32.mxu0 0.0
    %2855 = vmatmul.mubr.f32.gmra.mrb[0].mxu0 %v2785
    %v2856 = vpop.f32.mrb[0].mxu0
    %v2857 = vadd.f32 0.0, %v2856
    %v2858 = vpop.f32.mrb[0].mxu0
    %2859 = vmatprep.mubr.f32.mxu0 0.0
    %2860 = vmatmul.mubr.f32.gmra.mrb[0].mxu0 %v2788
    %v2861 = vpop.f32.mrb[0].mxu0
    %v2862 = vadd.f32 0.0, %v2861
    %v2863 = vpop.f32.mrb[0].mxu0
    %2864 = vdwg.mxu0
    %2865 = vrot.lane.b32.xlu0 %v2136, 112
    %v2866 = vpop.permute.xlu0 %2865
    %2867 = vrot.lane.b32.xlu0 %v2141, 112
    %v2868 = vpop.permute.xlu0 %2867
    %v2872 = vsel %vm751, %v2602, 0
    %v2875 = vsel %vm751, %v2603, 0
    %2877 = vmatprep.subr.mxu0 0.0
    %2878 = vmatpush1.msra.mxu0 %v2866
    %2879 = vmatprep.subr.mxu0 0.0
    %2880 = vmatpush1.msra.mxu0 %v2868
    %2881 = vmatprep.subr.mxu0 0.0
    %2882 = vmatpush1.msra.mxu0 0.0
    %2883 = vmatprep.subr.mxu0 0.0
    %2884 = vmatpush1.msra.mxu0 0.0
    %2885 = vmatprep.subr.mxu0 0.0
    %2886 = vmatpush1.msra.mxu0 0.0
    %2887 = vmatprep.subr.mxu0 0.0
    %2888 = vmatpush1.msra.mxu0 0.0
    %2889 = vmatprep.subr.mxu0 0.0
    %2890 = vmatpush1.msra.mxu0 0.0
    %2891 = vmatprep.subr.mxu0 0.0
    %2892 = vmatpush1.msra.mxu0 0.0
    %2893 = vmatprep.subr.mxu0 0.0
    %2894 = vmatpush1.msra.mxu0 0.0
    %2895 = vmatprep.subr.mxu0 0.0
    %2896 = vmatpush1.msra.mxu0 0.0
    %2897 = vmatprep.subr.mxu0 0.0
    %2898 = vmatpush1.msra.mxu0 0.0
    %2899 = vmatprep.subr.mxu0 0.0
    %2900 = vmatpush1.msra.mxu0 0.0
    %2901 = vmatprep.subr.mxu0 0.0
    %2902 = vmatpush1.msra.mxu0 0.0
    %2903 = vmatprep.subr.mxu0 0.0
    %2904 = vmatpush1.msra.mxu0 0.0
    %2905 = vmatprep.subr.mxu0 0.0
    %2906 = vmatpush1.msra.mxu0 0.0
    %2907 = vmatprep.subr.mxu0 0.0
    %2908 = vmatpush1.msra.mxu0 0.0
    %2909 = vmatprep.subr.mxu0 0.0
    %2910 = vmatpush1.msra.mxu0 0.0
    %2911 = vmatprep.subr.mxu0 0.0
    %2912 = vmatpush1.msra.mxu0 0.0
    %2913 = vmatprep.subr.mxu0 0.0
    %2914 = vmatpush1.msra.mxu0 0.0
    %2915 = vmatprep.subr.mxu0 0.0
    %2916 = vmatpush1.msra.mxu0 0.0
    %2917 = vmatprep.subr.mxu0 0.0
    %2918 = vmatpush1.msra.mxu0 0.0
    %2919 = vmatprep.subr.mxu0 0.0
    %2920 = vmatpush1.msra.mxu0 0.0
    %2921 = vmatprep.subr.mxu0 0.0
    %2922 = vmatpush1.msra.mxu0 0.0
    %2923 = vmatprep.subr.mxu0 0.0
    %2924 = vmatpush1.msra.mxu0 0.0
    %2925 = vmatprep.subr.mxu0 0.0
    %2926 = vmatpush1.msra.mxu0 0.0
    %2927 = vmatprep.subr.mxu0 0.0
    %2928 = vmatpush1.msra.mxu0 0.0
    %2929 = vmatprep.subr.mxu0 0.0
    %2930 = vmatpush1.msra.mxu0 0.0
    %2931 = vmatprep.subr.mxu0 0.0
    %2932 = vmatpush1.msra.mxu0 0.0
    %2933 = vmatprep.subr.mxu0 0.0
    %2934 = vmatpush1.msra.mxu0 0.0
    %2935 = vmatprep.subr.mxu0 0.0
    %2936 = vmatpush1.msra.mxu0 0.0
    %2937 = vmatprep.subr.mxu0 0.0
    %2938 = vmatpush1.msra.mxu0 0.0
    %2939 = vmatprep.subr.mxu0 0.0
    %2940 = vmatpush1.msra.mxu0 0.0
    %2941 = vmatprep.mubr.f32.mxu0 0.0
    %2942 = vmatmul.mubr.f32.gmra.mrb[0].mxu0 %v2872
    %v2943 = vpop.f32.mrb[0].mxu0
    %v2944 = vadd.f32 0.0, %v2943
    %v2945 = vpop.f32.mrb[0].mxu0
    %2946 = vmatprep.mubr.f32.mxu0 0.0
    %2947 = vmatmul.mubr.f32.gmra.mrb[0].mxu0 %v2875
    %v2948 = vpop.f32.mrb[0].mxu0
    %v2949 = vadd.f32 0.0, %v2948
    %v2950 = vpop.f32.mrb[0].mxu0
    %2951 = vdwg.mxu0
    %v2953 = vsel %vm384, %v2683, 0
    %v2956 = vsel %vm384, %v2688, 0
    %2958 = vmatprep.subr.mxu0 0.0
    %2959 = vmatpush1.msra.mxu0 %v1818
    %2960 = vmatprep.subr.mxu0 0.0
    %2961 = vmatpush1.msra.mxu0 0.0
    %2962 = vmatprep.subr.mxu0 0.0
    %2963 = vmatpush1.msra.mxu0 0.0
    %2964 = vmatprep.subr.mxu0 0.0
    %2965 = vmatpush1.msra.mxu0 0.0
    %2966 = vmatprep.subr.mxu0 0.0
    %2967 = vmatpush1.msra.mxu0 0.0
    %2968 = vmatprep.subr.mxu0 0.0
    %2969 = vmatpush1.msra.mxu0 0.0
    %2970 = vmatprep.subr.mxu0 0.0
    %2971 = vmatpush1.msra.mxu0 0.0
    %2972 = vmatprep.subr.mxu0 0.0
    %2973 = vmatpush1.msra.mxu0 0.0
    %2974 = vmatprep.subr.mxu0 0.0
    %2975 = vmatpush1.msra.mxu0 0.0
    %2976 = vmatprep.subr.mxu0 0.0
    %2977 = vmatpush1.msra.mxu0 0.0
    %2978 = vmatprep.subr.mxu0 0.0
    %2979 = vmatpush1.msra.mxu0 0.0
    %2980 = vmatprep.subr.mxu0 0.0
    %2981 = vmatpush1.msra.mxu0 0.0
    %2982 = vmatprep.subr.mxu0 0.0
    %2983 = vmatpush1.msra.mxu0 0.0
    %2984 = vmatprep.subr.mxu0 0.0
    %2985 = vmatpush1.msra.mxu0 0.0
    %2986 = vmatprep.subr.mxu0 0.0
    %2987 = vmatpush1.msra.mxu0 0.0
    %2988 = vmatprep.subr.mxu0 0.0
    %2989 = vmatpush1.msra.mxu0 0.0
    %2990 = vmatprep.subr.mxu0 0.0
    %2991 = vmatpush1.msra.mxu0 0.0
    %2992 = vmatprep.subr.mxu0 0.0
    %2993 = vmatpush1.msra.mxu0 0.0
    %2994 = vmatprep.subr.mxu0 0.0
    %2995 = vmatpush1.msra.mxu0 0.0
    %2996 = vmatprep.subr.mxu0 0.0
    %2997 = vmatpush1.msra.mxu0 0.0
    %2998 = vmatprep.subr.mxu0 0.0
    %2999 = vmatpush1.msra.mxu0 0.0
    %3000 = vmatprep.subr.mxu0 0.0
    %3001 = vmatpush1.msra.mxu0 0.0
    %3002 = vmatprep.subr.mxu0 0.0
    %3003 = vmatpush1.msra.mxu0 0.0
    %3004 = vmatprep.subr.mxu0 0.0
    %3005 = vmatpush1.msra.mxu0 0.0
    %3006 = vmatprep.subr.mxu0 0.0
    %3007 = vmatpush1.msra.mxu0 0.0
    %3008 = vmatprep.subr.mxu0 0.0
    %3009 = vmatpush1.msra.mxu0 0.0
    %3010 = vmatprep.subr.mxu0 0.0
    %3011 = vmatpush1.msra.mxu0 0.0
    %3012 = vmatprep.subr.mxu0 0.0
    %3013 = vmatpush1.msra.mxu0 0.0
    %3014 = vmatprep.subr.mxu0 0.0
    %3015 = vmatpush1.msra.mxu0 0.0
    %3016 = vmatprep.subr.mxu0 0.0
    %3017 = vmatpush1.msra.mxu0 0.0
    %3018 = vmatprep.subr.mxu0 0.0
    %3019 = vmatpush1.msra.mxu0 0.0
    %3020 = vmatprep.subr.mxu0 0.0
    %3021 = vmatpush1.msra.mxu0 0.0
    %3022 = vmatprep.mubr.f32.mxu0 0.0
    %3023 = vmatmul.mubr.f32.gmra.mrb[0].mxu0 %v2953
    %v3024 = vpop.f32.mrb[0].mxu0
    %v3025 = vadd.f32 0.0, %v3024
    %v3026 = vpop.f32.mrb[0].mxu0
    %3027 = vmatprep.mubr.f32.mxu0 0.0
    %3028 = vmatmul.mubr.f32.gmra.mrb[0].mxu0 %v2956
    %v3029 = vpop.f32.mrb[0].mxu0
    %v3030 = vadd.f32 0.0, %v3029
    %v3031 = vpop.f32.mrb[0].mxu0
    %3032 = vdwg.mxu0
    %v3034 = vsel %vm384, %v2770, 0
    %v3037 = vsel %vm384, %v2775, 0
    %3039 = vmatprep.subr.mxu0 0.0
    %3040 = vmatpush1.msra.mxu0 %v1819
    %3041 = vmatprep.subr.mxu0 0.0
    %3042 = vmatpush1.msra.mxu0 0.0
    %3043 = vmatprep.subr.mxu0 0.0
    %3044 = vmatpush1.msra.mxu0 0.0
    %3045 = vmatprep.subr.mxu0 0.0
    %3046 = vmatpush1.msra.mxu0 0.0
    %3047 = vmatprep.subr.mxu0 0.0
    %3048 = vmatpush1.msra.mxu0 0.0
    %3049 = vmatprep.subr.mxu0 0.0
    %3050 = vmatpush1.msra.mxu0 0.0
    %3051 = vmatprep.subr.mxu0 0.0
    %3052 = vmatpush1.msra.mxu0 0.0
    %3053 = vmatprep.subr.mxu0 0.0
    %3054 = vmatpush1.msra.mxu0 0.0
    %3055 = vmatprep.subr.mxu0 0.0
    %3056 = vmatpush1.msra.mxu0 0.0
    %3057 = vmatprep.subr.mxu0 0.0
    %3058 = vmatpush1.msra.mxu0 0.0
    %3059 = vmatprep.subr.mxu0 0.0
    %3060 = vmatpush1.msra.mxu0 0.0
    %3061 = vmatprep.subr.mxu0 0.0
    %3062 = vmatpush1.msra.mxu0 0.0
    %3063 = vmatprep.subr.mxu0 0.0
    %3064 = vmatpush1.msra.mxu0 0.0
    %3065 = vmatprep.subr.mxu0 0.0
    %3066 = vmatpush1.msra.mxu0 0.0
    %3067 = vmatprep.subr.mxu0 0.0
    %3068 = vmatpush1.msra.mxu0 0.0
    %3069 = vmatprep.subr.mxu0 0.0
    %3070 = vmatpush1.msra.mxu0 0.0
    %3071 = vmatprep.subr.mxu0 0.0
    %3072 = vmatpush1.msra.mxu0 0.0
    %3073 = vmatprep.subr.mxu0 0.0
    %3074 = vmatpush1.msra.mxu0 0.0
    %3075 = vmatprep.subr.mxu0 0.0
    %3076 = vmatpush1.msra.mxu0 0.0
    %3077 = vmatprep.subr.mxu0 0.0
    %3078 = vmatpush1.msra.mxu0 0.0
    %3079 = vmatprep.subr.mxu0 0.0
    %3080 = vmatpush1.msra.mxu0 0.0
    %3081 = vmatprep.subr.mxu0 0.0
    %3082 = vmatpush1.msra.mxu0 0.0
    %3083 = vmatprep.subr.mxu0 0.0
    %3084 = vmatpush1.msra.mxu0 0.0
    %3085 = vmatprep.subr.mxu0 0.0
    %3086 = vmatpush1.msra.mxu0 0.0
    %3087 = vmatprep.subr.mxu0 0.0
    %3088 = vmatpush1.msra.mxu0 0.0
    %3089 = vmatprep.subr.mxu0 0.0
    %3090 = vmatpush1.msra.mxu0 0.0
    %3091 = vmatprep.subr.mxu0 0.0
    %3092 = vmatpush1.msra.mxu0 0.0
    %3093 = vmatprep.subr.mxu0 0.0
    %3094 = vmatpush1.msra.mxu0 0.0
    %3095 = vmatprep.subr.mxu0 0.0
    %3096 = vmatpush1.msra.mxu0 0.0
    %3097 = vmatprep.subr.mxu0 0.0
    %3098 = vmatpush1.msra.mxu0 0.0
    %3099 = vmatprep.subr.mxu0 0.0
    %3100 = vmatpush1.msra.mxu0 0.0
    %3101 = vmatprep.subr.mxu0 0.0
    %3102 = vmatpush1.msra.mxu0 0.0
    %3103 = vmatprep.mubr.f32.mxu0 0.0
    %3104 = vmatmul.mubr.f32.gmra.mrb[0].mxu0 %v3034
    %v3105 = vpop.f32.mrb[0].mxu0
    %v3106 = vadd.f32 0.0, %v3105
    %v3107 = vpop.f32.mrb[0].mxu0
    %3108 = vmatprep.mubr.f32.mxu0 0.0
    %3109 = vmatmul.mubr.f32.gmra.mrb[0].mxu0 %v3037
    %v3110 = vpop.f32.mrb[0].mxu0
    %v3111 = vadd.f32 0.0, %v3110
    %v3112 = vpop.f32.mrb[0].mxu0
    %3113 = vdwg.mxu0
    %v3115 = vsel %vm384, %v2857, 0
    %v3118 = vsel %vm384, %v2862, 0
    %3120 = vmatprep.subr.mxu0 0.0
    %3121 = vmatpush1.msra.mxu0 %v1820
    %3122 = vmatprep.subr.mxu0 0.0
    %3123 = vmatpush1.msra.mxu0 0.0
    %3124 = vmatprep.subr.mxu0 0.0
    %3125 = vmatpush1.msra.mxu0 0.0
    %3126 = vmatprep.subr.mxu0 0.0
    %3127 = vmatpush1.msra.mxu0 0.0
    %3128 = vmatprep.subr.mxu0 0.0
    %3129 = vmatpush1.msra.mxu0 0.0
    %3130 = vmatprep.subr.mxu0 0.0
    %3131 = vmatpush1.msra.mxu0 0.0
    %3132 = vmatprep.subr.mxu0 0.0
    %3133 = vmatpush1.msra.mxu0 0.0
    %3134 = vmatprep.subr.mxu0 0.0
    %3135 = vmatpush1.msra.mxu0 0.0
    %3136 = vmatprep.subr.mxu0 0.0
    %3137 = vmatpush1.msra.mxu0 0.0
    %3138 = vmatprep.subr.mxu0 0.0
    %3139 = vmatpush1.msra.mxu0 0.0
    %3140 = vmatprep.subr.mxu0 0.0
    %3141 = vmatpush1.msra.mxu0 0.0
    %3142 = vmatprep.subr.mxu0 0.0
    %3143 = vmatpush1.msra.mxu0 0.0
    %3144 = vmatprep.subr.mxu0 0.0
    %3145 = vmatpush1.msra.mxu0 0.0
    %3146 = vmatprep.subr.mxu0 0.0
    %3147 = vmatpush1.msra.mxu0 0.0
    %3148 = vmatprep.subr.mxu0 0.0
    %3149 = vmatpush1.msra.mxu0 0.0
    %3150 = vmatprep.subr.mxu0 0.0
    %3151 = vmatpush1.msra.mxu0 0.0
    %3152 = vmatprep.subr.mxu0 0.0
    %3153 = vmatpush1.msra.mxu0 0.0
    %3154 = vmatprep.subr.mxu0 0.0
    %3155 = vmatpush1.msra.mxu0 0.0
    %3156 = vmatprep.subr.mxu0 0.0
    %3157 = vmatpush1.msra.mxu0 0.0
    %3158 = vmatprep.subr.mxu0 0.0
    %3159 = vmatpush1.msra.mxu0 0.0
    %3160 = vmatprep.subr.mxu0 0.0
    %3161 = vmatpush1.msra.mxu0 0.0
    %3162 = vmatprep.subr.mxu0 0.0
    %3163 = vmatpush1.msra.mxu0 0.0
    %3164 = vmatprep.subr.mxu0 0.0
    %3165 = vmatpush1.msra.mxu0 0.0
    %3166 = vmatprep.subr.mxu0 0.0
    %3167 = vmatpush1.msra.mxu0 0.0
    %3168 = vmatprep.subr.mxu0 0.0
    %3169 = vmatpush1.msra.mxu0 0.0
    %3170 = vmatprep.subr.mxu0 0.0
    %3171 = vmatpush1.msra.mxu0 0.0
    %3172 = vmatprep.subr.mxu0 0.0
    %3173 = vmatpush1.msra.mxu0 0.0
    %3174 = vmatprep.subr.mxu0 0.0
    %3175 = vmatpush1.msra.mxu0 0.0
    %3176 = vmatprep.subr.mxu0 0.0
    %3177 = vmatpush1.msra.mxu0 0.0
    %3178 = vmatprep.subr.mxu0 0.0
    %3179 = vmatpush1.msra.mxu0 0.0
    %3180 = vmatprep.subr.mxu0 0.0
    %3181 = vmatpush1.msra.mxu0 0.0
    %3182 = vmatprep.subr.mxu0 0.0
    %3183 = vmatpush1.msra.mxu0 0.0
    %3184 = vmatprep.mubr.f32.mxu0 0.0
    %3185 = vmatmul.mubr.f32.gmra.mrb[0].mxu0 %v3115
    %v3186 = vpop.f32.mrb[0].mxu0
    %v3187 = vadd.f32 0.0, %v3186
    %v3188 = vpop.f32.mrb[0].mxu0
    %3189 = vmatprep.mubr.f32.mxu0 0.0
    %3190 = vmatmul.mubr.f32.gmra.mrb[0].mxu0 %v3118
    %v3191 = vpop.f32.mrb[0].mxu0
    %v3192 = vadd.f32 0.0, %v3191
    %v3193 = vpop.f32.mrb[0].mxu0
    %3194 = vdwg.mxu0
    %v3196 = vsel %vm384, %v2944, 0
    %v3199 = vsel %vm384, %v2949, 0
    %3201 = vmatprep.subr.mxu0 0.0
    %3202 = vmatpush1.msra.mxu0 %v1821
    %3203 = vmatprep.subr.mxu0 0.0
    %3204 = vmatpush1.msra.mxu0 0.0
    %3205 = vmatprep.subr.mxu0 0.0
    %3206 = vmatpush1.msra.mxu0 0.0
    %3207 = vmatprep.subr.mxu0 0.0
    %3208 = vmatpush1.msra.mxu0 0.0
    %3209 = vmatprep.subr.mxu0 0.0
    %3210 = vmatpush1.msra.mxu0 0.0
    %3211 = vmatprep.subr.mxu0 0.0
    %3212 = vmatpush1.msra.mxu0 0.0
    %3213 = vmatprep.subr.mxu0 0.0
    %3214 = vmatpush1.msra.mxu0 0.0
    %3215 = vmatprep.subr.mxu0 0.0
    %3216 = vmatpush1.msra.mxu0 0.0
    %3217 = vmatprep.subr.mxu0 0.0
    %3218 = vmatpush1.msra.mxu0 0.0
    %3219 = vmatprep.subr.mxu0 0.0
    %3220 = vmatpush1.msra.mxu0 0.0
    %3221 = vmatprep.subr.mxu0 0.0
    %3222 = vmatpush1.msra.mxu0 0.0
    %3223 = vmatprep.subr.mxu0 0.0
    %3224 = vmatpush1.msra.mxu0 0.0
    %3225 = vmatprep.subr.mxu0 0.0
    %3226 = vmatpush1.msra.mxu0 0.0
    %3227 = vmatprep.subr.mxu0 0.0
    %3228 = vmatpush1.msra.mxu0 0.0
    %3229 = vmatprep.subr.mxu0 0.0
    %3230 = vmatpush1.msra.mxu0 0.0
    %3231 = vmatprep.subr.mxu0 0.0
    %3232 = vmatpush1.msra.mxu0 0.0
    %3233 = vmatprep.subr.mxu0 0.0
    %3234 = vmatpush1.msra.mxu0 0.0
    %3235 = vmatprep.subr.mxu0 0.0
    %3236 = vmatpush1.msra.mxu0 0.0
    %3237 = vmatprep.subr.mxu0 0.0
    %3238 = vmatpush1.msra.mxu0 0.0
    %3239 = vmatprep.subr.mxu0 0.0
    %3240 = vmatpush1.msra.mxu0 0.0
    %3241 = vmatprep.subr.mxu0 0.0
    %3242 = vmatpush1.msra.mxu0 0.0
    %3243 = vmatprep.subr.mxu0 0.0
    %3244 = vmatpush1.msra.mxu0 0.0
    %3245 = vmatprep.subr.mxu0 0.0
    %3246 = vmatpush1.msra.mxu0 0.0
    %3247 = vmatprep.subr.mxu0 0.0
    %3248 = vmatpush1.msra.mxu0 0.0
    %3249 = vmatprep.subr.mxu0 0.0
    %3250 = vmatpush1.msra.mxu0 0.0
    %3251 = vmatprep.subr.mxu0 0.0
    %3252 = vmatpush1.msra.mxu0 0.0
    %3253 = vmatprep.subr.mxu0 0.0
    %3254 = vmatpush1.msra.mxu0 0.0
    %3255 = vmatprep.subr.mxu0 0.0
    %3256 = vmatpush1.msra.mxu0 0.0
    %3257 = vmatprep.subr.mxu0 0.0
    %3258 = vmatpush1.msra.mxu0 0.0
    %3259 = vmatprep.subr.mxu0 0.0
    %3260 = vmatpush1.msra.mxu0 0.0
    %3261 = vmatprep.subr.mxu0 0.0
    %3262 = vmatpush1.msra.mxu0 0.0
    %3263 = vmatprep.subr.mxu0 0.0
    %3264 = vmatpush1.msra.mxu0 0.0
    %3265 = vmatprep.mubr.f32.mxu0 0.0
    %3266 = vmatmul.mubr.f32.gmra.mrb[0].mxu0 %v3196
    %v3267 = vpop.f32.mrb[0].mxu0
    %v3268 = vadd.f32 0.0, %v3267
    %v3269 = vpop.f32.mrb[0].mxu0
    %3270 = vmatprep.mubr.f32.mxu0 0.0
    %3271 = vmatmul.mubr.f32.gmra.mrb[0].mxu0 %v3199
    %v3272 = vpop.f32.mrb[0].mxu0
    %v3273 = vadd.f32 0.0, %v3272
    %v3274 = vpop.f32.mrb[0].mxu0
    %3275 = vdwg.mxu0
    %v3276 = vadd.f32 %v3025, %v3106
    %v3277 = vadd.f32 %v3030, %v3111
    %v3278 = vadd.f32 %v3276, %v3187
    %v3279 = vadd.f32 %v3277, %v3192
    %v3280 = vadd.f32 %v3278, %v3268
    %v3281 = vadd.f32 %v3279, %v3273
    %v3282 = vadd.f32 %v1798, %v3280
    %v3283 = vadd.f32 %v1799, %v3281
    %v3284 = vsel %vm71, %v3282, 0.0
    %3285 = vadd.xlane.f32.xlu0 %v3284
    %v3286 = vpop.xlane.xlu0 %3285
    %v3287 = vsel %vm71, %v3283, 0.0
    %3288 = vadd.xlane.f32.xlu0 %v3287
    %v3289 = vpop.xlane.xlu0 %3288
    %v3290 = vmul.f32 %v3286, %v1526
    %v3291 = vmul.f32 %v3289, %v1526
    %v3292 = vsub.f32 %v3282, %v3290
    %v3293 = vsub.f32 %v3283, %v3291
    %v3294 = vmul.f32 %v3292, %v3292
    %v3295 = vmul.f32 %v3293, %v3293
    %v3296 = vsel %vm71, %v3294, 0.0
    %3297 = vadd.xlane.f32.xlu0 %v3296
    %v3298 = vpop.xlane.xlu0 %3297
    %v3299 = vsel %vm71, %v3295, 0.0
    %3300 = vadd.xlane.f32.xlu0 %v3299
    %v3301 = vpop.xlane.xlu0 %3300
    %v3302 = vmul.f32 %v3298, 0.032258064
    %v3303 = vmul.f32 %v3301, 0.032258064
    %v3304 = vrsqrt.pop %v3302
    %v3305 = vmul.f32 %v3302, %v3304
    %vm3306 = vcmp.eq.f32.partialorder %v3302, inf
    %v3307 = vsel %vm3306, %v3302, %v3305
    %vm3308 = vcmp.eq.f32.partialorder %v3302, 0.0
    %v3309 = vand.u32 %v3302, 2147483648
    %v3310 = vsel %vm3308, %v3309, %v3307
    %v3311 = vrsqrt.pop %v3303
    %v3312 = vmul.f32 %v3303, %v3311
    %vm3313 = vcmp.eq.f32.partialorder %v3303, inf
    %v3314 = vsel %vm3313, %v3303, %v3312
    %vm3315 = vcmp.eq.f32.partialorder %v3303, 0.0
    %v3316 = vand.u32 %v3303, 2147483648
    %v3317 = vsel %vm3315, %v3316, %v3314
    %v3318 = vadd.f32 %v3310, 1e-06
    %v3319 = vadd.f32 %v3317, 1e-06
    %v3320 = vrcp.pop %v3318
    %v3321 = vrcp.pop %v3319
    %v3322 = vmul.f32 %v3292, %v3320
    %v3323 = vmul.f32 %v3293, %v3321
    %v3324 = vlaneseq
    %v3325 = vshrl.u32 %v3324, 7
    %v3326 = vsub.s32 2, %v3325
    %v3327 = vrot.slane %v1837, %v3326
    %v3328 = vmul.f32 %v3327, %v3322
    %v3329 = vmul.f32 %v3327, %v3323
    %v3330 = vlaneseq
    %v3331 = vshrl.u32 %v3330, 7
    %v3332 = vsub.s32 3, %v3331
    %v3333 = vrot.slane %v1837, %v3332
    %v3334 = vadd.f32 %v3328, %v3333
    %v3335 = vadd.f32 %v3329, %v3333
    %v3336 = vlaneseq
    %v3337 = vshrl.u32 %v3336, 7
    %v3338 = vsub.s32 0, %v3337
    %v3339 = vrot.slane %v1837, %v3338
    %v3341 = vsel %vm71, %v3334, 0
    %v3344 = vsel %vm71, %v3335, 0
    %3346 = vmatprep.subr.mxu0 0.0
    %3347 = vmatpush1.msra.mxu0 %v1823
    %3348 = vmatprep.subr.mxu0 0.0
    %3349 = vmatpush1.msra.mxu0 %v1824
    %3350 = vmatprep.subr.mxu0 0.0
    %3351 = vmatpush1.msra.mxu0 %v1825
    %3352 = vmatprep.subr.mxu0 0.0
    %3353 = vmatpush1.msra.mxu0 %v1826
    %3354 = vmatprep.subr.mxu0 0.0
    %3355 = vmatpush1.msra.mxu0 0.0
    %3356 = vmatprep.subr.mxu0 0.0
    %3357 = vmatpush1.msra.mxu0 0.0
    %3358 = vmatprep.subr.mxu0 0.0
    %3359 = vmatpush1.msra.mxu0 0.0
    %3360 = vmatprep.subr.mxu0 0.0
    %3361 = vmatpush1.msra.mxu0 0.0
    %3362 = vmatprep.subr.mxu0 0.0
    %3363 = vmatpush1.msra.mxu0 0.0
    %3364 = vmatprep.subr.mxu0 0.0
    %3365 = vmatpush1.msra.mxu0 0.0
    %3366 = vmatprep.subr.mxu0 0.0
    %3367 = vmatpush1.msra.mxu0 0.0
    %3368 = vmatprep.subr.mxu0 0.0
    %3369 = vmatpush1.msra.mxu0 0.0
    %3370 = vmatprep.subr.mxu0 0.0
    %3371 = vmatpush1.msra.mxu0 0.0
    %3372 = vmatprep.subr.mxu0 0.0
    %3373 = vmatpush1.msra.mxu0 0.0
    %3374 = vmatprep.subr.mxu0 0.0
    %3375 = vmatpush1.msra.mxu0 0.0
    %3376 = vmatprep.subr.mxu0 0.0
    %3377 = vmatpush1.msra.mxu0 0.0
    %3378 = vmatprep.subr.mxu0 0.0
    %3379 = vmatpush1.msra.mxu0 0.0
    %3380 = vmatprep.subr.mxu0 0.0
    %3381 = vmatpush1.msra.mxu0 0.0
    %3382 = vmatprep.subr.mxu0 0.0
    %3383 = vmatpush1.msra.mxu0 0.0
    %3384 = vmatprep.subr.mxu0 0.0
    %3385 = vmatpush1.msra.mxu0 0.0
    %3386 = vmatprep.subr.mxu0 0.0
    %3387 = vmatpush1.msra.mxu0 0.0
    %3388 = vmatprep.subr.mxu0 0.0
    %3389 = vmatpush1.msra.mxu0 0.0
    %3390 = vmatprep.subr.mxu0 0.0
    %3391 = vmatpush1.msra.mxu0 0.0
    %3392 = vmatprep.subr.mxu0 0.0
    %3393 = vmatpush1.msra.mxu0 0.0
    %3394 = vmatprep.subr.mxu0 0.0
    %3395 = vmatpush1.msra.mxu0 0.0
    %3396 = vmatprep.subr.mxu0 0.0
    %3397 = vmatpush1.msra.mxu0 0.0
    %3398 = vmatprep.subr.mxu0 0.0
    %3399 = vmatpush1.msra.mxu0 0.0
    %3400 = vmatprep.subr.mxu0 0.0
    %3401 = vmatpush1.msra.mxu0 0.0
    %3402 = vmatprep.subr.mxu0 0.0
    %3403 = vmatpush1.msra.mxu0 0.0
    %3404 = vmatprep.subr.mxu0 0.0
    %3405 = vmatpush1.msra.mxu0 0.0
    %3406 = vmatprep.subr.mxu0 0.0
    %3407 = vmatpush1.msra.mxu0 0.0
    %3408 = vmatprep.subr.mxu0 0.0
    %3409 = vmatpush1.msra.mxu0 0.0
    %3410 = vmatprep.mubr.f32.mxu0 0.0
    %3411 = vmatmul.mubr.f32.gmra.mrb[0].mxu0 %v3341
    %v3412 = vpop.f32.mrb[0].mxu0
    %v3413 = vadd.f32 %v3339, %v3412
    %v3414 = vpop.f32.mrb[0].mxu0
    %3415 = vmatprep.mubr.f32.mxu0 0.0
    %3416 = vmatmul.mubr.f32.gmra.mrb[0].mxu0 %v3344
    %v3417 = vpop.f32.mrb[0].mxu0
    %v3418 = vadd.f32 %v3339, %v3417
    %v3419 = vpop.f32.mrb[0].mxu0
    %3420 = vdwg.mxu0
    %v3421 = vmax.f32 %v3413, 0.0
    %v3422 = vmax.f32 %v3418, 0.0
    %v3423 = vlaneseq
    %v3424 = vshrl.u32 %v3423, 7
    %v3425 = vsub.s32 1, %v3424
    %v3426 = vrot.slane %v1837, %v3425
    %v3428 = vsel %vm1664, %v3421, 0
    %v3431 = vsel %vm1664, %v3422, 0
    %3433 = vmatprep.subr.mxu0 0.0
    %3434 = vmatpush1.msra.mxu0 %v1828
    %3435 = vmatprep.subr.mxu0 0.0
    %3436 = vmatpush1.msra.mxu0 %v1829
    %3437 = vmatprep.subr.mxu0 0.0
    %3438 = vmatpush1.msra.mxu0 %v1830
    %3439 = vmatprep.subr.mxu0 0.0
    %3440 = vmatpush1.msra.mxu0 %v1831
    %3441 = vmatprep.subr.mxu0 0.0
    %3442 = vmatpush1.msra.mxu0 %v1832
    %3443 = vmatprep.subr.mxu0 0.0
    %3444 = vmatpush1.msra.mxu0 %v1833
    %3445 = vmatprep.subr.mxu0 0.0
    %3446 = vmatpush1.msra.mxu0 %v1834
    %3447 = vmatprep.subr.mxu0 0.0
    %3448 = vmatpush1.msra.mxu0 %v1835
    %3449 = vmatprep.subr.mxu0 0.0
    %3450 = vmatpush1.msra.mxu0 0.0
    %3451 = vmatprep.subr.mxu0 0.0
    %3452 = vmatpush1.msra.mxu0 0.0
    %3453 = vmatprep.subr.mxu0 0.0
    %3454 = vmatpush1.msra.mxu0 0.0
    %3455 = vmatprep.subr.mxu0 0.0
    %3456 = vmatpush1.msra.mxu0 0.0
    %3457 = vmatprep.subr.mxu0 0.0
    %3458 = vmatpush1.msra.mxu0 0.0
    %3459 = vmatprep.subr.mxu0 0.0
    %3460 = vmatpush1.msra.mxu0 0.0
    %3461 = vmatprep.subr.mxu0 0.0
    %3462 = vmatpush1.msra.mxu0 0.0
    %3463 = vmatprep.subr.mxu0 0.0
    %3464 = vmatpush1.msra.mxu0 0.0
    %3465 = vmatprep.subr.mxu0 0.0
    %3466 = vmatpush1.msra.mxu0 0.0
    %3467 = vmatprep.subr.mxu0 0.0
    %3468 = vmatpush1.msra.mxu0 0.0
    %3469 = vmatprep.subr.mxu0 0.0
    %3470 = vmatpush1.msra.mxu0 0.0
    %3471 = vmatprep.subr.mxu0 0.0
    %3472 = vmatpush1.msra.mxu0 0.0
    %3473 = vmatprep.subr.mxu0 0.0
    %3474 = vmatpush1.msra.mxu0 0.0
    %3475 = vmatprep.subr.mxu0 0.0
    %3476 = vmatpush1.msra.mxu0 0.0
    %3477 = vmatprep.subr.mxu0 0.0
    %3478 = vmatpush1.msra.mxu0 0.0
    %3479 = vmatprep.subr.mxu0 0.0
    %3480 = vmatpush1.msra.mxu0 0.0
    %3481 = vmatprep.subr.mxu0 0.0
    %3482 = vmatpush1.msra.mxu0 0.0
    %3483 = vmatprep.subr.mxu0 0.0
    %3484 = vmatpush1.msra.mxu0 0.0
    %3485 = vmatprep.subr.mxu0 0.0
    %3486 = vmatpush1.msra.mxu0 0.0
    %3487 = vmatprep.subr.mxu0 0.0
    %3488 = vmatpush1.msra.mxu0 0.0
    %3489 = vmatprep.subr.mxu0 0.0
    %3490 = vmatpush1.msra.mxu0 0.0
    %3491 = vmatprep.subr.mxu0 0.0
    %3492 = vmatpush1.msra.mxu0 0.0
    %3493 = vmatprep.subr.mxu0 0.0
    %3494 = vmatpush1.msra.mxu0 0.0
    %3495 = vmatprep.subr.mxu0 0.0
    %3496 = vmatpush1.msra.mxu0 0.0
    %3497 = vmatprep.mubr.f32.mxu0 0.0
    %3498 = vmatmul.mubr.f32.gmra.mrb[0].mxu0 %v3428
    %v3499 = vpop.f32.mrb[0].mxu0
    %v3500 = vadd.f32 %v3426, %v3499
    %v3501 = vpop.f32.mrb[0].mxu0
    %3502 = vmatprep.mubr.f32.mxu0 0.0
    %3503 = vmatmul.mubr.f32.gmra.mrb[0].mxu0 %v3431
    %v3504 = vpop.f32.mrb[0].mxu0
    %v3505 = vadd.f32 %v3426, %v3504
    %v3506 = vpop.f32.mrb[0].mxu0
    %3507 = vdwg.mxu0
    %v3508 = vadd.f32 %v3334, %v3500
    %v3509 = vadd.f32 %v3335, %v3505
    %v3510 = vsel %vm71, %v3508, 0.0
    %3511 = vadd.xlane.f32.xlu0 %v3510
    %v3512 = vpop.xlane.xlu0 %3511
    %v3513 = vsel %vm71, %v3509, 0.0
    %3514 = vadd.xlane.f32.xlu0 %v3513
    %v3515 = vpop.xlane.xlu0 %3514
    %v3516 = vmul.f32 %v3512, %v1526
    %v3517 = vmul.f32 %v3515, %v1526
    %v3518 = vsub.f32 %v3508, %v3516
    %v3519 = vsub.f32 %v3509, %v3517
    %v3520 = vmul.f32 %v3518, %v3518
    %v3521 = vmul.f32 %v3519, %v3519
    %v3522 = vsel %vm71, %v3520, 0.0
    %3523 = vadd.xlane.f32.xlu0 %v3522
    %v3524 = vpop.xlane.xlu0 %3523
    %v3525 = vsel %vm71, %v3521, 0.0
    %3526 = vadd.xlane.f32.xlu0 %v3525
    %v3527 = vpop.xlane.xlu0 %3526
    %v3528 = vmul.f32 %v3524, 0.032258064
    %v3529 = vmul.f32 %v3527, 0.032258064
    %v3530 = vrsqrt.pop %v3528
    %v3531 = vmul.f32 %v3528, %v3530
    %vm3532 = vcmp.eq.f32.partialorder %v3528, inf
    %v3533 = vsel %vm3532, %v3528, %v3531
    %vm3534 = vcmp.eq.f32.partialorder %v3528, 0.0
    %v3535 = vand.u32 %v3528, 2147483648
    %v3536 = vsel %vm3534, %v3535, %v3533
    %v3537 = vrsqrt.pop %v3529
    %v3538 = vmul.f32 %v3529, %v3537
    %vm3539 = vcmp.eq.f32.partialorder %v3529, inf
    %v3540 = vsel %vm3539, %v3529, %v3538
    %vm3541 = vcmp.eq.f32.partialorder %v3529, 0.0
    %v3542 = vand.u32 %v3529, 2147483648
    %v3543 = vsel %vm3541, %v3542, %v3540
    %v3544 = vadd.f32 %v3536, 1e-06
    %v3545 = vadd.f32 %v3543, 1e-06
    %v3546 = vrcp.pop %v3544
    %v3547 = vrcp.pop %v3545
    %v3548 = vmul.f32 %v3518, %v3546
    %v3549 = vmul.f32 %v3519, %v3547
    %v3550 = vlaneseq
    %v3551 = vshrl.u32 %v3550, 7
    %v3552 = vsub.s32 4, %v3551
    %v3553 = vrot.slane %v1837, %v3552
    %v3554 = vmul.f32 %v3553, %v3548
    %v3555 = vmul.f32 %v3553, %v3549
    %v3556 = vlaneseq
    %v3557 = vshrl.u32 %v3556, 7
    %v3558 = vsub.s32 5, %v3557
    %v3559 = vrot.slane %v1837, %v3558
    %v3560 = vadd.f32 %v3554, %v3559
    %v3561 = vadd.f32 %v3555, %v3559
    %3562 = vst.msk [vmem:[#allocation2] sm:$0xff] %vm71, %v3560
    %3563 = vst.msk [vmem:[#allocation2 + $0x8] sm:$0xff] %vm71, %v3561
    // Predicated region
    $region34: #{encoder_forward.1} parent=1 // pred_check
      _
    $region35: #{encoder_forward.1} parent=1 // pred_check_branch
      %3565 = sbr.rel (0) target = $region37
    $region36: #{encoder_forward.1} parent=1 // pred_region
      %s3567 = ssub.s32 256, 256
      %3568 = vsyncadd [#allocation3], %s3567
      %s3569 = sshll.u32 [#allocation2], 4
      %s3570 = int_to_ptr.vmem [resolvable:$true] %s3569
      %3575 = dma.vmem_to_hbm [thread:$0]  %s3570, 256, %s8, [#allocation3], 128, 128, 8
    $region37: #{encoder_forward.1} parent=1 // pred_fallthru
      _
    // Predicated region
    $region38: #{encoder_forward.1} parent=1 // pred_check
      _
    $region39: #{encoder_forward.1} parent=1 // pred_check_branch
      %3577 = sbr.rel (0) target = $region41
    $region40: #{encoder_forward.1} parent=1 // pred_region
      %3578 = dma.done [#allocation3], 256
    $region41: #{encoder_forward.1} parent=1 // pred_fallthru
      _
    %3579 = vsyncpa [#allocation3], 1

</llo_original>
